<compile_context>
chip_gen: v7x
topology: tpu7x:2x2x1
jax: 0.10.0
libtpu: 0.0.40
codegen_flags: <defaults>
</compile_context>

<pallas_src>
import jax
import jax.numpy as jnp
from jax.experimental import pallas as pl
from jax.experimental.pallas import tpu as pltpu


def _fused_lstm2_kernel(gx1_ref, whh1_ref, wih2_ref, whh2_ref, b2_ref,
                        out_ref, h1_sc, c1_sc, h2_sc, c2_sc):
    """Fused 2-layer LSTM recurrence over one chunk of TT time steps.

    gx1_ref : (TT, B, 4H) f32   precomputed layer-1 input gates (x@Wih1^T + b1)
    whh1_ref: (H, 4H)           layer-1 hidden->gates weight (matmul dtype)
    wih2_ref: (H, 4H)           layer-2 input->gates weight  (matmul dtype)
    whh2_ref: (H, 4H)           layer-2 hidden->gates weight (matmul dtype)
    b2_ref  : (1, 4H) f32       layer-2 combined bias (b_ih + b_hh)
    out_ref : (TT, B, H)        layer-2 h_t for this chunk
    h*_sc/c*_sc: (B, H) f32 VMEM scratch carrying the recurrent state.
    """
    t_chunk = pl.program_id(0)

    @pl.when(t_chunk == 0)
    def _():
        h1_sc[...] = jnp.zeros_like(h1_sc)
        c1_sc[...] = jnp.zeros_like(c1_sc)
        h2_sc[...] = jnp.zeros_like(h2_sc)
        c2_sc[...] = jnp.zeros_like(c2_sc)

    H = h1_sc.shape[-1]
    mm_dtype = whh1_ref.dtype

    # Grid-invariant operands: load once per chunk, outside the step loop.
    whh1 = whh1_ref[...]
    wih2 = wih2_ref[...]
    whh2 = whh2_ref[...]
    b2 = b2_ref[...]

    def gate_math(gates, c_prev):
        # PyTorch gate order on the 4H axis: i, f, g, o.
        i_g = jax.nn.sigmoid(gates[:, 0 * H:1 * H])
        f_g = jax.nn.sigmoid(gates[:, 1 * H:2 * H])
        g_g = jnp.tanh(gates[:, 2 * H:3 * H])
        o_g = jax.nn.sigmoid(gates[:, 3 * H:4 * H])
        c_new = f_g * c_prev + i_g * g_g
        h_new = o_g * jnp.tanh(c_new)
        return h_new, c_new

    def step(tt, carry):
        h1, c1, h2, c2 = carry
        # Layer 1: only the recurrent matmul (input projection was hoisted).
        gates1 = gx1_ref[tt] + jnp.dot(
            h1.astype(mm_dtype), whh1, preferred_element_type=jnp.float32)
        h1, c1 = gate_math(gates1, c1)
        # Layer 2 fed directly from layer 1's h (no HBM round trip).
        gates2 = (jnp.dot(h1.astype(mm_dtype), wih2,
                          preferred_element_type=jnp.float32)
                  + jnp.dot(h2.astype(mm_dtype), whh2,
                            preferred_element_type=jnp.float32)
                  + b2)
        h2, c2 = gate_math(gates2, c2)
        out_ref[tt] = h2.astype(out_ref.dtype)
        return h1, c1, h2, c2

    TT = gx1_ref.shape[0]
    carry = (h1_sc[...], c1_sc[...], h2_sc[...], c2_sc[...])
    h1, c1, h2, c2 = jax.lax.fori_loop(0, TT, step, carry,
                                       unroll=(TT <= 16))
    h1_sc[...] = h1
    c1_sc[...] = c1
    h2_sc[...] = h2
    c2_sc[...] = c2


def _fused_lstm2_pallas(gx1, whh1_t, wih2_t, whh2_t, b2, hidden_size,
                        time_chunk):
    """gx1: (T_pad, B, 4H) -> layer-2 hidden states (T_pad, B, H)."""
    Tp, B, G = gx1.shape
    H = hidden_size
    n_chunks = Tp // time_chunk
    return pl.pallas_call(
        _fused_lstm2_kernel,
        out_shape=jax.ShapeDtypeStruct((Tp, B, H), jnp.float32),
        grid_spec=pltpu.PrefetchScalarGridSpec(
            num_scalar_prefetch=0,
            grid=(n_chunks,),
            in_specs=[
                pl.BlockSpec((time_chunk, B, G), lambda t: (t, 0, 0)),
                pl.BlockSpec((H, G), lambda t: (0, 0)),
                pl.BlockSpec((H, G), lambda t: (0, 0)),
                pl.BlockSpec((H, G), lambda t: (0, 0)),
                pl.BlockSpec((1, G), lambda t: (0, 0)),
            ],
            out_specs=pl.BlockSpec((time_chunk, B, H), lambda t: (t, 0, 0)),
            scratch_shapes=[pltpu.VMEM((B, H), jnp.float32)] * 4,
        ),
        compiler_params=pltpu.CompilerParams(
            # Recurrence carried in scratch -> chunked time axis must stay
            # sequential.  Do NOT mark this "parallel".
            dimension_semantics=("arbitrary",),
        ),
    )(gx1, whh1_t, wih2_t, whh2_t, b2)


def init_lstm_params(key, input_size, hidden_size, num_layers):
    """Deterministic params matching nn.LSTM's shapes (uniform +-1/sqrt(H))."""
    params = []
    bound = 1.0 / (hidden_size ** 0.5)
    for layer in range(num_layers):
        in_dim = input_size if layer == 0 else hidden_size
        key, k1, k2, k3, k4 = jax.random.split(key, 5)
        w_ih = jax.random.uniform(k1, (4 * hidden_size, in_dim),
                                  jnp.float32, -bound, bound)
        w_hh = jax.random.uniform(k2, (4 * hidden_size, hidden_size),
                                  jnp.float32, -bound, bound)
        b_ih = jax.random.uniform(k3, (4 * hidden_size,),
                                  jnp.float32, -bound, bound)
        b_hh = jax.random.uniform(k4, (4 * hidden_size,),
                                  jnp.float32, -bound, bound)
        params.append((w_ih, w_hh, b_ih, b_hh))
    return params


def first_lstm_forward(x_btd, params, *, matmul_dtype=jnp.bfloat16,
                       time_chunk=16):
    """FirstLSTM.forward: x (B, T, D) -> (B, H, T)."""
    assert len(params) == 2, "fused kernel implements the module's 2 layers"
    (w_ih1, w_hh1, b_ih1, b_hh1), (w_ih2, w_hh2, b_ih2, b_hh2) = params
    H = w_hh1.shape[1]
    B, T, D = x_btd.shape

    x_tbd = jnp.transpose(x_btd, (1, 0, 2))                 # (T, B, D)

    # Hoisted layer-1 input projection: one big MXU matmul, bias folded in.
    w_ih1_t = jnp.transpose(w_ih1).astype(matmul_dtype)     # (D, 4H)
    gx1 = jnp.einsum('tbd,dg->tbg', x_tbd.astype(matmul_dtype), w_ih1_t,
                     preferred_element_type=jnp.float32)
    gx1 = gx1 + (b_ih1 + b_hh1)[None, None, :]              # (T, B, 4H) f32

    # Pad T to a multiple of the time chunk; padded steps are discarded.
    tc = max(1, min(time_chunk, T))
    T_pad = pl.cdiv(T, tc) * tc
    if T_pad != T:
        gx1 = jnp.pad(gx1, ((0, T_pad - T), (0, 0), (0, 0)))

    whh1_t = jnp.transpose(w_hh1).astype(matmul_dtype)      # (H, 4H)
    wih2_t = jnp.transpose(w_ih2).astype(matmul_dtype)      # (H, 4H)
    whh2_t = jnp.transpose(w_hh2).astype(matmul_dtype)      # (H, 4H)
    b2 = (b_ih2 + b_hh2).reshape(1, -1).astype(jnp.float32)  # (1, 4H)

    h2_all = _fused_lstm2_pallas(gx1, whh1_t, wih2_t, whh2_t, b2, H, tc)

    # (T, B, H) -> (B, H, T): matches lstm(x)[0].transpose(1, 2).
    return jnp.transpose(h2_all[:T], (1, 2, 0))


def _reference_forward(x_btd, params):
    """Pure-JAX f32 reference (lax.scan) for correctness checking."""
    def one_layer(xs_tbd, w_ih, w_hh, b_ih, b_hh):
        H = w_hh.shape[1]
        b = b_ih + b_hh

        def step(carry, x_t):
            h, c = carry
            gates = x_t @ w_ih.T + h @ w_hh.T + b
            i = jax.nn.sigmoid(gates[:, 0 * H:1 * H])
            f = jax.nn.sigmoid(gates[:, 1 * H:2 * H])
            g = jnp.tanh(gates[:, 2 * H:3 * H])
            o = jax.nn.sigmoid(gates[:, 3 * H:4 * H])
            c = f * c + i * g
            h = o * jnp.tanh(c)
            return (h, c), h

        B = xs_tbd.shape[1]
        init = (jnp.zeros((B, H), jnp.float32), jnp.zeros((B, H), jnp.float32))
        _, hs = jax.lax.scan(step, init, xs_tbd)
        return hs

    h = jnp.transpose(x_btd, (1, 0, 2))
    for (w_ih, w_hh, b_ih, b_hh) in params:
        h = one_layer(h, w_ih, w_hh, b_ih, b_hh)
    return jnp.transpose(h, (1, 2, 0))


if __name__ == "__main__":
    B, T = 2, 8
    input_size, hidden_size, n_layers = 4, 32, 2

    key = jax.random.PRNGKey(0)
    kx, kp = jax.random.split(key)
    x = jax.random.normal(kx, (B, T, input_size), jnp.float32)
    params = init_lstm_params(kp, input_size, hidden_size, n_layers)

    ref = jax.block_until_ready(_reference_forward(x, params))

    # f32 matmul path: should match the pure-JAX reference tightly.
    out_f32 = jax.block_until_ready(
        first_lstm_forward(x, params, matmul_dtype=jnp.float32))
    assert out_f32.shape == (B, hidden_size, T), out_f32.shape
    assert jnp.allclose(out_f32, ref, atol=1e-3, rtol=1e-3), (
        float(jnp.max(jnp.abs(out_f32 - ref))))

    # bf16 matmul path (MXU-native on v6e/v7x): f32 accumulation/state, so
    # only bf16-rounding-level deviation from the f32 reference is expected.
    out_bf16 = jax.block_until_ready(
        first_lstm_forward(x, params, matmul_dtype=jnp.bfloat16))
    assert out_bf16.shape == (B, hidden_size, T), out_bf16.shape
    assert jnp.allclose(out_bf16, ref, atol=5e-2, rtol=5e-2), (
        float(jnp.max(jnp.abs(out_bf16 - ref))))

    print("KERNEL_OK")
</pallas_src>

<mosaic_0001>
module attributes {stable_mosaic.version = 11 : i64} {
  func.func @_fused_lstm2_kernel(%arg0: i32, %arg1: memref<8x2x128xf32, #tpu.memory_space<vmem>>, %arg2: memref<32x128xf32, #tpu.memory_space<vmem>>, %arg3: memref<32x128xf32, #tpu.memory_space<vmem>>, %arg4: memref<32x128xf32, #tpu.memory_space<vmem>>, %arg5: memref<1x128xf32, #tpu.memory_space<vmem>>, %arg6: memref<8x2x32xf32, #tpu.memory_space<vmem>>, %arg7: memref<2x32xf32, #tpu.memory_space<vmem>>, %arg8: memref<2x32xf32, #tpu.memory_space<vmem>>, %arg9: memref<2x32xf32, #tpu.memory_space<vmem>>, %arg10: memref<2x32xf32, #tpu.memory_space<vmem>>) attributes {dimension_semantics = [#tpu.dimension_semantics<arbitrary>], iteration_bounds = array<i64: 1>, scalar_prefetch = 0 : i64, scratch_operands = 4 : i64, tpu.core_type = #tpu.core_type<tc>, window_params = [{transform_indices = @transform_0, window_bounds = array<i64: 8, 2, 128>}, {pipeline_mode = #tpu.pipeline_mode<synchronous>, transform_indices = @transform_1, window_bounds = array<i64: 32, 128>}, {pipeline_mode = #tpu.pipeline_mode<synchronous>, transform_indices = @transform_2, window_bounds = array<i64: 32, 128>}, {pipeline_mode = #tpu.pipeline_mode<synchronous>, transform_indices = @transform_3, window_bounds = array<i64: 32, 128>}, {pipeline_mode = #tpu.pipeline_mode<synchronous>, transform_indices = @transform_4, window_bounds = array<i64: 1, 128>}, {transform_indices = @transform_5, window_bounds = array<i64: 8, 2, 32>}]} {
    %c0_i32 = arith.constant 0 : i32
    %0 = arith.cmpi eq, %arg0, %c0_i32 : i32
    %1 = arith.extui %0 : i1 to i32
    %c0_i32_0 = arith.constant 0 : i32
    %2 = arith.cmpi ne, %1, %c0_i32_0 : i32
    scf.if %2 {
      %cst_128 = arith.constant 0.000000e+00 : f32
      %527 = vector.broadcast %cst_128 : f32 to vector<2x32xf32>
      %c0_129 = arith.constant 0 : index
      %c0_130 = arith.constant 0 : index
      %528 = vector.load %arg7[%c0_129, %c0_130] : memref<2x32xf32, #tpu.memory_space<vmem>>, vector<2x32xf32>
      tpu.vector_store %arg7[%c0_129, %c0_130], %527 {strides = array<i32>} : memref<2x32xf32, #tpu.memory_space<vmem>>, vector<2x32xf32>,
      %cst_131 = arith.constant 0.000000e+00 : f32
      %529 = vector.broadcast %cst_131 : f32 to vector<2x32xf32>
      %c0_132 = arith.constant 0 : index
      %c0_133 = arith.constant 0 : index
      %530 = vector.load %arg8[%c0_132, %c0_133] : memref<2x32xf32, #tpu.memory_space<vmem>>, vector<2x32xf32>
      tpu.vector_store %arg8[%c0_132, %c0_133], %529 {strides = array<i32>} : memref<2x32xf32, #tpu.memory_space<vmem>>, vector<2x32xf32>,
      %cst_134 = arith.constant 0.000000e+00 : f32
      %531 = vector.broadcast %cst_134 : f32 to vector<2x32xf32>
      %c0_135 = arith.constant 0 : index
      %c0_136 = arith.constant 0 : index
      %532 = vector.load %arg9[%c0_135, %c0_136] : memref<2x32xf32, #tpu.memory_space<vmem>>, vector<2x32xf32>
      tpu.vector_store %arg9[%c0_135, %c0_136], %531 {strides = array<i32>} : memref<2x32xf32, #tpu.memory_space<vmem>>, vector<2x32xf32>,
      %cst_137 = arith.constant 0.000000e+00 : f32
      %533 = vector.broadcast %cst_137 : f32 to vector<2x32xf32>
      %c0_138 = arith.constant 0 : index
      %c0_139 = arith.constant 0 : index
      %534 = vector.load %arg10[%c0_138, %c0_139] : memref<2x32xf32, #tpu.memory_space<vmem>>, vector<2x32xf32>
      tpu.vector_store %arg10[%c0_138, %c0_139], %533 {strides = array<i32>} : memref<2x32xf32, #tpu.memory_space<vmem>>, vector<2x32xf32>,
    } else {
    }
    %c0 = arith.constant 0 : index
    %c0_1 = arith.constant 0 : index
    %3 = vector.load %arg2[%c0, %c0_1] : memref<32x128xf32, #tpu.memory_space<vmem>>, vector<32x128xf32>
    %c0_2 = arith.constant 0 : index
    %c0_3 = arith.constant 0 : index
    %4 = vector.load %arg3[%c0_2, %c0_3] : memref<32x128xf32, #tpu.memory_space<vmem>>, vector<32x128xf32>
    %c0_4 = arith.constant 0 : index
    %c0_5 = arith.constant 0 : index
    %5 = vector.load %arg4[%c0_4, %c0_5] : memref<32x128xf32, #tpu.memory_space<vmem>>, vector<32x128xf32>
    %c0_6 = arith.constant 0 : index
    %c0_7 = arith.constant 0 : index
    %6 = vector.load %arg5[%c0_6, %c0_7] : memref<1x128xf32, #tpu.memory_space<vmem>>, vector<1x128xf32>
    %c0_8 = arith.constant 0 : index
    %c0_9 = arith.constant 0 : index
    %7 = vector.load %arg7[%c0_8, %c0_9] : memref<2x32xf32, #tpu.memory_space<vmem>>, vector<2x32xf32>
    %c0_10 = arith.constant 0 : index
    %c0_11 = arith.constant 0 : index
    %8 = vector.load %arg8[%c0_10, %c0_11] : memref<2x32xf32, #tpu.memory_space<vmem>>, vector<2x32xf32>
    %c0_12 = arith.constant 0 : index
    %c0_13 = arith.constant 0 : index
    %9 = vector.load %arg9[%c0_12, %c0_13] : memref<2x32xf32, #tpu.memory_space<vmem>>, vector<2x32xf32>
    %c0_14 = arith.constant 0 : index
    %c0_15 = arith.constant 0 : index
    %10 = vector.load %arg10[%c0_14, %c0_15] : memref<2x32xf32, #tpu.memory_space<vmem>>, vector<2x32xf32>
    %c0_i32_16 = arith.constant 0 : i32
    %11 = arith.index_cast %c0_i32_16 : i32 to index
    %c0_17 = arith.constant 0 : index
    %c0_18 = arith.constant 0 : index
    %12 = vector.load %arg1[%11, %c0_17, %c0_18] : memref<8x2x128xf32, #tpu.memory_space<vmem>>, vector<1x2x128xf32>
    %13 = vector.shape_cast %12 : vector<1x2x128xf32> to vector<2x128xf32>
    %cst = arith.constant dense<0.000000e+00> : vector<2x128xf32>
    %14 = tpu.matmul %7, %3, %cst {dimension_numbers = #tpu.dot_dimension_numbers<[1], [0], [0], [1], [0, 0, 1, 1], [], []>} : vector<2x32xf32>, vector<32x128xf32>, vector<2x128xf32> -> vector<2x128xf32>
    %15 = arith.addf %13, %14 : vector<2x128xf32>
    %16 = vector.extract_strided_slice %15 {offsets = [0, 0], sizes = [2, 32], strides = [1, 1]} : vector<2x128xf32> to vector<2x32xf32>
    %17 = arith.negf %16 : vector<2x32xf32>
    %18 = math.exp %17 : vector<2x32xf32>
    %cst_19 = arith.constant 1.000000e+00 : f32
    %19 = vector.broadcast %cst_19 : f32 to vector<2x32xf32>
    %20 = arith.addf %19, %18 : vector<2x32xf32>
    %21 = arith.divf %19, %20 : vector<2x32xf32>
    %22 = vector.extract_strided_slice %15 {offsets = [0, 32], sizes = [2, 32], strides = [1, 1]} : vector<2x128xf32> to vector<2x32xf32>
    %23 = arith.negf %22 : vector<2x32xf32>
    %24 = math.exp %23 : vector<2x32xf32>
    %cst_20 = arith.constant 1.000000e+00 : f32
    %25 = vector.broadcast %cst_20 : f32 to vector<2x32xf32>
    %26 = arith.addf %25, %24 : vector<2x32xf32>
    %27 = arith.divf %25, %26 : vector<2x32xf32>
    %28 = vector.extract_strided_slice %15 {offsets = [0, 64], sizes = [2, 32], strides = [1, 1]} : vector<2x128xf32> to vector<2x32xf32>
    %29 = math.tanh %28 : vector<2x32xf32>
    %30 = vector.extract_strided_slice %15 {offsets = [0, 96], sizes = [2, 32], strides = [1, 1]} : vector<2x128xf32> to vector<2x32xf32>
    %31 = arith.negf %30 : vector<2x32xf32>
    %32 = math.exp %31 : vector<2x32xf32>
    %cst_21 = arith.constant 1.000000e+00 : f32
    %33 = vector.broadcast %cst_21 : f32 to vector<2x32xf32>
    %34 = arith.addf %33, %32 : vector<2x32xf32>
    %35 = arith.divf %33, %34 : vector<2x32xf32>
    %36 = arith.mulf %27, %8 : vector<2x32xf32>
    %37 = arith.mulf %21, %29 : vector<2x32xf32>
    %38 = arith.addf %36, %37 : vector<2x32xf32>
    %39 = math.tanh %38 : vector<2x32xf32>
    %40 = arith.mulf %35, %39 : vector<2x32xf32>
    %cst_22 = arith.constant dense<0.000000e+00> : vector<2x128xf32>
    %41 = tpu.matmul %40, %4, %cst_22 {dimension_numbers = #tpu.dot_dimension_numbers<[1], [0], [0], [1], [0, 0, 1, 1], [], []>} : vector<2x32xf32>, vector<32x128xf32>, vector<2x128xf32> -> vector<2x128xf32>
    %cst_23 = arith.constant dense<0.000000e+00> : vector<2x128xf32>
    %42 = tpu.matmul %9, %5, %cst_23 {dimension_numbers = #tpu.dot_dimension_numbers<[1], [0], [0], [1], [0, 0, 1, 1], [], []>} : vector<2x32xf32>, vector<32x128xf32>, vector<2x128xf32> -> vector<2x128xf32>
    %43 = arith.addf %41, %42 : vector<2x128xf32>
    %44 = vector.broadcast %6 : vector<1x128xf32> to vector<2x128xf32>
    %45 = arith.addf %43, %44 : vector<2x128xf32>
    %46 = vector.extract_strided_slice %45 {offsets = [0, 0], sizes = [2, 32], strides = [1, 1]} : vector<2x128xf32> to vector<2x32xf32>
    %47 = arith.negf %46 : vector<2x32xf32>
    %48 = math.exp %47 : vector<2x32xf32>
    %cst_24 = arith.constant 1.000000e+00 : f32
    %49 = vector.broadcast %cst_24 : f32 to vector<2x32xf32>
    %50 = arith.addf %49, %48 : vector<2x32xf32>
    %51 = arith.divf %49, %50 : vector<2x32xf32>
    %52 = vector.extract_strided_slice %45 {offsets = [0, 32], sizes = [2, 32], strides = [1, 1]} : vector<2x128xf32> to vector<2x32xf32>
    %53 = arith.negf %52 : vector<2x32xf32>
    %54 = math.exp %53 : vector<2x32xf32>
    %cst_25 = arith.constant 1.000000e+00 : f32
    %55 = vector.broadcast %cst_25 : f32 to vector<2x32xf32>
    %56 = arith.addf %55, %54 : vector<2x32xf32>
    %57 = arith.divf %55, %56 : vector<2x32xf32>
    %58 = vector.extract_strided_slice %45 {offsets = [0, 64], sizes = [2, 32], strides = [1, 1]} : vector<2x128xf32> to vector<2x32xf32>
    %59 = math.tanh %58 : vector<2x32xf32>
    %60 = vector.extract_strided_slice %45 {offsets = [0, 96], sizes = [2, 32], strides = [1, 1]} : vector<2x128xf32> to vector<2x32xf32>
    %61 = arith.negf %60 : vector<2x32xf32>
    %62 = math.exp %61 : vector<2x32xf32>
    %cst_26 = arith.constant 1.000000e+00 : f32
    %63 = vector.broadcast %cst_26 : f32 to vector<2x32xf32>
    %64 = arith.addf %63, %62 : vector<2x32xf32>
    %65 = arith.divf %63, %64 : vector<2x32xf32>
    %66 = arith.mulf %57, %10 : vector<2x32xf32>
    %67 = arith.mulf %51, %59 : vector<2x32xf32>
    %68 = arith.addf %66, %67 : vector<2x32xf32>
    %69 = math.tanh %68 : vector<2x32xf32>
    %70 = arith.mulf %65, %69 : vector<2x32xf32>
    %71 = arith.index_cast %c0_i32_16 : i32 to index
    %c0_27 = arith.constant 0 : index
    %c0_28 = arith.constant 0 : index
    %72 = vector.load %arg6[%71, %c0_27, %c0_28] : memref<8x2x32xf32, #tpu.memory_space<vmem>>, vector<1x2x32xf32>
    %73 = vector.shape_cast %72 : vector<1x2x32xf32> to vector<2x32xf32>
    %74 = vector.shape_cast %70 : vector<2x32xf32> to vector<1x2x32xf32>
    tpu.vector_store %arg6[%71, %c0_27, %c0_28], %74 {strides = array<i32>} : memref<8x2x32xf32, #tpu.memory_space<vmem>>, vector<1x2x32xf32>,
    %c1_i32 = arith.constant 1 : i32
    %75 = arith.index_cast %c1_i32 : i32 to index
    %c0_29 = arith.constant 0 : index
    %c0_30 = arith.constant 0 : index
    %76 = vector.load %arg1[%75, %c0_29, %c0_30] : memref<8x2x128xf32, #tpu.memory_space<vmem>>, vector<1x2x128xf32>
    %77 = vector.shape_cast %76 : vector<1x2x128xf32> to vector<2x128xf32>
    %cst_31 = arith.constant dense<0.000000e+00> : vector<2x128xf32>
    %78 = tpu.matmul %40, %3, %cst_31 {dimension_numbers = #tpu.dot_dimension_numbers<[1], [0], [0], [1], [0, 0, 1, 1], [], []>} : vector<2x32xf32>, vector<32x128xf32>, vector<2x128xf32> -> vector<2x128xf32>
    %79 = arith.addf %77, %78 : vector<2x128xf32>
    %80 = vector.extract_strided_slice %79 {offsets = [0, 0], sizes = [2, 32], strides = [1, 1]} : vector<2x128xf32> to vector<2x32xf32>
    %81 = arith.negf %80 : vector<2x32xf32>
    %82 = math.exp %81 : vector<2x32xf32>
    %cst_32 = arith.constant 1.000000e+00 : f32
    %83 = vector.broadcast %cst_32 : f32 to vector<2x32xf32>
    %84 = arith.addf %83, %82 : vector<2x32xf32>
    %85 = arith.divf %83, %84 : vector<2x32xf32>
    %86 = vector.extract_strided_slice %79 {offsets = [0, 32], sizes = [2, 32], strides = [1, 1]} : vector<2x128xf32> to vector<2x32xf32>
    %87 = arith.negf %86 : vector<2x32xf32>
    %88 = math.exp %87 : vector<2x32xf32>
    %cst_33 = arith.constant 1.000000e+00 : f32
    %89 = vector.broadcast %cst_33 : f32 to vector<2x32xf32>
    %90 = arith.addf %89, %88 : vector<2x32xf32>
    %91 = arith.divf %89, %90 : vector<2x32xf32>
    %92 = vector.extract_strided_slice %79 {offsets = [0, 64], sizes = [2, 32], strides = [1, 1]} : vector<2x128xf32> to vector<2x32xf32>
    %93 = math.tanh %92 : vector<2x32xf32>
    %94 = vector.extract_strided_slice %79 {offsets = [0, 96], sizes = [2, 32], strides = [1, 1]} : vector<2x128xf32> to vector<2x32xf32>
    %95 = arith.negf %94 : vector<2x32xf32>
    %96 = math.exp %95 : vector<2x32xf32>
    %cst_34 = arith.constant 1.000000e+00 : f32
    %97 = vector.broadcast %cst_34 : f32 to vector<2x32xf32>
    %98 = arith.addf %97, %96 : vector<2x32xf32>
    %99 = arith.divf %97, %98 : vector<2x32xf32>
    %100 = arith.mulf %91, %38 : vector<2x32xf32>
    %101 = arith.mulf %85, %93 : vector<2x32xf32>
    %102 = arith.addf %100, %101 : vector<2x32xf32>
    %103 = math.tanh %102 : vector<2x32xf32>
    %104 = arith.mulf %99, %103 : vector<2x32xf32>
    %cst_35 = arith.constant dense<0.000000e+00> : vector<2x128xf32>
    %105 = tpu.matmul %104, %4, %cst_35 {dimension_numbers = #tpu.dot_dimension_numbers<[1], [0], [0], [1], [0, 0, 1, 1], [], []>} : vector<2x32xf32>, vector<32x128xf32>, vector<2x128xf32> -> vector<2x128xf32>
    %cst_36 = arith.constant dense<0.000000e+00> : vector<2x128xf32>
    %106 = tpu.matmul %70, %5, %cst_36 {dimension_numbers = #tpu.dot_dimension_numbers<[1], [0], [0], [1], [0, 0, 1, 1], [], []>} : vector<2x32xf32>, vector<32x128xf32>, vector<2x128xf32> -> vector<2x128xf32>
    %107 = arith.addf %105, %106 : vector<2x128xf32>
    %108 = vector.broadcast %6 : vector<1x128xf32> to vector<2x128xf32>
    %109 = arith.addf %107, %108 : vector<2x128xf32>
    %110 = vector.extract_strided_slice %109 {offsets = [0, 0], sizes = [2, 32], strides = [1, 1]} : vector<2x128xf32> to vector<2x32xf32>
    %111 = arith.negf %110 : vector<2x32xf32>
    %112 = math.exp %111 : vector<2x32xf32>
    %cst_37 = arith.constant 1.000000e+00 : f32
    %113 = vector.broadcast %cst_37 : f32 to vector<2x32xf32>
    %114 = arith.addf %113, %112 : vector<2x32xf32>
    %115 = arith.divf %113, %114 : vector<2x32xf32>
    %116 = vector.extract_strided_slice %109 {offsets = [0, 32], sizes = [2, 32], strides = [1, 1]} : vector<2x128xf32> to vector<2x32xf32>
    %117 = arith.negf %116 : vector<2x32xf32>
    %118 = math.exp %117 : vector<2x32xf32>
    %cst_38 = arith.constant 1.000000e+00 : f32
    %119 = vector.broadcast %cst_38 : f32 to vector<2x32xf32>
    %120 = arith.addf %119, %118 : vector<2x32xf32>
    %121 = arith.divf %119, %120 : vector<2x32xf32>
    %122 = vector.extract_strided_slice %109 {offsets = [0, 64], sizes = [2, 32], strides = [1, 1]} : vector<2x128xf32> to vector<2x32xf32>
    %123 = math.tanh %122 : vector<2x32xf32>
    %124 = vector.extract_strided_slice %109 {offsets = [0, 96], sizes = [2, 32], strides = [1, 1]} : vector<2x128xf32> to vector<2x32xf32>
    %125 = arith.negf %124 : vector<2x32xf32>
    %126 = math.exp %125 : vector<2x32xf32>
    %cst_39 = arith.constant 1.000000e+00 : f32
    %127 = vector.broadcast %cst_39 : f32 to vector<2x32xf32>
    %128 = arith.addf %127, %126 : vector<2x32xf32>
    %129 = arith.divf %127, %128 : vector<2x32xf32>
    %130 = arith.mulf %121, %68 : vector<2x32xf32>
    %131 = arith.mulf %115, %123 : vector<2x32xf32>
    %132 = arith.addf %130, %131 : vector<2x32xf32>
    %133 = math.tanh %132 : vector<2x32xf32>
    %134 = arith.mulf %129, %133 : vector<2x32xf32>
    %135 = arith.index_cast %c1_i32 : i32 to index
    %c0_40 = arith.constant 0 : index
    %c0_41 = arith.constant 0 : index
    %136 = vector.load %arg6[%135, %c0_40, %c0_41] : memref<8x2x32xf32, #tpu.memory_space<vmem>>, vector<1x2x32xf32>
    %137 = vector.shape_cast %136 : vector<1x2x32xf32> to vector<2x32xf32>
    %138 = vector.shape_cast %134 : vector<2x32xf32> to vector<1x2x32xf32>
    tpu.vector_store %arg6[%135, %c0_40, %c0_41], %138 {strides = array<i32>} : memref<8x2x32xf32, #tpu.memory_space<vmem>>, vector<1x2x32xf32>,
    %c2_i32 = arith.constant 2 : i32
    %139 = arith.index_cast %c2_i32 : i32 to index
    %c0_42 = arith.constant 0 : index
    %c0_43 = arith.constant 0 : index
    %140 = vector.load %arg1[%139, %c0_42, %c0_43] : memref<8x2x128xf32, #tpu.memory_space<vmem>>, vector<1x2x128xf32>
    %141 = vector.shape_cast %140 : vector<1x2x128xf32> to vector<2x128xf32>
    %cst_44 = arith.constant dense<0.000000e+00> : vector<2x128xf32>
    %142 = tpu.matmul %104, %3, %cst_44 {dimension_numbers = #tpu.dot_dimension_numbers<[1], [0], [0], [1], [0, 0, 1, 1], [], []>} : vector<2x32xf32>, vector<32x128xf32>, vector<2x128xf32> -> vector<2x128xf32>
    %143 = arith.addf %141, %142 : vector<2x128xf32>
    %144 = vector.extract_strided_slice %143 {offsets = [0, 0], sizes = [2, 32], strides = [1, 1]} : vector<2x128xf32> to vector<2x32xf32>
    %145 = arith.negf %144 : vector<2x32xf32>
    %146 = math.exp %145 : vector<2x32xf32>
    %cst_45 = arith.constant 1.000000e+00 : f32
    %147 = vector.broadcast %cst_45 : f32 to vector<2x32xf32>
    %148 = arith.addf %147, %146 : vector<2x32xf32>
    %149 = arith.divf %147, %148 : vector<2x32xf32>
    %150 = vector.extract_strided_slice %143 {offsets = [0, 32], sizes = [2, 32], strides = [1, 1]} : vector<2x128xf32> to vector<2x32xf32>
    %151 = arith.negf %150 : vector<2x32xf32>
    %152 = math.exp %151 : vector<2x32xf32>
    %cst_46 = arith.constant 1.000000e+00 : f32
    %153 = vector.broadcast %cst_46 : f32 to vector<2x32xf32>
    %154 = arith.addf %153, %152 : vector<2x32xf32>
    %155 = arith.divf %153, %154 : vector<2x32xf32>
    %156 = vector.extract_strided_slice %143 {offsets = [0, 64], sizes = [2, 32], strides = [1, 1]} : vector<2x128xf32> to vector<2x32xf32>
    %157 = math.tanh %156 : vector<2x32xf32>
    %158 = vector.extract_strided_slice %143 {offsets = [0, 96], sizes = [2, 32], strides = [1, 1]} : vector<2x128xf32> to vector<2x32xf32>
    %159 = arith.negf %158 : vector<2x32xf32>
    %160 = math.exp %159 : vector<2x32xf32>
    %cst_47 = arith.constant 1.000000e+00 : f32
    %161 = vector.broadcast %cst_47 : f32 to vector<2x32xf32>
    %162 = arith.addf %161, %160 : vector<2x32xf32>
    %163 = arith.divf %161, %162 : vector<2x32xf32>
    %164 = arith.mulf %155, %102 : vector<2x32xf32>
    %165 = arith.mulf %149, %157 : vector<2x32xf32>
    %166 = arith.addf %164, %165 : vector<2x32xf32>
    %167 = math.tanh %166 : vector<2x32xf32>
    %168 = arith.mulf %163, %167 : vector<2x32xf32>
    %cst_48 = arith.constant dense<0.000000e+00> : vector<2x128xf32>
    %169 = tpu.matmul %168, %4, %cst_48 {dimension_numbers = #tpu.dot_dimension_numbers<[1], [0], [0], [1], [0, 0, 1, 1], [], []>} : vector<2x32xf32>, vector<32x128xf32>, vector<2x128xf32> -> vector<2x128xf32>
    %cst_49 = arith.constant dense<0.000000e+00> : vector<2x128xf32>
    %170 = tpu.matmul %134, %5, %cst_49 {dimension_numbers = #tpu.dot_dimension_numbers<[1], [0], [0], [1], [0, 0, 1, 1], [], []>} : vector<2x32xf32>, vector<32x128xf32>, vector<2x128xf32> -> vector<2x128xf32>
    %171 = arith.addf %169, %170 : vector<2x128xf32>
    %172 = vector.broadcast %6 : vector<1x128xf32> to vector<2x128xf32>
    %173 = arith.addf %171, %172 : vector<2x128xf32>
    %174 = vector.extract_strided_slice %173 {offsets = [0, 0], sizes = [2, 32], strides = [1, 1]} : vector<2x128xf32> to vector<2x32xf32>
    %175 = arith.negf %174 : vector<2x32xf32>
    %176 = math.exp %175 : vector<2x32xf32>
    %cst_50 = arith.constant 1.000000e+00 : f32
    %177 = vector.broadcast %cst_50 : f32 to vector<2x32xf32>
    %178 = arith.addf %177, %176 : vector<2x32xf32>
    %179 = arith.divf %177, %178 : vector<2x32xf32>
    %180 = vector.extract_strided_slice %173 {offsets = [0, 32], sizes = [2, 32], strides = [1, 1]} : vector<2x128xf32> to vector<2x32xf32>
    %181 = arith.negf %180 : vector<2x32xf32>
    %182 = math.exp %181 : vector<2x32xf32>
    %cst_51 = arith.constant 1.000000e+00 : f32
    %183 = vector.broadcast %cst_51 : f32 to vector<2x32xf32>
    %184 = arith.addf %183, %182 : vector<2x32xf32>
    %185 = arith.divf %183, %184 : vector<2x32xf32>
    %186 = vector.extract_strided_slice %173 {offsets = [0, 64], sizes = [2, 32], strides = [1, 1]} : vector<2x128xf32> to vector<2x32xf32>
    %187 = math.tanh %186 : vector<2x32xf32>
    %188 = vector.extract_strided_slice %173 {offsets = [0, 96], sizes = [2, 32], strides = [1, 1]} : vector<2x128xf32> to vector<2x32xf32>
    %189 = arith.negf %188 : vector<2x32xf32>
    %190 = math.exp %189 : vector<2x32xf32>
    %cst_52 = arith.constant 1.000000e+00 : f32
    %191 = vector.broadcast %cst_52 : f32 to vector<2x32xf32>
    %192 = arith.addf %191, %190 : vector<2x32xf32>
    %193 = arith.divf %191, %192 : vector<2x32xf32>
    %194 = arith.mulf %185, %132 : vector<2x32xf32>
    %195 = arith.mulf %179, %187 : vector<2x32xf32>
    %196 = arith.addf %194, %195 : vector<2x32xf32>
    %197 = math.tanh %196 : vector<2x32xf32>
    %198 = arith.mulf %193, %197 : vector<2x32xf32>
    %199 = arith.index_cast %c2_i32 : i32 to index
    %c0_53 = arith.constant 0 : index
    %c0_54 = arith.constant 0 : index
    %200 = vector.load %arg6[%199, %c0_53, %c0_54] : memref<8x2x32xf32, #tpu.memory_space<vmem>>, vector<1x2x32xf32>
    %201 = vector.shape_cast %200 : vector<1x2x32xf32> to vector<2x32xf32>
    %202 = vector.shape_cast %198 : vector<2x32xf32> to vector<1x2x32xf32>
    tpu.vector_store %arg6[%199, %c0_53, %c0_54], %202 {strides = array<i32>} : memref<8x2x32xf32, #tpu.memory_space<vmem>>, vector<1x2x32xf32>,
    %c3_i32 = arith.constant 3 : i32
    %203 = arith.index_cast %c3_i32 : i32 to index
    %c0_55 = arith.constant 0 : index
    %c0_56 = arith.constant 0 : index
    %204 = vector.load %arg1[%203, %c0_55, %c0_56] : memref<8x2x128xf32, #tpu.memory_space<vmem>>, vector<1x2x128xf32>
    %205 = vector.shape_cast %204 : vector<1x2x128xf32> to vector<2x128xf32>
    %cst_57 = arith.constant dense<0.000000e+00> : vector<2x128xf32>
    %206 = tpu.matmul %168, %3, %cst_57 {dimension_numbers = #tpu.dot_dimension_numbers<[1], [0], [0], [1], [0, 0, 1, 1], [], []>} : vector<2x32xf32>, vector<32x128xf32>, vector<2x128xf32> -> vector<2x128xf32>
    %207 = arith.addf %205, %206 : vector<2x128xf32>
    %208 = vector.extract_strided_slice %207 {offsets = [0, 0], sizes = [2, 32], strides = [1, 1]} : vector<2x128xf32> to vector<2x32xf32>
    %209 = arith.negf %208 : vector<2x32xf32>
    %210 = math.exp %209 : vector<2x32xf32>
    %cst_58 = arith.constant 1.000000e+00 : f32
    %211 = vector.broadcast %cst_58 : f32 to vector<2x32xf32>
    %212 = arith.addf %211, %210 : vector<2x32xf32>
    %213 = arith.divf %211, %212 : vector<2x32xf32>
    %214 = vector.extract_strided_slice %207 {offsets = [0, 32], sizes = [2, 32], strides = [1, 1]} : vector<2x128xf32> to vector<2x32xf32>
    %215 = arith.negf %214 : vector<2x32xf32>
    %216 = math.exp %215 : vector<2x32xf32>
    %cst_59 = arith.constant 1.000000e+00 : f32
    %217 = vector.broadcast %cst_59 : f32 to vector<2x32xf32>
    %218 = arith.addf %217, %216 : vector<2x32xf32>
    %219 = arith.divf %217, %218 : vector<2x32xf32>
    %220 = vector.extract_strided_slice %207 {offsets = [0, 64], sizes = [2, 32], strides = [1, 1]} : vector<2x128xf32> to vector<2x32xf32>
    %221 = math.tanh %220 : vector<2x32xf32>
    %222 = vector.extract_strided_slice %207 {offsets = [0, 96], sizes = [2, 32], strides = [1, 1]} : vector<2x128xf32> to vector<2x32xf32>
    %223 = arith.negf %222 : vector<2x32xf32>
    %224 = math.exp %223 : vector<2x32xf32>
    %cst_60 = arith.constant 1.000000e+00 : f32
    %225 = vector.broadcast %cst_60 : f32 to vector<2x32xf32>
    %226 = arith.addf %225, %224 : vector<2x32xf32>
    %227 = arith.divf %225, %226 : vector<2x32xf32>
    %228 = arith.mulf %219, %166 : vector<2x32xf32>
    %229 = arith.mulf %213, %221 : vector<2x32xf32>
    %230 = arith.addf %228, %229 : vector<2x32xf32>
    %231 = math.tanh %230 : vector<2x32xf32>
    %232 = arith.mulf %227, %231 : vector<2x32xf32>
    %cst_61 = arith.constant dense<0.000000e+00> : vector<2x128xf32>
    %233 = tpu.matmul %232, %4, %cst_61 {dimension_numbers = #tpu.dot_dimension_numbers<[1], [0], [0], [1], [0, 0, 1, 1], [], []>} : vector<2x32xf32>, vector<32x128xf32>, vector<2x128xf32> -> vector<2x128xf32>
    %cst_62 = arith.constant dense<0.000000e+00> : vector<2x128xf32>
    %234 = tpu.matmul %198, %5, %cst_62 {dimension_numbers = #tpu.dot_dimension_numbers<[1], [0], [0], [1], [0, 0, 1, 1], [], []>} : vector<2x32xf32>, vector<32x128xf32>, vector<2x128xf32> -> vector<2x128xf32>
    %235 = arith.addf %233, %234 : vector<2x128xf32>
    %236 = vector.broadcast %6 : vector<1x128xf32> to vector<2x128xf32>
    %237 = arith.addf %235, %236 : vector<2x128xf32>
    %238 = vector.extract_strided_slice %237 {offsets = [0, 0], sizes = [2, 32], strides = [1, 1]} : vector<2x128xf32> to vector<2x32xf32>
    %239 = arith.negf %238 : vector<2x32xf32>
    %240 = math.exp %239 : vector<2x32xf32>
    %cst_63 = arith.constant 1.000000e+00 : f32
    %241 = vector.broadcast %cst_63 : f32 to vector<2x32xf32>
    %242 = arith.addf %241, %240 : vector<2x32xf32>
    %243 = arith.divf %241, %242 : vector<2x32xf32>
    %244 = vector.extract_strided_slice %237 {offsets = [0, 32], sizes = [2, 32], strides = [1, 1]} : vector<2x128xf32> to vector<2x32xf32>
    %245 = arith.negf %244 : vector<2x32xf32>
    %246 = math.exp %245 : vector<2x32xf32>
    %cst_64 = arith.constant 1.000000e+00 : f32
    %247 = vector.broadcast %cst_64 : f32 to vector<2x32xf32>
    %248 = arith.addf %247, %246 : vector<2x32xf32>
    %249 = arith.divf %247, %248 : vector<2x32xf32>
    %250 = vector.extract_strided_slice %237 {offsets = [0, 64], sizes = [2, 32], strides = [1, 1]} : vector<2x128xf32> to vector<2x32xf32>
    %251 = math.tanh %250 : vector<2x32xf32>
    %252 = vector.extract_strided_slice %237 {offsets = [0, 96], sizes = [2, 32], strides = [1, 1]} : vector<2x128xf32> to vector<2x32xf32>
    %253 = arith.negf %252 : vector<2x32xf32>
    %254 = math.exp %253 : vector<2x32xf32>
    %cst_65 = arith.constant 1.000000e+00 : f32
    %255 = vector.broadcast %cst_65 : f32 to vector<2x32xf32>
    %256 = arith.addf %255, %254 : vector<2x32xf32>
    %257 = arith.divf %255, %256 : vector<2x32xf32>
    %258 = arith.mulf %249, %196 : vector<2x32xf32>
    %259 = arith.mulf %243, %251 : vector<2x32xf32>
    %260 = arith.addf %258, %259 : vector<2x32xf32>
    %261 = math.tanh %260 : vector<2x32xf32>
    %262 = arith.mulf %257, %261 : vector<2x32xf32>
    %263 = arith.index_cast %c3_i32 : i32 to index
    %c0_66 = arith.constant 0 : index
    %c0_67 = arith.constant 0 : index
    %264 = vector.load %arg6[%263, %c0_66, %c0_67] : memref<8x2x32xf32, #tpu.memory_space<vmem>>, vector<1x2x32xf32>
    %265 = vector.shape_cast %264 : vector<1x2x32xf32> to vector<2x32xf32>
    %266 = vector.shape_cast %262 : vector<2x32xf32> to vector<1x2x32xf32>
    tpu.vector_store %arg6[%263, %c0_66, %c0_67], %266 {strides = array<i32>} : memref<8x2x32xf32, #tpu.memory_space<vmem>>, vector<1x2x32xf32>,
    %c4_i32 = arith.constant 4 : i32
    %267 = arith.index_cast %c4_i32 : i32 to index
    %c0_68 = arith.constant 0 : index
    %c0_69 = arith.constant 0 : index
    %268 = vector.load %arg1[%267, %c0_68, %c0_69] : memref<8x2x128xf32, #tpu.memory_space<vmem>>, vector<1x2x128xf32>
    %269 = vector.shape_cast %268 : vector<1x2x128xf32> to vector<2x128xf32>
    %cst_70 = arith.constant dense<0.000000e+00> : vector<2x128xf32>
    %270 = tpu.matmul %232, %3, %cst_70 {dimension_numbers = #tpu.dot_dimension_numbers<[1], [0], [0], [1], [0, 0, 1, 1], [], []>} : vector<2x32xf32>, vector<32x128xf32>, vector<2x128xf32> -> vector<2x128xf32>
    %271 = arith.addf %269, %270 : vector<2x128xf32>
    %272 = vector.extract_strided_slice %271 {offsets = [0, 0], sizes = [2, 32], strides = [1, 1]} : vector<2x128xf32> to vector<2x32xf32>
    %273 = arith.negf %272 : vector<2x32xf32>
    %274 = math.exp %273 : vector<2x32xf32>
    %cst_71 = arith.constant 1.000000e+00 : f32
    %275 = vector.broadcast %cst_71 : f32 to vector<2x32xf32>
    %276 = arith.addf %275, %274 : vector<2x32xf32>
    %277 = arith.divf %275, %276 : vector<2x32xf32>
    %278 = vector.extract_strided_slice %271 {offsets = [0, 32], sizes = [2, 32], strides = [1, 1]} : vector<2x128xf32> to vector<2x32xf32>
    %279 = arith.negf %278 : vector<2x32xf32>
    %280 = math.exp %279 : vector<2x32xf32>
    %cst_72 = arith.constant 1.000000e+00 : f32
    %281 = vector.broadcast %cst_72 : f32 to vector<2x32xf32>
    %282 = arith.addf %281, %280 : vector<2x32xf32>
    %283 = arith.divf %281, %282 : vector<2x32xf32>
    %284 = vector.extract_strided_slice %271 {offsets = [0, 64], sizes = [2, 32], strides = [1, 1]} : vector<2x128xf32> to vector<2x32xf32>
    %285 = math.tanh %284 : vector<2x32xf32>
    %286 = vector.extract_strided_slice %271 {offsets = [0, 96], sizes = [2, 32], strides = [1, 1]} : vector<2x128xf32> to vector<2x32xf32>
    %287 = arith.negf %286 : vector<2x32xf32>
    %288 = math.exp %287 : vector<2x32xf32>
    %cst_73 = arith.constant 1.000000e+00 : f32
    %289 = vector.broadcast %cst_73 : f32 to vector<2x32xf32>
    %290 = arith.addf %289, %288 : vector<2x32xf32>
    %291 = arith.divf %289, %290 : vector<2x32xf32>
    %292 = arith.mulf %283, %230 : vector<2x32xf32>
    %293 = arith.mulf %277, %285 : vector<2x32xf32>
    %294 = arith.addf %292, %293 : vector<2x32xf32>
    %295 = math.tanh %294 : vector<2x32xf32>
    %296 = arith.mulf %291, %295 : vector<2x32xf32>
    %cst_74 = arith.constant dense<0.000000e+00> : vector<2x128xf32>
    %297 = tpu.matmul %296, %4, %cst_74 {dimension_numbers = #tpu.dot_dimension_numbers<[1], [0], [0], [1], [0, 0, 1, 1], [], []>} : vector<2x32xf32>, vector<32x128xf32>, vector<2x128xf32> -> vector<2x128xf32>
    %cst_75 = arith.constant dense<0.000000e+00> : vector<2x128xf32>
    %298 = tpu.matmul %262, %5, %cst_75 {dimension_numbers = #tpu.dot_dimension_numbers<[1], [0], [0], [1], [0, 0, 1, 1], [], []>} : vector<2x32xf32>, vector<32x128xf32>, vector<2x128xf32> -> vector<2x128xf32>
    %299 = arith.addf %297, %298 : vector<2x128xf32>
    %300 = vector.broadcast %6 : vector<1x128xf32> to vector<2x128xf32>
    %301 = arith.addf %299, %300 : vector<2x128xf32>
    %302 = vector.extract_strided_slice %301 {offsets = [0, 0], sizes = [2, 32], strides = [1, 1]} : vector<2x128xf32> to vector<2x32xf32>
    %303 = arith.negf %302 : vector<2x32xf32>
    %304 = math.exp %303 : vector<2x32xf32>
    %cst_76 = arith.constant 1.000000e+00 : f32
    %305 = vector.broadcast %cst_76 : f32 to vector<2x32xf32>
    %306 = arith.addf %305, %304 : vector<2x32xf32>
    %307 = arith.divf %305, %306 : vector<2x32xf32>
    %308 = vector.extract_strided_slice %301 {offsets = [0, 32], sizes = [2, 32], strides = [1, 1]} : vector<2x128xf32> to vector<2x32xf32>
    %309 = arith.negf %308 : vector<2x32xf32>
    %310 = math.exp %309 : vector<2x32xf32>
    %cst_77 = arith.constant 1.000000e+00 : f32
    %311 = vector.broadcast %cst_77 : f32 to vector<2x32xf32>
    %312 = arith.addf %311, %310 : vector<2x32xf32>
    %313 = arith.divf %311, %312 : vector<2x32xf32>
    %314 = vector.extract_strided_slice %301 {offsets = [0, 64], sizes = [2, 32], strides = [1, 1]} : vector<2x128xf32> to vector<2x32xf32>
    %315 = math.tanh %314 : vector<2x32xf32>
    %316 = vector.extract_strided_slice %301 {offsets = [0, 96], sizes = [2, 32], strides = [1, 1]} : vector<2x128xf32> to vector<2x32xf32>
    %317 = arith.negf %316 : vector<2x32xf32>
    %318 = math.exp %317 : vector<2x32xf32>
    %cst_78 = arith.constant 1.000000e+00 : f32
    %319 = vector.broadcast %cst_78 : f32 to vector<2x32xf32>
    %320 = arith.addf %319, %318 : vector<2x32xf32>
    %321 = arith.divf %319, %320 : vector<2x32xf32>
    %322 = arith.mulf %313, %260 : vector<2x32xf32>
    %323 = arith.mulf %307, %315 : vector<2x32xf32>
    %324 = arith.addf %322, %323 : vector<2x32xf32>
    %325 = math.tanh %324 : vector<2x32xf32>
    %326 = arith.mulf %321, %325 : vector<2x32xf32>
    %327 = arith.index_cast %c4_i32 : i32 to index
    %c0_79 = arith.constant 0 : index
    %c0_80 = arith.constant 0 : index
    %328 = vector.load %arg6[%327, %c0_79, %c0_80] : memref<8x2x32xf32, #tpu.memory_space<vmem>>, vector<1x2x32xf32>
    %329 = vector.shape_cast %328 : vector<1x2x32xf32> to vector<2x32xf32>
    %330 = vector.shape_cast %326 : vector<2x32xf32> to vector<1x2x32xf32>
    tpu.vector_store %arg6[%327, %c0_79, %c0_80], %330 {strides = array<i32>} : memref<8x2x32xf32, #tpu.memory_space<vmem>>, vector<1x2x32xf32>,
    %c5_i32 = arith.constant 5 : i32
    %331 = arith.index_cast %c5_i32 : i32 to index
    %c0_81 = arith.constant 0 : index
    %c0_82 = arith.constant 0 : index
    %332 = vector.load %arg1[%331, %c0_81, %c0_82] : memref<8x2x128xf32, #tpu.memory_space<vmem>>, vector<1x2x128xf32>
    %333 = vector.shape_cast %332 : vector<1x2x128xf32> to vector<2x128xf32>
    %cst_83 = arith.constant dense<0.000000e+00> : vector<2x128xf32>
    %334 = tpu.matmul %296, %3, %cst_83 {dimension_numbers = #tpu.dot_dimension_numbers<[1], [0], [0], [1], [0, 0, 1, 1], [], []>} : vector<2x32xf32>, vector<32x128xf32>, vector<2x128xf32> -> vector<2x128xf32>
    %335 = arith.addf %333, %334 : vector<2x128xf32>
    %336 = vector.extract_strided_slice %335 {offsets = [0, 0], sizes = [2, 32], strides = [1, 1]} : vector<2x128xf32> to vector<2x32xf32>
    %337 = arith.negf %336 : vector<2x32xf32>
    %338 = math.exp %337 : vector<2x32xf32>
    %cst_84 = arith.constant 1.000000e+00 : f32
    %339 = vector.broadcast %cst_84 : f32 to vector<2x32xf32>
    %340 = arith.addf %339, %338 : vector<2x32xf32>
    %341 = arith.divf %339, %340 : vector<2x32xf32>
    %342 = vector.extract_strided_slice %335 {offsets = [0, 32], sizes = [2, 32], strides = [1, 1]} : vector<2x128xf32> to vector<2x32xf32>
    %343 = arith.negf %342 : vector<2x32xf32>
    %344 = math.exp %343 : vector<2x32xf32>
    %cst_85 = arith.constant 1.000000e+00 : f32
    %345 = vector.broadcast %cst_85 : f32 to vector<2x32xf32>
    %346 = arith.addf %345, %344 : vector<2x32xf32>
    %347 = arith.divf %345, %346 : vector<2x32xf32>
    %348 = vector.extract_strided_slice %335 {offsets = [0, 64], sizes = [2, 32], strides = [1, 1]} : vector<2x128xf32> to vector<2x32xf32>
    %349 = math.tanh %348 : vector<2x32xf32>
    %350 = vector.extract_strided_slice %335 {offsets = [0, 96], sizes = [2, 32], strides = [1, 1]} : vector<2x128xf32> to vector<2x32xf32>
    %351 = arith.negf %350 : vector<2x32xf32>
    %352 = math.exp %351 : vector<2x32xf32>
    %cst_86 = arith.constant 1.000000e+00 : f32
    %353 = vector.broadcast %cst_86 : f32 to vector<2x32xf32>
    %354 = arith.addf %353, %352 : vector<2x32xf32>
    %355 = arith.divf %353, %354 : vector<2x32xf32>
    %356 = arith.mulf %347, %294 : vector<2x32xf32>
    %357 = arith.mulf %341, %349 : vector<2x32xf32>
    %358 = arith.addf %356, %357 : vector<2x32xf32>
    %359 = math.tanh %358 : vector<2x32xf32>
    %360 = arith.mulf %355, %359 : vector<2x32xf32>
    %cst_87 = arith.constant dense<0.000000e+00> : vector<2x128xf32>
    %361 = tpu.matmul %360, %4, %cst_87 {dimension_numbers = #tpu.dot_dimension_numbers<[1], [0], [0], [1], [0, 0, 1, 1], [], []>} : vector<2x32xf32>, vector<32x128xf32>, vector<2x128xf32> -> vector<2x128xf32>
    %cst_88 = arith.constant dense<0.000000e+00> : vector<2x128xf32>
    %362 = tpu.matmul %326, %5, %cst_88 {dimension_numbers = #tpu.dot_dimension_numbers<[1], [0], [0], [1], [0, 0, 1, 1], [], []>} : vector<2x32xf32>, vector<32x128xf32>, vector<2x128xf32> -> vector<2x128xf32>
    %363 = arith.addf %361, %362 : vector<2x128xf32>
    %364 = vector.broadcast %6 : vector<1x128xf32> to vector<2x128xf32>
    %365 = arith.addf %363, %364 : vector<2x128xf32>
    %366 = vector.extract_strided_slice %365 {offsets = [0, 0], sizes = [2, 32], strides = [1, 1]} : vector<2x128xf32> to vector<2x32xf32>
    %367 = arith.negf %366 : vector<2x32xf32>
    %368 = math.exp %367 : vector<2x32xf32>
    %cst_89 = arith.constant 1.000000e+00 : f32
    %369 = vector.broadcast %cst_89 : f32 to vector<2x32xf32>
    %370 = arith.addf %369, %368 : vector<2x32xf32>
    %371 = arith.divf %369, %370 : vector<2x32xf32>
    %372 = vector.extract_strided_slice %365 {offsets = [0, 32], sizes = [2, 32], strides = [1, 1]} : vector<2x128xf32> to vector<2x32xf32>
    %373 = arith.negf %372 : vector<2x32xf32>
    %374 = math.exp %373 : vector<2x32xf32>
    %cst_90 = arith.constant 1.000000e+00 : f32
    %375 = vector.broadcast %cst_90 : f32 to vector<2x32xf32>
    %376 = arith.addf %375, %374 : vector<2x32xf32>
    %377 = arith.divf %375, %376 : vector<2x32xf32>
    %378 = vector.extract_strided_slice %365 {offsets = [0, 64], sizes = [2, 32], strides = [1, 1]} : vector<2x128xf32> to vector<2x32xf32>
    %379 = math.tanh %378 : vector<2x32xf32>
    %380 = vector.extract_strided_slice %365 {offsets = [0, 96], sizes = [2, 32], strides = [1, 1]} : vector<2x128xf32> to vector<2x32xf32>
    %381 = arith.negf %380 : vector<2x32xf32>
    %382 = math.exp %381 : vector<2x32xf32>
    %cst_91 = arith.constant 1.000000e+00 : f32
    %383 = vector.broadcast %cst_91 : f32 to vector<2x32xf32>
    %384 = arith.addf %383, %382 : vector<2x32xf32>
    %385 = arith.divf %383, %384 : vector<2x32xf32>
    %386 = arith.mulf %377, %324 : vector<2x32xf32>
    %387 = arith.mulf %371, %379 : vector<2x32xf32>
    %388 = arith.addf %386, %387 : vector<2x32xf32>
    %389 = math.tanh %388 : vector<2x32xf32>
    %390 = arith.mulf %385, %389 : vector<2x32xf32>
    %391 = arith.index_cast %c5_i32 : i32 to index
    %c0_92 = arith.constant 0 : index
    %c0_93 = arith.constant 0 : index
    %392 = vector.load %arg6[%391, %c0_92, %c0_93] : memref<8x2x32xf32, #tpu.memory_space<vmem>>, vector<1x2x32xf32>
    %393 = vector.shape_cast %392 : vector<1x2x32xf32> to vector<2x32xf32>
    %394 = vector.shape_cast %390 : vector<2x32xf32> to vector<1x2x32xf32>
    tpu.vector_store %arg6[%391, %c0_92, %c0_93], %394 {strides = array<i32>} : memref<8x2x32xf32, #tpu.memory_space<vmem>>, vector<1x2x32xf32>,
    %c6_i32 = arith.constant 6 : i32
    %395 = arith.index_cast %c6_i32 : i32 to index
    %c0_94 = arith.constant 0 : index
    %c0_95 = arith.constant 0 : index
    %396 = vector.load %arg1[%395, %c0_94, %c0_95] : memref<8x2x128xf32, #tpu.memory_space<vmem>>, vector<1x2x128xf32>
    %397 = vector.shape_cast %396 : vector<1x2x128xf32> to vector<2x128xf32>
    %cst_96 = arith.constant dense<0.000000e+00> : vector<2x128xf32>
    %398 = tpu.matmul %360, %3, %cst_96 {dimension_numbers = #tpu.dot_dimension_numbers<[1], [0], [0], [1], [0, 0, 1, 1], [], []>} : vector<2x32xf32>, vector<32x128xf32>, vector<2x128xf32> -> vector<2x128xf32>
    %399 = arith.addf %397, %398 : vector<2x128xf32>
    %400 = vector.extract_strided_slice %399 {offsets = [0, 0], sizes = [2, 32], strides = [1, 1]} : vector<2x128xf32> to vector<2x32xf32>
    %401 = arith.negf %400 : vector<2x32xf32>
    %402 = math.exp %401 : vector<2x32xf32>
    %cst_97 = arith.constant 1.000000e+00 : f32
    %403 = vector.broadcast %cst_97 : f32 to vector<2x32xf32>
    %404 = arith.addf %403, %402 : vector<2x32xf32>
    %405 = arith.divf %403, %404 : vector<2x32xf32>
    %406 = vector.extract_strided_slice %399 {offsets = [0, 32], sizes = [2, 32], strides = [1, 1]} : vector<2x128xf32> to vector<2x32xf32>
    %407 = arith.negf %406 : vector<2x32xf32>
    %408 = math.exp %407 : vector<2x32xf32>
    %cst_98 = arith.constant 1.000000e+00 : f32
    %409 = vector.broadcast %cst_98 : f32 to vector<2x32xf32>
    %410 = arith.addf %409, %408 : vector<2x32xf32>
    %411 = arith.divf %409, %410 : vector<2x32xf32>
    %412 = vector.extract_strided_slice %399 {offsets = [0, 64], sizes = [2, 32], strides = [1, 1]} : vector<2x128xf32> to vector<2x32xf32>
    %413 = math.tanh %412 : vector<2x32xf32>
    %414 = vector.extract_strided_slice %399 {offsets = [0, 96], sizes = [2, 32], strides = [1, 1]} : vector<2x128xf32> to vector<2x32xf32>
    %415 = arith.negf %414 : vector<2x32xf32>
    %416 = math.exp %415 : vector<2x32xf32>
    %cst_99 = arith.constant 1.000000e+00 : f32
    %417 = vector.broadcast %cst_99 : f32 to vector<2x32xf32>
    %418 = arith.addf %417, %416 : vector<2x32xf32>
    %419 = arith.divf %417, %418 : vector<2x32xf32>
    %420 = arith.mulf %411, %358 : vector<2x32xf32>
    %421 = arith.mulf %405, %413 : vector<2x32xf32>
    %422 = arith.addf %420, %421 : vector<2x32xf32>
    %423 = math.tanh %422 : vector<2x32xf32>
    %424 = arith.mulf %419, %423 : vector<2x32xf32>
    %cst_100 = arith.constant dense<0.000000e+00> : vector<2x128xf32>
    %425 = tpu.matmul %424, %4, %cst_100 {dimension_numbers = #tpu.dot_dimension_numbers<[1], [0], [0], [1], [0, 0, 1, 1], [], []>} : vector<2x32xf32>, vector<32x128xf32>, vector<2x128xf32> -> vector<2x128xf32>
    %cst_101 = arith.constant dense<0.000000e+00> : vector<2x128xf32>
    %426 = tpu.matmul %390, %5, %cst_101 {dimension_numbers = #tpu.dot_dimension_numbers<[1], [0], [0], [1], [0, 0, 1, 1], [], []>} : vector<2x32xf32>, vector<32x128xf32>, vector<2x128xf32> -> vector<2x128xf32>
    %427 = arith.addf %425, %426 : vector<2x128xf32>
    %428 = vector.broadcast %6 : vector<1x128xf32> to vector<2x128xf32>
    %429 = arith.addf %427, %428 : vector<2x128xf32>
    %430 = vector.extract_strided_slice %429 {offsets = [0, 0], sizes = [2, 32], strides = [1, 1]} : vector<2x128xf32> to vector<2x32xf32>
    %431 = arith.negf %430 : vector<2x32xf32>
    %432 = math.exp %431 : vector<2x32xf32>
    %cst_102 = arith.constant 1.000000e+00 : f32
    %433 = vector.broadcast %cst_102 : f32 to vector<2x32xf32>
    %434 = arith.addf %433, %432 : vector<2x32xf32>
    %435 = arith.divf %433, %434 : vector<2x32xf32>
    %436 = vector.extract_strided_slice %429 {offsets = [0, 32], sizes = [2, 32], strides = [1, 1]} : vector<2x128xf32> to vector<2x32xf32>
    %437 = arith.negf %436 : vector<2x32xf32>
    %438 = math.exp %437 : vector<2x32xf32>
    %cst_103 = arith.constant 1.000000e+00 : f32
    %439 = vector.broadcast %cst_103 : f32 to vector<2x32xf32>
    %440 = arith.addf %439, %438 : vector<2x32xf32>
    %441 = arith.divf %439, %440 : vector<2x32xf32>
    %442 = vector.extract_strided_slice %429 {offsets = [0, 64], sizes = [2, 32], strides = [1, 1]} : vector<2x128xf32> to vector<2x32xf32>
    %443 = math.tanh %442 : vector<2x32xf32>
    %444 = vector.extract_strided_slice %429 {offsets = [0, 96], sizes = [2, 32], strides = [1, 1]} : vector<2x128xf32> to vector<2x32xf32>
    %445 = arith.negf %444 : vector<2x32xf32>
    %446 = math.exp %445 : vector<2x32xf32>
    %cst_104 = arith.constant 1.000000e+00 : f32
    %447 = vector.broadcast %cst_104 : f32 to vector<2x32xf32>
    %448 = arith.addf %447, %446 : vector<2x32xf32>
    %449 = arith.divf %447, %448 : vector<2x32xf32>
    %450 = arith.mulf %441, %388 : vector<2x32xf32>
    %451 = arith.mulf %435, %443 : vector<2x32xf32>
    %452 = arith.addf %450, %451 : vector<2x32xf32>
    %453 = math.tanh %452 : vector<2x32xf32>
    %454 = arith.mulf %449, %453 : vector<2x32xf32>
    %455 = arith.index_cast %c6_i32 : i32 to index
    %c0_105 = arith.constant 0 : index
    %c0_106 = arith.constant 0 : index
    %456 = vector.load %arg6[%455, %c0_105, %c0_106] : memref<8x2x32xf32, #tpu.memory_space<vmem>>, vector<1x2x32xf32>
    %457 = vector.shape_cast %456 : vector<1x2x32xf32> to vector<2x32xf32>
    %458 = vector.shape_cast %454 : vector<2x32xf32> to vector<1x2x32xf32>
    tpu.vector_store %arg6[%455, %c0_105, %c0_106], %458 {strides = array<i32>} : memref<8x2x32xf32, #tpu.memory_space<vmem>>, vector<1x2x32xf32>,
    %c7_i32 = arith.constant 7 : i32
    %459 = arith.index_cast %c7_i32 : i32 to index
    %c0_107 = arith.constant 0 : index
    %c0_108 = arith.constant 0 : index
    %460 = vector.load %arg1[%459, %c0_107, %c0_108] : memref<8x2x128xf32, #tpu.memory_space<vmem>>, vector<1x2x128xf32>
    %461 = vector.shape_cast %460 : vector<1x2x128xf32> to vector<2x128xf32>
    %cst_109 = arith.constant dense<0.000000e+00> : vector<2x128xf32>
    %462 = tpu.matmul %424, %3, %cst_109 {dimension_numbers = #tpu.dot_dimension_numbers<[1], [0], [0], [1], [0, 0, 1, 1], [], []>} : vector<2x32xf32>, vector<32x128xf32>, vector<2x128xf32> -> vector<2x128xf32>
    %463 = arith.addf %461, %462 : vector<2x128xf32>
    %464 = vector.extract_strided_slice %463 {offsets = [0, 0], sizes = [2, 32], strides = [1, 1]} : vector<2x128xf32> to vector<2x32xf32>
    %465 = arith.negf %464 : vector<2x32xf32>
    %466 = math.exp %465 : vector<2x32xf32>
    %cst_110 = arith.constant 1.000000e+00 : f32
    %467 = vector.broadcast %cst_110 : f32 to vector<2x32xf32>
    %468 = arith.addf %467, %466 : vector<2x32xf32>
    %469 = arith.divf %467, %468 : vector<2x32xf32>
    %470 = vector.extract_strided_slice %463 {offsets = [0, 32], sizes = [2, 32], strides = [1, 1]} : vector<2x128xf32> to vector<2x32xf32>
    %471 = arith.negf %470 : vector<2x32xf32>
    %472 = math.exp %471 : vector<2x32xf32>
    %cst_111 = arith.constant 1.000000e+00 : f32
    %473 = vector.broadcast %cst_111 : f32 to vector<2x32xf32>
    %474 = arith.addf %473, %472 : vector<2x32xf32>
    %475 = arith.divf %473, %474 : vector<2x32xf32>
    %476 = vector.extract_strided_slice %463 {offsets = [0, 64], sizes = [2, 32], strides = [1, 1]} : vector<2x128xf32> to vector<2x32xf32>
    %477 = math.tanh %476 : vector<2x32xf32>
    %478 = vector.extract_strided_slice %463 {offsets = [0, 96], sizes = [2, 32], strides = [1, 1]} : vector<2x128xf32> to vector<2x32xf32>
    %479 = arith.negf %478 : vector<2x32xf32>
    %480 = math.exp %479 : vector<2x32xf32>
    %cst_112 = arith.constant 1.000000e+00 : f32
    %481 = vector.broadcast %cst_112 : f32 to vector<2x32xf32>
    %482 = arith.addf %481, %480 : vector<2x32xf32>
    %483 = arith.divf %481, %482 : vector<2x32xf32>
    %484 = arith.mulf %475, %422 : vector<2x32xf32>
    %485 = arith.mulf %469, %477 : vector<2x32xf32>
    %486 = arith.addf %484, %485 : vector<2x32xf32>
    %487 = math.tanh %486 : vector<2x32xf32>
    %488 = arith.mulf %483, %487 : vector<2x32xf32>
    %cst_113 = arith.constant dense<0.000000e+00> : vector<2x128xf32>
    %489 = tpu.matmul %488, %4, %cst_113 {dimension_numbers = #tpu.dot_dimension_numbers<[1], [0], [0], [1], [0, 0, 1, 1], [], []>} : vector<2x32xf32>, vector<32x128xf32>, vector<2x128xf32> -> vector<2x128xf32>
    %cst_114 = arith.constant dense<0.000000e+00> : vector<2x128xf32>
    %490 = tpu.matmul %454, %5, %cst_114 {dimension_numbers = #tpu.dot_dimension_numbers<[1], [0], [0], [1], [0, 0, 1, 1], [], []>} : vector<2x32xf32>, vector<32x128xf32>, vector<2x128xf32> -> vector<2x128xf32>
    %491 = arith.addf %489, %490 : vector<2x128xf32>
    %492 = vector.broadcast %6 : vector<1x128xf32> to vector<2x128xf32>
    %493 = arith.addf %491, %492 : vector<2x128xf32>
    %494 = vector.extract_strided_slice %493 {offsets = [0, 0], sizes = [2, 32], strides = [1, 1]} : vector<2x128xf32> to vector<2x32xf32>
    %495 = arith.negf %494 : vector<2x32xf32>
    %496 = math.exp %495 : vector<2x32xf32>
    %cst_115 = arith.constant 1.000000e+00 : f32
    %497 = vector.broadcast %cst_115 : f32 to vector<2x32xf32>
    %498 = arith.addf %497, %496 : vector<2x32xf32>
    %499 = arith.divf %497, %498 : vector<2x32xf32>
    %500 = vector.extract_strided_slice %493 {offsets = [0, 32], sizes = [2, 32], strides = [1, 1]} : vector<2x128xf32> to vector<2x32xf32>
    %501 = arith.negf %500 : vector<2x32xf32>
    %502 = math.exp %501 : vector<2x32xf32>
    %cst_116 = arith.constant 1.000000e+00 : f32
    %503 = vector.broadcast %cst_116 : f32 to vector<2x32xf32>
    %504 = arith.addf %503, %502 : vector<2x32xf32>
    %505 = arith.divf %503, %504 : vector<2x32xf32>
    %506 = vector.extract_strided_slice %493 {offsets = [0, 64], sizes = [2, 32], strides = [1, 1]} : vector<2x128xf32> to vector<2x32xf32>
    %507 = math.tanh %506 : vector<2x32xf32>
    %508 = vector.extract_strided_slice %493 {offsets = [0, 96], sizes = [2, 32], strides = [1, 1]} : vector<2x128xf32> to vector<2x32xf32>
    %509 = arith.negf %508 : vector<2x32xf32>
    %510 = math.exp %509 : vector<2x32xf32>
    %cst_117 = arith.constant 1.000000e+00 : f32
    %511 = vector.broadcast %cst_117 : f32 to vector<2x32xf32>
    %512 = arith.addf %511, %510 : vector<2x32xf32>
    %513 = arith.divf %511, %512 : vector<2x32xf32>
    %514 = arith.mulf %505, %452 : vector<2x32xf32>
    %515 = arith.mulf %499, %507 : vector<2x32xf32>
    %516 = arith.addf %514, %515 : vector<2x32xf32>
    %517 = math.tanh %516 : vector<2x32xf32>
    %518 = arith.mulf %513, %517 : vector<2x32xf32>
    %519 = arith.index_cast %c7_i32 : i32 to index
    %c0_118 = arith.constant 0 : index
    %c0_119 = arith.constant 0 : index
    %520 = vector.load %arg6[%519, %c0_118, %c0_119] : memref<8x2x32xf32, #tpu.memory_space<vmem>>, vector<1x2x32xf32>
    %521 = vector.shape_cast %520 : vector<1x2x32xf32> to vector<2x32xf32>
    %522 = vector.shape_cast %518 : vector<2x32xf32> to vector<1x2x32xf32>
    tpu.vector_store %arg6[%519, %c0_118, %c0_119], %522 {strides = array<i32>} : memref<8x2x32xf32, #tpu.memory_space<vmem>>, vector<1x2x32xf32>,
    %c8_i32 = arith.constant 8 : i32
    %c0_120 = arith.constant 0 : index
    %c0_121 = arith.constant 0 : index
    %523 = vector.load %arg7[%c0_120, %c0_121] : memref<2x32xf32, #tpu.memory_space<vmem>>, vector<2x32xf32>
    tpu.vector_store %arg7[%c0_120, %c0_121], %488 {strides = array<i32>} : memref<2x32xf32, #tpu.memory_space<vmem>>, vector<2x32xf32>,
    %c0_122 = arith.constant 0 : index
    %c0_123 = arith.constant 0 : index
    %524 = vector.load %arg8[%c0_122, %c0_123] : memref<2x32xf32, #tpu.memory_space<vmem>>, vector<2x32xf32>
    tpu.vector_store %arg8[%c0_122, %c0_123], %486 {strides = array<i32>} : memref<2x32xf32, #tpu.memory_space<vmem>>, vector<2x32xf32>,
    %c0_124 = arith.constant 0 : index
    %c0_125 = arith.constant 0 : index
    %525 = vector.load %arg9[%c0_124, %c0_125] : memref<2x32xf32, #tpu.memory_space<vmem>>, vector<2x32xf32>
    tpu.vector_store %arg9[%c0_124, %c0_125], %518 {strides = array<i32>} : memref<2x32xf32, #tpu.memory_space<vmem>>, vector<2x32xf32>,
    %c0_126 = arith.constant 0 : index
    %c0_127 = arith.constant 0 : index
    %526 = vector.load %arg10[%c0_126, %c0_127] : memref<2x32xf32, #tpu.memory_space<vmem>>, vector<2x32xf32>
    tpu.vector_store %arg10[%c0_126, %c0_127], %516 {strides = array<i32>} : memref<2x32xf32, #tpu.memory_space<vmem>>, vector<2x32xf32>,
    return
  }
  func.func @transform_0(%arg0: i32) -> (i32, i32, i32) {
    %c0_i32 = arith.constant 0 : i32
    %c0_i32_0 = arith.constant 0 : i32
    %c0_i32_1 = arith.constant 0 : i32
    return %arg0, %c0_i32, %c0_i32_0 : i32, i32, i32
  }
  func.func @transform_1(%arg0: i32) -> (i32, i32) {
    %c0_i32 = arith.constant 0 : i32
    %c0_i32_0 = arith.constant 0 : i32
    %c0_i32_1 = arith.constant 0 : i32
    return %c0_i32, %c0_i32_0 : i32, i32
  }
  func.func @transform_2(%arg0: i32) -> (i32, i32) {
    %c0_i32 = arith.constant 0 : i32
    %c0_i32_0 = arith.constant 0 : i32
    %c0_i32_1 = arith.constant 0 : i32
    return %c0_i32, %c0_i32_0 : i32, i32
  }
  func.func @transform_3(%arg0: i32) -> (i32, i32) {
    %c0_i32 = arith.constant 0 : i32
    %c0_i32_0 = arith.constant 0 : i32
    %c0_i32_1 = arith.constant 0 : i32
    return %c0_i32, %c0_i32_0 : i32, i32
  }
  func.func @transform_4(%arg0: i32) -> (i32, i32) {
    %c0_i32 = arith.constant 0 : i32
    %c0_i32_0 = arith.constant 0 : i32
    %c0_i32_1 = arith.constant 0 : i32
    return %c0_i32, %c0_i32_0 : i32, i32
  }
  func.func @transform_5(%arg0: i32) -> (i32, i32, i32) {
    %c0_i32 = arith.constant 0 : i32
    %c0_i32_0 = arith.constant 0 : i32
    %c0_i32_1 = arith.constant 0 : i32
    return %arg0, %c0_i32, %c0_i32_0 : i32, i32, i32
  }
}

</mosaic_0001>

<llo_original>
// kernel: tpu_custom_call.1
$region0: #{tpu_custom_call.1}
  #allocation0 [shape = 'u32[]', space=smem, size = 0x4, offset = 0x4, fixed_abs, tag = 'smem constant byte address 0x4 - core index']
  #allocation1 [shape = 'u32[144,128]{1,0:T(1,128)}', space=vmem, size = 0x12000, scoped, tag = 'internal scratch']
  #allocation2 [shape = 'f32[2,32]{1,0:T(2,128)}', space=vmem, size = 0x400, scoped, tag = 'scratch operand']
  #allocation3 [shape = 'f32[2,32]{1,0:T(2,128)}', space=vmem, size = 0x400, scoped, tag = 'scratch operand']
  #allocation4 [shape = 'f32[2,32]{1,0:T(2,128)}', space=vmem, size = 0x400, scoped, tag = 'scratch operand']
  #allocation5 [shape = 'f32[2,32]{1,0:T(2,128)}', space=vmem, size = 0x400, scoped, tag = 'scratch operand']
  %s0 = inlined_call_operand.hbm [shape: f32[8,2,128], index: 0, kind: input, shape index: {}]
  %s1 = inlined_call_operand.hbm [shape: f32[32,128], index: 1, kind: input, shape index: {}]
  %s2 = inlined_call_operand.hbm [shape: f32[32,128], index: 2, kind: input, shape index: {}]
  %s3 = inlined_call_operand.hbm [shape: f32[32,128], index: 3, kind: input, shape index: {}]
  %s4 = inlined_call_operand.vmem [shape: f32[1,128], index: 4, kind: input, shape index: {}]
  %s5 = inlined_call_operand.hbm [shape: f32[8,2,32], index: 5, kind: output, shape index: {}]
  %s6 = sld [smem:[#allocation0]]
  $region50: #{tpu_custom_call.1} parent=0
    _
  %s8 = ssub.s32 1, %s6
  %s9 = scalar_select 0, %s8, %s6
  $region1: #{tpu_custom_call.1} parent=0
    #allocation6 [shape = 'u8[8192]{0}', space=vmem, size = 0x2000, scoped, tag = 'input window, operand 0, single buffered']
    #allocation7 [shape = 's32[1]{0}', space=sflag, size = 0x4, scoped, tag = 'scoped memory for tpu_custom_call.1']
    #allocation8 [shape = 's32[1]{0}', space=sflag, size = 0x4, scoped, tag = 'scoped memory for tpu_custom_call.1']
    #allocation9 [shape = 'u8[16384]{0}', space=vmem, size = 0x4000, scoped, tag = 'input window, operand 1, single buffered']
    #allocation10 [shape = 's32[1]{0}', space=sflag, size = 0x4, scoped, tag = 'scoped memory for tpu_custom_call.1']
    #allocation11 [shape = 'u8[16384]{0}', space=vmem, size = 0x4000, scoped, tag = 'input window, operand 2, single buffered']
    #allocation12 [shape = 'u8[16384]{0}', space=vmem, size = 0x4000, scoped, tag = 'input window, operand 3, single buffered']
    #allocation13 [shape = 's32[1]{0}', space=sflag, size = 0x4, scoped, tag = 'scoped memory for tpu_custom_call.1']
    #allocation14 [shape = 'u8[8192]{0}', space=vmem, size = 0x2000, scoped, tag = 'output window, operand 0, single buffered']
    %10 = vsyncpa [#allocation7], 0
    %11 = vsyncpa [#allocation10], 0
    %12 = vsyncpa [#allocation13], 0
    %13 = vsyncpa [#allocation8], 0
    // Predicated region
    $region2: #{tpu_custom_call.1} parent=1 // pred_check
      _
    $region3: #{tpu_custom_call.1} parent=1 // pred_check_branch
      %15 = sbr.rel (0) target = $region5
    $region4: #{tpu_custom_call.1} parent=1 // pred_region
      %s17 = ssub.s32 256, 256
      %18 = vsyncadd [#allocation7], %s17
      %s19 = sshll.u32 [#allocation6], 4
      %s20 = int_to_ptr.vmem [resolvable:$true] %s19
      %25 = dma.hbm_to_vmem [thread:$0]  %s0, 256, %s20, [#allocation7], 32, 32, 2
    $region5: #{tpu_custom_call.1} parent=1 // pred_fallthru
      _
    // Predicated region
    $region6: #{tpu_custom_call.1} parent=1 // pred_check
      _
    $region7: #{tpu_custom_call.1} parent=1 // pred_check_branch
      %27 = sbr.rel (0) target = $region9
    $region8: #{tpu_custom_call.1} parent=1 // pred_region
      %s29 = ssub.s32 512, 512
      %30 = vsyncadd [#allocation10], %s29
      %s31 = sshll.u32 [#allocation9], 4
      %s32 = int_to_ptr.vmem [resolvable:$true] %s31
      %37 = dma.hbm_to_vmem [thread:$0]  %s1, 512, %s32, [#allocation10], 128, 128, 8
    $region9: #{tpu_custom_call.1} parent=1 // pred_fallthru
      _
    // Predicated region
    $region10: #{tpu_custom_call.1} parent=1 // pred_check
      _
    $region11: #{tpu_custom_call.1} parent=1 // pred_check_branch
      %39 = sbr.rel (0) target = $region13
    $region12: #{tpu_custom_call.1} parent=1 // pred_region
      %s41 = ssub.s32 512, 512
      %42 = vsyncadd [#allocation10], %s41
      %s43 = sshll.u32 [#allocation11], 4
      %s44 = int_to_ptr.vmem [resolvable:$true] %s43
      %49 = dma.hbm_to_vmem [thread:$0]  %s2, 512, %s44, [#allocation10], 128, 128, 8
    $region13: #{tpu_custom_call.1} parent=1 // pred_fallthru
      _
    // Predicated region
    $region14: #{tpu_custom_call.1} parent=1 // pred_check
      _
    $region15: #{tpu_custom_call.1} parent=1 // pred_check_branch
      %51 = sbr.rel (0) target = $region17
    $region16: #{tpu_custom_call.1} parent=1 // pred_region
      %s53 = ssub.s32 512, 512
      %54 = vsyncadd [#allocation13], %s53
      %s55 = sshll.u32 [#allocation12], 4
      %s56 = int_to_ptr.vmem [resolvable:$true] %s55
      %61 = dma.hbm_to_vmem [thread:$0]  %s3, 512, %s56, [#allocation13], 128, 128, 8
    $region17: #{tpu_custom_call.1} parent=1 // pred_fallthru
      _
    // Predicated region
    $region18: #{tpu_custom_call.1} parent=1 // pred_check
      _
    $region19: #{tpu_custom_call.1} parent=1 // pred_check_branch
      %63 = sbr.rel (0) target = $region21
    $region20: #{tpu_custom_call.1} parent=1 // pred_region
      _
    $region21: #{tpu_custom_call.1} parent=1 // pred_fallthru
      _
    // Predicated region
    $region22: #{tpu_custom_call.1} parent=1 // pred_check
      _
    $region23: #{tpu_custom_call.1} parent=1 // pred_check_branch
      %65 = sbr.rel (0) target = $region25
    $region24: #{tpu_custom_call.1} parent=1 // pred_region
      %66 = dma.done [#allocation7], 256
    $region25: #{tpu_custom_call.1} parent=1 // pred_fallthru
      _
    // Predicated region
    $region26: #{tpu_custom_call.1} parent=1 // pred_check
      _
    $region27: #{tpu_custom_call.1} parent=1 // pred_check_branch
      %68 = sbr.rel (0) target = $region29
    $region28: #{tpu_custom_call.1} parent=1 // pred_region
      %69 = dma.done [#allocation10], 512
    $region29: #{tpu_custom_call.1} parent=1 // pred_fallthru
      _
    // Predicated region
    $region30: #{tpu_custom_call.1} parent=1 // pred_check
      _
    $region31: #{tpu_custom_call.1} parent=1 // pred_check_branch
      %71 = sbr.rel (0) target = $region33
    $region32: #{tpu_custom_call.1} parent=1 // pred_region
      %72 = dma.done [#allocation10], 512
    $region33: #{tpu_custom_call.1} parent=1 // pred_fallthru
      _
    // Predicated region
    $region34: #{tpu_custom_call.1} parent=1 // pred_check
      _
    $region35: #{tpu_custom_call.1} parent=1 // pred_check_branch
      %74 = sbr.rel (0) target = $region37
    $region36: #{tpu_custom_call.1} parent=1 // pred_region
      %75 = dma.done [#allocation13], 512
    $region37: #{tpu_custom_call.1} parent=1 // pred_fallthru
      _
    %p76 = scmp.eq.s32.totalorder 0, 0
    // Predicated region
    $region38: #{tpu_custom_call.1} parent=1 // pred_check
      %p77 = pneg %p76
    $region39: #{tpu_custom_call.1} parent=1 // pred_check_branch
      %79 = sbr.rel (%p77) target = $region41
    $region40: #{tpu_custom_call.1} parent=1 // pred_region
      %vm80 = vcmask 254976
      %81 = vst.msk [vmem:[#allocation2] sm:$0x3] %vm80, 0.0
      %82 = vst.msk [vmem:[#allocation3] sm:$0x3] %vm80, 0.0
      %83 = vst.msk [vmem:[#allocation4] sm:$0x3] %vm80, 0.0
      %84 = vst.msk [vmem:[#allocation5] sm:$0x3] %vm80, 0.0
    $region41: #{tpu_custom_call.1} parent=1 // pred_fallthru
      _
    %v85 = vld [vmem:[#allocation9] sm:$0xff]
    %v86 = vld [vmem:[#allocation9 + $0x8] sm:$0xff]
    %v87 = vld [vmem:[#allocation9 + $0x10] sm:$0xff]
    %v88 = vld [vmem:[#allocation9 + $0x18] sm:$0xff]
    %v89 = vld [vmem:[#allocation11] sm:$0xff]
    %v90 = vld [vmem:[#allocation11 + $0x8] sm:$0xff]
    %v91 = vld [vmem:[#allocation11 + $0x10] sm:$0xff]
    %v92 = vld [vmem:[#allocation11 + $0x18] sm:$0xff]
    %v93 = vld [vmem:[#allocation12] sm:$0xff]
    %v94 = vld [vmem:[#allocation12 + $0x8] sm:$0xff]
    %v95 = vld [vmem:[#allocation12 + $0x10] sm:$0xff]
    %v96 = vld [vmem:[#allocation12 + $0x18] sm:$0xff]
    %v97 = vld [vmem:[%s4] sm:$0x1]
    %v98 = vld [vmem:[#allocation2] sm:$0x3]
    %v99 = vld [vmem:[#allocation3] sm:$0x3]
    %v100 = vld [vmem:[#allocation4] sm:$0x3]
    %v101 = vld [vmem:[#allocation5] sm:$0x3]
    %v102 = vld [vmem:[#allocation6] sm:$0x3]
    %vm103 = vcmask 261120
    %v105 = vsel %vm103, %v98, 0
    %107 = vmatprep.subr.mxu0 0.0
    %108 = vmatpush1.msra.mxu0 %v85
    %109 = vmatprep.subr.mxu0 0.0
    %110 = vmatpush1.msra.mxu0 %v86
    %111 = vmatprep.subr.mxu0 0.0
    %112 = vmatpush1.msra.mxu0 %v87
    %113 = vmatprep.subr.mxu0 0.0
    %114 = vmatpush1.msra.mxu0 %v88
    %115 = vmatprep.subr.mxu0 0.0
    %116 = vmatpush1.msra.mxu0 0.0
    %117 = vmatprep.subr.mxu0 0.0
    %118 = vmatpush1.msra.mxu0 0.0
    %119 = vmatprep.subr.mxu0 0.0
    %120 = vmatpush1.msra.mxu0 0.0
    %121 = vmatprep.subr.mxu0 0.0
    %122 = vmatpush1.msra.mxu0 0.0
    %123 = vmatprep.subr.mxu0 0.0
    %124 = vmatpush1.msra.mxu0 0.0
    %125 = vmatprep.subr.mxu0 0.0
    %126 = vmatpush1.msra.mxu0 0.0
    %127 = vmatprep.subr.mxu0 0.0
    %128 = vmatpush1.msra.mxu0 0.0
    %129 = vmatprep.subr.mxu0 0.0
    %130 = vmatpush1.msra.mxu0 0.0
    %131 = vmatprep.subr.mxu0 0.0
    %132 = vmatpush1.msra.mxu0 0.0
    %133 = vmatprep.subr.mxu0 0.0
    %134 = vmatpush1.msra.mxu0 0.0
    %135 = vmatprep.subr.mxu0 0.0
    %136 = vmatpush1.msra.mxu0 0.0
    %137 = vmatprep.subr.mxu0 0.0
    %138 = vmatpush1.msra.mxu0 0.0
    %139 = vmatprep.subr.mxu0 0.0
    %140 = vmatpush1.msra.mxu0 0.0
    %141 = vmatprep.subr.mxu0 0.0
    %142 = vmatpush1.msra.mxu0 0.0
    %143 = vmatprep.subr.mxu0 0.0
    %144 = vmatpush1.msra.mxu0 0.0
    %145 = vmatprep.subr.mxu0 0.0
    %146 = vmatpush1.msra.mxu0 0.0
    %147 = vmatprep.subr.mxu0 0.0
    %148 = vmatpush1.msra.mxu0 0.0
    %149 = vmatprep.subr.mxu0 0.0
    %150 = vmatpush1.msra.mxu0 0.0
    %151 = vmatprep.subr.mxu0 0.0
    %152 = vmatpush1.msra.mxu0 0.0
    %153 = vmatprep.subr.mxu0 0.0
    %154 = vmatpush1.msra.mxu0 0.0
    %155 = vmatprep.subr.mxu0 0.0
    %156 = vmatpush1.msra.mxu0 0.0
    %157 = vmatprep.subr.mxu0 0.0
    %158 = vmatpush1.msra.mxu0 0.0
    %159 = vmatprep.subr.mxu0 0.0
    %160 = vmatpush1.msra.mxu0 0.0
    %161 = vmatprep.subr.mxu0 0.0
    %162 = vmatpush1.msra.mxu0 0.0
    %163 = vmatprep.subr.mxu0 0.0
    %164 = vmatpush1.msra.mxu0 0.0
    %165 = vmatprep.subr.mxu0 0.0
    %166 = vmatpush1.msra.mxu0 0.0
    %167 = vmatprep.subr.mxu0 0.0
    %168 = vmatpush1.msra.mxu0 0.0
    %169 = vmatprep.subr.mxu0 0.0
    %170 = vmatpush1.msra.mxu0 0.0
    %171 = vmatprep.mubr.f32.mxu0 0.0
    %172 = vmatmul.mubr.f32.gmra.mrb[0].mxu0 %v105
    %v173 = vpop.f32.mrb[0].mxu0
    %v174 = vadd.f32 0.0, %v173
    %v175 = vpop.f32.mrb[0].mxu0
    %176 = vdwg.mxu0
    %v177 = vadd.f32 %v102, %v174
    %v178 = vxor.u32 %v177, 2147483648
    %v179 = vmul.f32 %v178, 1.442695
    %v180 = vpow.pop %v179
    %v181 = vadd.f32 %v180, 1.0
    %v182 = vrcp.pop %v181
    %v183 = vmul.f32 1.0, %v182
    %v184 = vtanh.pop %v177
    %186 = vrot.lane.b32.xlu0 %v99, 32
    %v187 = vpop.permute.xlu0 %186
    %v189 = vmul.f32 %v183, %v187
    %191 = vrot.lane.b32.xlu0 %v184, 64
    %v192 = vpop.permute.xlu0 %191
    %v194 = vmul.f32 %v183, %v192
    %196 = vrot.lane.b32.xlu0 %v194, 32
    %v197 = vpop.permute.xlu0 %196
    %v199 = vadd.f32 %v189, %v197
    %v200 = vtanh.pop %v199
    %202 = vrot.lane.b32.xlu0 %v200, 64
    %v203 = vpop.permute.xlu0 %202
    %v205 = vmul.f32 %v183, %v203
    %v207 = vsel %vm103, %v100, 0
    %209 = vmatprep.subr.mxu0 0.0
    %210 = vmatpush1.msra.mxu0 %v93
    %211 = vmatprep.subr.mxu0 0.0
    %212 = vmatpush1.msra.mxu0 %v94
    %213 = vmatprep.subr.mxu0 0.0
    %214 = vmatpush1.msra.mxu0 %v95
    %215 = vmatprep.subr.mxu0 0.0
    %216 = vmatpush1.msra.mxu0 %v96
    %217 = vmatprep.subr.mxu0 0.0
    %218 = vmatpush1.msra.mxu0 0.0
    %219 = vmatprep.subr.mxu0 0.0
    %220 = vmatpush1.msra.mxu0 0.0
    %221 = vmatprep.subr.mxu0 0.0
    %222 = vmatpush1.msra.mxu0 0.0
    %223 = vmatprep.subr.mxu0 0.0
    %224 = vmatpush1.msra.mxu0 0.0
    %225 = vmatprep.subr.mxu0 0.0
    %226 = vmatpush1.msra.mxu0 0.0
    %227 = vmatprep.subr.mxu0 0.0
    %228 = vmatpush1.msra.mxu0 0.0
    %229 = vmatprep.subr.mxu0 0.0
    %230 = vmatpush1.msra.mxu0 0.0
    %231 = vmatprep.subr.mxu0 0.0
    %232 = vmatpush1.msra.mxu0 0.0
    %233 = vmatprep.subr.mxu0 0.0
    %234 = vmatpush1.msra.mxu0 0.0
    %235 = vmatprep.subr.mxu0 0.0
    %236 = vmatpush1.msra.mxu0 0.0
    %237 = vmatprep.subr.mxu0 0.0
    %238 = vmatpush1.msra.mxu0 0.0
    %239 = vmatprep.subr.mxu0 0.0
    %240 = vmatpush1.msra.mxu0 0.0
    %241 = vmatprep.subr.mxu0 0.0
    %242 = vmatpush1.msra.mxu0 0.0
    %243 = vmatprep.subr.mxu0 0.0
    %244 = vmatpush1.msra.mxu0 0.0
    %245 = vmatprep.subr.mxu0 0.0
    %246 = vmatpush1.msra.mxu0 0.0
    %247 = vmatprep.subr.mxu0 0.0
    %248 = vmatpush1.msra.mxu0 0.0
    %249 = vmatprep.subr.mxu0 0.0
    %250 = vmatpush1.msra.mxu0 0.0
    %251 = vmatprep.subr.mxu0 0.0
    %252 = vmatpush1.msra.mxu0 0.0
    %253 = vmatprep.subr.mxu0 0.0
    %254 = vmatpush1.msra.mxu0 0.0
    %255 = vmatprep.subr.mxu0 0.0
    %256 = vmatpush1.msra.mxu0 0.0
    %257 = vmatprep.subr.mxu0 0.0
    %258 = vmatpush1.msra.mxu0 0.0
    %259 = vmatprep.subr.mxu0 0.0
    %260 = vmatpush1.msra.mxu0 0.0
    %261 = vmatprep.subr.mxu0 0.0
    %262 = vmatpush1.msra.mxu0 0.0
    %263 = vmatprep.subr.mxu0 0.0
    %264 = vmatpush1.msra.mxu0 0.0
    %265 = vmatprep.subr.mxu0 0.0
    %266 = vmatpush1.msra.mxu0 0.0
    %267 = vmatprep.subr.mxu0 0.0
    %268 = vmatpush1.msra.mxu0 0.0
    %269 = vmatprep.subr.mxu0 0.0
    %270 = vmatpush1.msra.mxu0 0.0
    %271 = vmatprep.subr.mxu0 0.0
    %272 = vmatpush1.msra.mxu0 0.0
    %273 = vmatprep.mubr.f32.mxu0 0.0
    %274 = vmatmul.mubr.f32.gmra.mrb[0].mxu0 %v207
    %v275 = vpop.f32.mrb[0].mxu0
    %v276 = vadd.f32 0.0, %v275
    %v277 = vpop.f32.mrb[0].mxu0
    %278 = vdwg.mxu0
    %280 = vrot.lane.b32.xlu0 %v205, 32
    %v281 = vpop.permute.xlu0 %280
    %v282 = vsel %vm103, %v281, 0
    %284 = vmatprep.subr.mxu0 0.0
    %285 = vmatpush1.msra.mxu0 %v89
    %286 = vmatprep.subr.mxu0 0.0
    %287 = vmatpush1.msra.mxu0 %v90
    %288 = vmatprep.subr.mxu0 0.0
    %289 = vmatpush1.msra.mxu0 %v91
    %290 = vmatprep.subr.mxu0 0.0
    %291 = vmatpush1.msra.mxu0 %v92
    %292 = vmatprep.subr.mxu0 0.0
    %293 = vmatpush1.msra.mxu0 0.0
    %294 = vmatprep.subr.mxu0 0.0
    %295 = vmatpush1.msra.mxu0 0.0
    %296 = vmatprep.subr.mxu0 0.0
    %297 = vmatpush1.msra.mxu0 0.0
    %298 = vmatprep.subr.mxu0 0.0
    %299 = vmatpush1.msra.mxu0 0.0
    %300 = vmatprep.subr.mxu0 0.0
    %301 = vmatpush1.msra.mxu0 0.0
    %302 = vmatprep.subr.mxu0 0.0
    %303 = vmatpush1.msra.mxu0 0.0
    %304 = vmatprep.subr.mxu0 0.0
    %305 = vmatpush1.msra.mxu0 0.0
    %306 = vmatprep.subr.mxu0 0.0
    %307 = vmatpush1.msra.mxu0 0.0
    %308 = vmatprep.subr.mxu0 0.0
    %309 = vmatpush1.msra.mxu0 0.0
    %310 = vmatprep.subr.mxu0 0.0
    %311 = vmatpush1.msra.mxu0 0.0
    %312 = vmatprep.subr.mxu0 0.0
    %313 = vmatpush1.msra.mxu0 0.0
    %314 = vmatprep.subr.mxu0 0.0
    %315 = vmatpush1.msra.mxu0 0.0
    %316 = vmatprep.subr.mxu0 0.0
    %317 = vmatpush1.msra.mxu0 0.0
    %318 = vmatprep.subr.mxu0 0.0
    %319 = vmatpush1.msra.mxu0 0.0
    %320 = vmatprep.subr.mxu0 0.0
    %321 = vmatpush1.msra.mxu0 0.0
    %322 = vmatprep.subr.mxu0 0.0
    %323 = vmatpush1.msra.mxu0 0.0
    %324 = vmatprep.subr.mxu0 0.0
    %325 = vmatpush1.msra.mxu0 0.0
    %326 = vmatprep.subr.mxu0 0.0
    %327 = vmatpush1.msra.mxu0 0.0
    %328 = vmatprep.subr.mxu0 0.0
    %329 = vmatpush1.msra.mxu0 0.0
    %330 = vmatprep.subr.mxu0 0.0
    %331 = vmatpush1.msra.mxu0 0.0
    %332 = vmatprep.subr.mxu0 0.0
    %333 = vmatpush1.msra.mxu0 0.0
    %334 = vmatprep.subr.mxu0 0.0
    %335 = vmatpush1.msra.mxu0 0.0
    %336 = vmatprep.subr.mxu0 0.0
    %337 = vmatpush1.msra.mxu0 0.0
    %338 = vmatprep.subr.mxu0 0.0
    %339 = vmatpush1.msra.mxu0 0.0
    %340 = vmatprep.subr.mxu0 0.0
    %341 = vmatpush1.msra.mxu0 0.0
    %342 = vmatprep.subr.mxu0 0.0
    %343 = vmatpush1.msra.mxu0 0.0
    %344 = vmatprep.subr.mxu0 0.0
    %345 = vmatpush1.msra.mxu0 0.0
    %346 = vmatprep.subr.mxu0 0.0
    %347 = vmatpush1.msra.mxu0 0.0
    %348 = vmatprep.mubr.f32.mxu0 0.0
    %349 = vmatmul.mubr.f32.gmra.mrb[0].mxu0 %v282
    %v350 = vpop.f32.mrb[0].mxu0
    %v351 = vadd.f32 %v276, %v350
    %v352 = vpop.f32.mrb[0].mxu0
    %353 = vdwg.mxu0
    %v355 = vlaneseq
    %v356 = vshrl.u32 %v355, 7
    %v357 = vsub.s32 0, %v356
    %v358 = vrot.slane %v97, %v357
    %v360 = vadd.f32 %v351, %v358
    %v361 = vxor.u32 %v360, 2147483648
    %v362 = vmul.f32 %v361, 1.442695
    %v363 = vpow.pop %v362
    %v364 = vadd.f32 %v363, 1.0
    %v365 = vrcp.pop %v364
    %v366 = vmul.f32 1.0, %v365
    %v367 = vtanh.pop %v360
    %369 = vrot.lane.b32.xlu0 %v101, 32
    %v370 = vpop.permute.xlu0 %369
    %v372 = vmul.f32 %v366, %v370
    %374 = vrot.lane.b32.xlu0 %v367, 64
    %v375 = vpop.permute.xlu0 %374
    %v377 = vmul.f32 %v366, %v375
    %379 = vrot.lane.b32.xlu0 %v377, 32
    %v380 = vpop.permute.xlu0 %379
    %v382 = vadd.f32 %v372, %v380
    %v383 = vtanh.pop %v382
    %385 = vrot.lane.b32.xlu0 %v383, 64
    %v386 = vpop.permute.xlu0 %385
    %v388 = vmul.f32 %v366, %v386
    %390 = vrot.lane.b32.xlu0 %v388, 32
    %v391 = vpop.permute.xlu0 %390
    %vm393 = vcmask 254976
    %394 = vst.msk [vmem:[#allocation14] sm:$0x3] %vm393, %v391
    %s395 = scalar_lea.vmem [#allocation6], 2
    %v396 = vld [vmem:[%s395] sm:$0x3]
    %397 = vmatprep.subr.mxu0 0.0
    %398 = vmatpush1.msra.mxu0 %v85
    %399 = vmatprep.subr.mxu0 0.0
    %400 = vmatpush1.msra.mxu0 %v86
    %401 = vmatprep.subr.mxu0 0.0
    %402 = vmatpush1.msra.mxu0 %v87
    %403 = vmatprep.subr.mxu0 0.0
    %404 = vmatpush1.msra.mxu0 %v88
    %405 = vmatprep.subr.mxu0 0.0
    %406 = vmatpush1.msra.mxu0 0.0
    %407 = vmatprep.subr.mxu0 0.0
    %408 = vmatpush1.msra.mxu0 0.0
    %409 = vmatprep.subr.mxu0 0.0
    %410 = vmatpush1.msra.mxu0 0.0
    %411 = vmatprep.subr.mxu0 0.0
    %412 = vmatpush1.msra.mxu0 0.0
    %413 = vmatprep.subr.mxu0 0.0
    %414 = vmatpush1.msra.mxu0 0.0
    %415 = vmatprep.subr.mxu0 0.0
    %416 = vmatpush1.msra.mxu0 0.0
    %417 = vmatprep.subr.mxu0 0.0
    %418 = vmatpush1.msra.mxu0 0.0
    %419 = vmatprep.subr.mxu0 0.0
    %420 = vmatpush1.msra.mxu0 0.0
    %421 = vmatprep.subr.mxu0 0.0
    %422 = vmatpush1.msra.mxu0 0.0
    %423 = vmatprep.subr.mxu0 0.0
    %424 = vmatpush1.msra.mxu0 0.0
    %425 = vmatprep.subr.mxu0 0.0
    %426 = vmatpush1.msra.mxu0 0.0
    %427 = vmatprep.subr.mxu0 0.0
    %428 = vmatpush1.msra.mxu0 0.0
    %429 = vmatprep.subr.mxu0 0.0
    %430 = vmatpush1.msra.mxu0 0.0
    %431 = vmatprep.subr.mxu0 0.0
    %432 = vmatpush1.msra.mxu0 0.0
    %433 = vmatprep.subr.mxu0 0.0
    %434 = vmatpush1.msra.mxu0 0.0
    %435 = vmatprep.subr.mxu0 0.0
    %436 = vmatpush1.msra.mxu0 0.0
    %437 = vmatprep.subr.mxu0 0.0
    %438 = vmatpush1.msra.mxu0 0.0
    %439 = vmatprep.subr.mxu0 0.0
    %440 = vmatpush1.msra.mxu0 0.0
    %441 = vmatprep.subr.mxu0 0.0
    %442 = vmatpush1.msra.mxu0 0.0
    %443 = vmatprep.subr.mxu0 0.0
    %444 = vmatpush1.msra.mxu0 0.0
    %445 = vmatprep.subr.mxu0 0.0
    %446 = vmatpush1.msra.mxu0 0.0
    %447 = vmatprep.subr.mxu0 0.0
    %448 = vmatpush1.msra.mxu0 0.0
    %449 = vmatprep.subr.mxu0 0.0
    %450 = vmatpush1.msra.mxu0 0.0
    %451 = vmatprep.subr.mxu0 0.0
    %452 = vmatpush1.msra.mxu0 0.0
    %453 = vmatprep.subr.mxu0 0.0
    %454 = vmatpush1.msra.mxu0 0.0
    %455 = vmatprep.subr.mxu0 0.0
    %456 = vmatpush1.msra.mxu0 0.0
    %457 = vmatprep.subr.mxu0 0.0
    %458 = vmatpush1.msra.mxu0 0.0
    %459 = vmatprep.subr.mxu0 0.0
    %460 = vmatpush1.msra.mxu0 0.0
    %461 = vmatprep.mubr.f32.mxu0 0.0
    %462 = vmatmul.mubr.f32.gmra.mrb[0].mxu0 %v282
    %v463 = vpop.f32.mrb[0].mxu0
    %v464 = vadd.f32 0.0, %v463
    %v465 = vpop.f32.mrb[0].mxu0
    %466 = vdwg.mxu0
    %v467 = vadd.f32 %v396, %v464
    %v468 = vxor.u32 %v467, 2147483648
    %v469 = vmul.f32 %v468, 1.442695
    %v470 = vpow.pop %v469
    %v471 = vadd.f32 %v470, 1.0
    %v472 = vrcp.pop %v471
    %v473 = vmul.f32 1.0, %v472
    %v474 = vtanh.pop %v467
    %v475 = vmul.f32 %v473, %v199
    %477 = vrot.lane.b32.xlu0 %v474, 64
    %v478 = vpop.permute.xlu0 %477
    %v480 = vmul.f32 %v473, %v478
    %482 = vrot.lane.b32.xlu0 %v480, 32
    %v483 = vpop.permute.xlu0 %482
    %v485 = vadd.f32 %v475, %v483
    %v486 = vtanh.pop %v485
    %488 = vrot.lane.b32.xlu0 %v486, 64
    %v489 = vpop.permute.xlu0 %488
    %v491 = vmul.f32 %v473, %v489
    %v492 = vsel %vm103, %v391, 0
    %494 = vmatprep.subr.mxu0 0.0
    %495 = vmatpush1.msra.mxu0 %v93
    %496 = vmatprep.subr.mxu0 0.0
    %497 = vmatpush1.msra.mxu0 %v94
    %498 = vmatprep.subr.mxu0 0.0
    %499 = vmatpush1.msra.mxu0 %v95
    %500 = vmatprep.subr.mxu0 0.0
    %501 = vmatpush1.msra.mxu0 %v96
    %502 = vmatprep.subr.mxu0 0.0
    %503 = vmatpush1.msra.mxu0 0.0
    %504 = vmatprep.subr.mxu0 0.0
    %505 = vmatpush1.msra.mxu0 0.0
    %506 = vmatprep.subr.mxu0 0.0
    %507 = vmatpush1.msra.mxu0 0.0
    %508 = vmatprep.subr.mxu0 0.0
    %509 = vmatpush1.msra.mxu0 0.0
    %510 = vmatprep.subr.mxu0 0.0
    %511 = vmatpush1.msra.mxu0 0.0
    %512 = vmatprep.subr.mxu0 0.0
    %513 = vmatpush1.msra.mxu0 0.0
    %514 = vmatprep.subr.mxu0 0.0
    %515 = vmatpush1.msra.mxu0 0.0
    %516 = vmatprep.subr.mxu0 0.0
    %517 = vmatpush1.msra.mxu0 0.0
    %518 = vmatprep.subr.mxu0 0.0
    %519 = vmatpush1.msra.mxu0 0.0
    %520 = vmatprep.subr.mxu0 0.0
    %521 = vmatpush1.msra.mxu0 0.0
    %522 = vmatprep.subr.mxu0 0.0
    %523 = vmatpush1.msra.mxu0 0.0
    %524 = vmatprep.subr.mxu0 0.0
    %525 = vmatpush1.msra.mxu0 0.0
    %526 = vmatprep.subr.mxu0 0.0
    %527 = vmatpush1.msra.mxu0 0.0
    %528 = vmatprep.subr.mxu0 0.0
    %529 = vmatpush1.msra.mxu0 0.0
    %530 = vmatprep.subr.mxu0 0.0
    %531 = vmatpush1.msra.mxu0 0.0
    %532 = vmatprep.subr.mxu0 0.0
    %533 = vmatpush1.msra.mxu0 0.0
    %534 = vmatprep.subr.mxu0 0.0
    %535 = vmatpush1.msra.mxu0 0.0
    %536 = vmatprep.subr.mxu0 0.0
    %537 = vmatpush1.msra.mxu0 0.0
    %538 = vmatprep.subr.mxu0 0.0
    %539 = vmatpush1.msra.mxu0 0.0
    %540 = vmatprep.subr.mxu0 0.0
    %541 = vmatpush1.msra.mxu0 0.0
    %542 = vmatprep.subr.mxu0 0.0
    %543 = vmatpush1.msra.mxu0 0.0
    %544 = vmatprep.subr.mxu0 0.0
    %545 = vmatpush1.msra.mxu0 0.0
    %546 = vmatprep.subr.mxu0 0.0
    %547 = vmatpush1.msra.mxu0 0.0
    %548 = vmatprep.subr.mxu0 0.0
    %549 = vmatpush1.msra.mxu0 0.0
    %550 = vmatprep.subr.mxu0 0.0
    %551 = vmatpush1.msra.mxu0 0.0
    %552 = vmatprep.subr.mxu0 0.0
    %553 = vmatpush1.msra.mxu0 0.0
    %554 = vmatprep.subr.mxu0 0.0
    %555 = vmatpush1.msra.mxu0 0.0
    %556 = vmatprep.subr.mxu0 0.0
    %557 = vmatpush1.msra.mxu0 0.0
    %558 = vmatprep.mubr.f32.mxu0 0.0
    %559 = vmatmul.mubr.f32.gmra.mrb[0].mxu0 %v492
    %v560 = vpop.f32.mrb[0].mxu0
    %v561 = vadd.f32 0.0, %v560
    %v562 = vpop.f32.mrb[0].mxu0
    %563 = vdwg.mxu0
    %565 = vrot.lane.b32.xlu0 %v491, 32
    %v566 = vpop.permute.xlu0 %565
    %v567 = vsel %vm103, %v566, 0
    %569 = vmatprep.subr.mxu0 0.0
    %570 = vmatpush1.msra.mxu0 %v89
    %571 = vmatprep.subr.mxu0 0.0
    %572 = vmatpush1.msra.mxu0 %v90
    %573 = vmatprep.subr.mxu0 0.0
    %574 = vmatpush1.msra.mxu0 %v91
    %575 = vmatprep.subr.mxu0 0.0
    %576 = vmatpush1.msra.mxu0 %v92
    %577 = vmatprep.subr.mxu0 0.0
    %578 = vmatpush1.msra.mxu0 0.0
    %579 = vmatprep.subr.mxu0 0.0
    %580 = vmatpush1.msra.mxu0 0.0
    %581 = vmatprep.subr.mxu0 0.0
    %582 = vmatpush1.msra.mxu0 0.0
    %583 = vmatprep.subr.mxu0 0.0
    %584 = vmatpush1.msra.mxu0 0.0
    %585 = vmatprep.subr.mxu0 0.0
    %586 = vmatpush1.msra.mxu0 0.0
    %587 = vmatprep.subr.mxu0 0.0
    %588 = vmatpush1.msra.mxu0 0.0
    %589 = vmatprep.subr.mxu0 0.0
    %590 = vmatpush1.msra.mxu0 0.0
    %591 = vmatprep.subr.mxu0 0.0
    %592 = vmatpush1.msra.mxu0 0.0
    %593 = vmatprep.subr.mxu0 0.0
    %594 = vmatpush1.msra.mxu0 0.0
    %595 = vmatprep.subr.mxu0 0.0
    %596 = vmatpush1.msra.mxu0 0.0
    %597 = vmatprep.subr.mxu0 0.0
    %598 = vmatpush1.msra.mxu0 0.0
    %599 = vmatprep.subr.mxu0 0.0
    %600 = vmatpush1.msra.mxu0 0.0
    %601 = vmatprep.subr.mxu0 0.0
    %602 = vmatpush1.msra.mxu0 0.0
    %603 = vmatprep.subr.mxu0 0.0
    %604 = vmatpush1.msra.mxu0 0.0
    %605 = vmatprep.subr.mxu0 0.0
    %606 = vmatpush1.msra.mxu0 0.0
    %607 = vmatprep.subr.mxu0 0.0
    %608 = vmatpush1.msra.mxu0 0.0
    %609 = vmatprep.subr.mxu0 0.0
    %610 = vmatpush1.msra.mxu0 0.0
    %611 = vmatprep.subr.mxu0 0.0
    %612 = vmatpush1.msra.mxu0 0.0
    %613 = vmatprep.subr.mxu0 0.0
    %614 = vmatpush1.msra.mxu0 0.0
    %615 = vmatprep.subr.mxu0 0.0
    %616 = vmatpush1.msra.mxu0 0.0
    %617 = vmatprep.subr.mxu0 0.0
    %618 = vmatpush1.msra.mxu0 0.0
    %619 = vmatprep.subr.mxu0 0.0
    %620 = vmatpush1.msra.mxu0 0.0
    %621 = vmatprep.subr.mxu0 0.0
    %622 = vmatpush1.msra.mxu0 0.0
    %623 = vmatprep.subr.mxu0 0.0
    %624 = vmatpush1.msra.mxu0 0.0
    %625 = vmatprep.subr.mxu0 0.0
    %626 = vmatpush1.msra.mxu0 0.0
    %627 = vmatprep.subr.mxu0 0.0
    %628 = vmatpush1.msra.mxu0 0.0
    %629 = vmatprep.subr.mxu0 0.0
    %630 = vmatpush1.msra.mxu0 0.0
    %631 = vmatprep.subr.mxu0 0.0
    %632 = vmatpush1.msra.mxu0 0.0
    %633 = vmatprep.mubr.f32.mxu0 0.0
    %634 = vmatmul.mubr.f32.gmra.mrb[0].mxu0 %v567
    %v635 = vpop.f32.mrb[0].mxu0
    %v636 = vadd.f32 %v561, %v635
    %v637 = vpop.f32.mrb[0].mxu0
    %638 = vdwg.mxu0
    %v639 = vadd.f32 %v636, %v358
    %v640 = vxor.u32 %v639, 2147483648
    %v641 = vmul.f32 %v640, 1.442695
    %v642 = vpow.pop %v641
    %v643 = vadd.f32 %v642, 1.0
    %v644 = vrcp.pop %v643
    %v645 = vmul.f32 1.0, %v644
    %v646 = vtanh.pop %v639
    %v647 = vmul.f32 %v645, %v382
    %649 = vrot.lane.b32.xlu0 %v646, 64
    %v650 = vpop.permute.xlu0 %649
    %v652 = vmul.f32 %v645, %v650
    %654 = vrot.lane.b32.xlu0 %v652, 32
    %v655 = vpop.permute.xlu0 %654
    %v657 = vadd.f32 %v647, %v655
    %v658 = vtanh.pop %v657
    %660 = vrot.lane.b32.xlu0 %v658, 64
    %v661 = vpop.permute.xlu0 %660
    %v663 = vmul.f32 %v645, %v661
    %665 = vrot.lane.b32.xlu0 %v663, 32
    %v666 = vpop.permute.xlu0 %665
    %s668 = scalar_lea.vmem [#allocation14], 2
    %669 = vst.msk [vmem:[%s668] sm:$0x3] %vm393, %v666
    %s670 = scalar_lea.vmem [#allocation6], 4
    %v671 = vld [vmem:[%s670] sm:$0x3]
    %672 = vmatprep.subr.mxu0 0.0
    %673 = vmatpush1.msra.mxu0 %v85
    %674 = vmatprep.subr.mxu0 0.0
    %675 = vmatpush1.msra.mxu0 %v86
    %676 = vmatprep.subr.mxu0 0.0
    %677 = vmatpush1.msra.mxu0 %v87
    %678 = vmatprep.subr.mxu0 0.0
    %679 = vmatpush1.msra.mxu0 %v88
    %680 = vmatprep.subr.mxu0 0.0
    %681 = vmatpush1.msra.mxu0 0.0
    %682 = vmatprep.subr.mxu0 0.0
    %683 = vmatpush1.msra.mxu0 0.0
    %684 = vmatprep.subr.mxu0 0.0
    %685 = vmatpush1.msra.mxu0 0.0
    %686 = vmatprep.subr.mxu0 0.0
    %687 = vmatpush1.msra.mxu0 0.0
    %688 = vmatprep.subr.mxu0 0.0
    %689 = vmatpush1.msra.mxu0 0.0
    %690 = vmatprep.subr.mxu0 0.0
    %691 = vmatpush1.msra.mxu0 0.0
    %692 = vmatprep.subr.mxu0 0.0
    %693 = vmatpush1.msra.mxu0 0.0
    %694 = vmatprep.subr.mxu0 0.0
    %695 = vmatpush1.msra.mxu0 0.0
    %696 = vmatprep.subr.mxu0 0.0
    %697 = vmatpush1.msra.mxu0 0.0
    %698 = vmatprep.subr.mxu0 0.0
    %699 = vmatpush1.msra.mxu0 0.0
    %700 = vmatprep.subr.mxu0 0.0
    %701 = vmatpush1.msra.mxu0 0.0
    %702 = vmatprep.subr.mxu0 0.0
    %703 = vmatpush1.msra.mxu0 0.0
    %704 = vmatprep.subr.mxu0 0.0
    %705 = vmatpush1.msra.mxu0 0.0
    %706 = vmatprep.subr.mxu0 0.0
    %707 = vmatpush1.msra.mxu0 0.0
    %708 = vmatprep.subr.mxu0 0.0
    %709 = vmatpush1.msra.mxu0 0.0
    %710 = vmatprep.subr.mxu0 0.0
    %711 = vmatpush1.msra.mxu0 0.0
    %712 = vmatprep.subr.mxu0 0.0
    %713 = vmatpush1.msra.mxu0 0.0
    %714 = vmatprep.subr.mxu0 0.0
    %715 = vmatpush1.msra.mxu0 0.0
    %716 = vmatprep.subr.mxu0 0.0
    %717 = vmatpush1.msra.mxu0 0.0
    %718 = vmatprep.subr.mxu0 0.0
    %719 = vmatpush1.msra.mxu0 0.0
    %720 = vmatprep.subr.mxu0 0.0
    %721 = vmatpush1.msra.mxu0 0.0
    %722 = vmatprep.subr.mxu0 0.0
    %723 = vmatpush1.msra.mxu0 0.0
    %724 = vmatprep.subr.mxu0 0.0
    %725 = vmatpush1.msra.mxu0 0.0
    %726 = vmatprep.subr.mxu0 0.0
    %727 = vmatpush1.msra.mxu0 0.0
    %728 = vmatprep.subr.mxu0 0.0
    %729 = vmatpush1.msra.mxu0 0.0
    %730 = vmatprep.subr.mxu0 0.0
    %731 = vmatpush1.msra.mxu0 0.0
    %732 = vmatprep.subr.mxu0 0.0
    %733 = vmatpush1.msra.mxu0 0.0
    %734 = vmatprep.subr.mxu0 0.0
    %735 = vmatpush1.msra.mxu0 0.0
    %736 = vmatprep.mubr.f32.mxu0 0.0
    %737 = vmatmul.mubr.f32.gmra.mrb[0].mxu0 %v567
    %v738 = vpop.f32.mrb[0].mxu0
    %v739 = vadd.f32 0.0, %v738
    %v740 = vpop.f32.mrb[0].mxu0
    %741 = vdwg.mxu0
    %v742 = vadd.f32 %v671, %v739
    %v743 = vxor.u32 %v742, 2147483648
    %v744 = vmul.f32 %v743, 1.442695
    %v745 = vpow.pop %v744
    %v746 = vadd.f32 %v745, 1.0
    %v747 = vrcp.pop %v746
    %v748 = vmul.f32 1.0, %v747
    %v749 = vtanh.pop %v742
    %v750 = vmul.f32 %v748, %v485
    %752 = vrot.lane.b32.xlu0 %v749, 64
    %v753 = vpop.permute.xlu0 %752
    %v755 = vmul.f32 %v748, %v753
    %757 = vrot.lane.b32.xlu0 %v755, 32
    %v758 = vpop.permute.xlu0 %757
    %v760 = vadd.f32 %v750, %v758
    %v761 = vtanh.pop %v760
    %763 = vrot.lane.b32.xlu0 %v761, 64
    %v764 = vpop.permute.xlu0 %763
    %v766 = vmul.f32 %v748, %v764
    %v767 = vsel %vm103, %v666, 0
    %769 = vmatprep.subr.mxu0 0.0
    %770 = vmatpush1.msra.mxu0 %v93
    %771 = vmatprep.subr.mxu0 0.0
    %772 = vmatpush1.msra.mxu0 %v94
    %773 = vmatprep.subr.mxu0 0.0
    %774 = vmatpush1.msra.mxu0 %v95
    %775 = vmatprep.subr.mxu0 0.0
    %776 = vmatpush1.msra.mxu0 %v96
    %777 = vmatprep.subr.mxu0 0.0
    %778 = vmatpush1.msra.mxu0 0.0
    %779 = vmatprep.subr.mxu0 0.0
    %780 = vmatpush1.msra.mxu0 0.0
    %781 = vmatprep.subr.mxu0 0.0
    %782 = vmatpush1.msra.mxu0 0.0
    %783 = vmatprep.subr.mxu0 0.0
    %784 = vmatpush1.msra.mxu0 0.0
    %785 = vmatprep.subr.mxu0 0.0
    %786 = vmatpush1.msra.mxu0 0.0
    %787 = vmatprep.subr.mxu0 0.0
    %788 = vmatpush1.msra.mxu0 0.0
    %789 = vmatprep.subr.mxu0 0.0
    %790 = vmatpush1.msra.mxu0 0.0
    %791 = vmatprep.subr.mxu0 0.0
    %792 = vmatpush1.msra.mxu0 0.0
    %793 = vmatprep.subr.mxu0 0.0
    %794 = vmatpush1.msra.mxu0 0.0
    %795 = vmatprep.subr.mxu0 0.0
    %796 = vmatpush1.msra.mxu0 0.0
    %797 = vmatprep.subr.mxu0 0.0
    %798 = vmatpush1.msra.mxu0 0.0
    %799 = vmatprep.subr.mxu0 0.0
    %800 = vmatpush1.msra.mxu0 0.0
    %801 = vmatprep.subr.mxu0 0.0
    %802 = vmatpush1.msra.mxu0 0.0
    %803 = vmatprep.subr.mxu0 0.0
    %804 = vmatpush1.msra.mxu0 0.0
    %805 = vmatprep.subr.mxu0 0.0
    %806 = vmatpush1.msra.mxu0 0.0
    %807 = vmatprep.subr.mxu0 0.0
    %808 = vmatpush1.msra.mxu0 0.0
    %809 = vmatprep.subr.mxu0 0.0
    %810 = vmatpush1.msra.mxu0 0.0
    %811 = vmatprep.subr.mxu0 0.0
    %812 = vmatpush1.msra.mxu0 0.0
    %813 = vmatprep.subr.mxu0 0.0
    %814 = vmatpush1.msra.mxu0 0.0
    %815 = vmatprep.subr.mxu0 0.0
    %816 = vmatpush1.msra.mxu0 0.0
    %817 = vmatprep.subr.mxu0 0.0
    %818 = vmatpush1.msra.mxu0 0.0
    %819 = vmatprep.subr.mxu0 0.0
    %820 = vmatpush1.msra.mxu0 0.0
    %821 = vmatprep.subr.mxu0 0.0
    %822 = vmatpush1.msra.mxu0 0.0
    %823 = vmatprep.subr.mxu0 0.0
    %824 = vmatpush1.msra.mxu0 0.0
    %825 = vmatprep.subr.mxu0 0.0
    %826 = vmatpush1.msra.mxu0 0.0
    %827 = vmatprep.subr.mxu0 0.0
    %828 = vmatpush1.msra.mxu0 0.0
    %829 = vmatprep.subr.mxu0 0.0
    %830 = vmatpush1.msra.mxu0 0.0
    %831 = vmatprep.subr.mxu0 0.0
    %832 = vmatpush1.msra.mxu0 0.0
    %833 = vmatprep.mubr.f32.mxu0 0.0
    %834 = vmatmul.mubr.f32.gmra.mrb[0].mxu0 %v767
    %v835 = vpop.f32.mrb[0].mxu0
    %v836 = vadd.f32 0.0, %v835
    %v837 = vpop.f32.mrb[0].mxu0
    %838 = vdwg.mxu0
    %840 = vrot.lane.b32.xlu0 %v766, 32
    %v841 = vpop.permute.xlu0 %840
    %v842 = vsel %vm103, %v841, 0
    %844 = vmatprep.subr.mxu0 0.0
    %845 = vmatpush1.msra.mxu0 %v89
    %846 = vmatprep.subr.mxu0 0.0
    %847 = vmatpush1.msra.mxu0 %v90
    %848 = vmatprep.subr.mxu0 0.0
    %849 = vmatpush1.msra.mxu0 %v91
    %850 = vmatprep.subr.mxu0 0.0
    %851 = vmatpush1.msra.mxu0 %v92
    %852 = vmatprep.subr.mxu0 0.0
    %853 = vmatpush1.msra.mxu0 0.0
    %854 = vmatprep.subr.mxu0 0.0
    %855 = vmatpush1.msra.mxu0 0.0
    %856 = vmatprep.subr.mxu0 0.0
    %857 = vmatpush1.msra.mxu0 0.0
    %858 = vmatprep.subr.mxu0 0.0
    %859 = vmatpush1.msra.mxu0 0.0
    %860 = vmatprep.subr.mxu0 0.0
    %861 = vmatpush1.msra.mxu0 0.0
    %862 = vmatprep.subr.mxu0 0.0
    %863 = vmatpush1.msra.mxu0 0.0
    %864 = vmatprep.subr.mxu0 0.0
    %865 = vmatpush1.msra.mxu0 0.0
    %866 = vmatprep.subr.mxu0 0.0
    %867 = vmatpush1.msra.mxu0 0.0
    %868 = vmatprep.subr.mxu0 0.0
    %869 = vmatpush1.msra.mxu0 0.0
    %870 = vmatprep.subr.mxu0 0.0
    %871 = vmatpush1.msra.mxu0 0.0
    %872 = vmatprep.subr.mxu0 0.0
    %873 = vmatpush1.msra.mxu0 0.0
    %874 = vmatprep.subr.mxu0 0.0
    %875 = vmatpush1.msra.mxu0 0.0
    %876 = vmatprep.subr.mxu0 0.0
    %877 = vmatpush1.msra.mxu0 0.0
    %878 = vmatprep.subr.mxu0 0.0
    %879 = vmatpush1.msra.mxu0 0.0
    %880 = vmatprep.subr.mxu0 0.0
    %881 = vmatpush1.msra.mxu0 0.0
    %882 = vmatprep.subr.mxu0 0.0
    %883 = vmatpush1.msra.mxu0 0.0
    %884 = vmatprep.subr.mxu0 0.0
    %885 = vmatpush1.msra.mxu0 0.0
    %886 = vmatprep.subr.mxu0 0.0
    %887 = vmatpush1.msra.mxu0 0.0
    %888 = vmatprep.subr.mxu0 0.0
    %889 = vmatpush1.msra.mxu0 0.0
    %890 = vmatprep.subr.mxu0 0.0
    %891 = vmatpush1.msra.mxu0 0.0
    %892 = vmatprep.subr.mxu0 0.0
    %893 = vmatpush1.msra.mxu0 0.0
    %894 = vmatprep.subr.mxu0 0.0
    %895 = vmatpush1.msra.mxu0 0.0
    %896 = vmatprep.subr.mxu0 0.0
    %897 = vmatpush1.msra.mxu0 0.0
    %898 = vmatprep.subr.mxu0 0.0
    %899 = vmatpush1.msra.mxu0 0.0
    %900 = vmatprep.subr.mxu0 0.0
    %901 = vmatpush1.msra.mxu0 0.0
    %902 = vmatprep.subr.mxu0 0.0
    %903 = vmatpush1.msra.mxu0 0.0
    %904 = vmatprep.subr.mxu0 0.0
    %905 = vmatpush1.msra.mxu0 0.0
    %906 = vmatprep.subr.mxu0 0.0
    %907 = vmatpush1.msra.mxu0 0.0
    %908 = vmatprep.mubr.f32.mxu0 0.0
    %909 = vmatmul.mubr.f32.gmra.mrb[0].mxu0 %v842
    %v910 = vpop.f32.mrb[0].mxu0
    %v911 = vadd.f32 %v836, %v910
    %v912 = vpop.f32.mrb[0].mxu0
    %913 = vdwg.mxu0
    %v914 = vadd.f32 %v911, %v358
    %v915 = vxor.u32 %v914, 2147483648
    %v916 = vmul.f32 %v915, 1.442695
    %v917 = vpow.pop %v916
    %v918 = vadd.f32 %v917, 1.0
    %v919 = vrcp.pop %v918
    %v920 = vmul.f32 1.0, %v919
    %v921 = vtanh.pop %v914
    %v922 = vmul.f32 %v920, %v657
    %924 = vrot.lane.b32.xlu0 %v921, 64
    %v925 = vpop.permute.xlu0 %924
    %v927 = vmul.f32 %v920, %v925
    %929 = vrot.lane.b32.xlu0 %v927, 32
    %v930 = vpop.permute.xlu0 %929
    %v932 = vadd.f32 %v922, %v930
    %v933 = vtanh.pop %v932
    %935 = vrot.lane.b32.xlu0 %v933, 64
    %v936 = vpop.permute.xlu0 %935
    %v938 = vmul.f32 %v920, %v936
    %940 = vrot.lane.b32.xlu0 %v938, 32
    %v941 = vpop.permute.xlu0 %940
    %s943 = scalar_lea.vmem [#allocation14], 4
    %944 = vst.msk [vmem:[%s943] sm:$0x3] %vm393, %v941
    %s945 = scalar_lea.vmem [#allocation6], 6
    %v946 = vld [vmem:[%s945] sm:$0x3]
    %947 = vmatprep.subr.mxu0 0.0
    %948 = vmatpush1.msra.mxu0 %v85
    %949 = vmatprep.subr.mxu0 0.0
    %950 = vmatpush1.msra.mxu0 %v86
    %951 = vmatprep.subr.mxu0 0.0
    %952 = vmatpush1.msra.mxu0 %v87
    %953 = vmatprep.subr.mxu0 0.0
    %954 = vmatpush1.msra.mxu0 %v88
    %955 = vmatprep.subr.mxu0 0.0
    %956 = vmatpush1.msra.mxu0 0.0
    %957 = vmatprep.subr.mxu0 0.0
    %958 = vmatpush1.msra.mxu0 0.0
    %959 = vmatprep.subr.mxu0 0.0
    %960 = vmatpush1.msra.mxu0 0.0
    %961 = vmatprep.subr.mxu0 0.0
    %962 = vmatpush1.msra.mxu0 0.0
    %963 = vmatprep.subr.mxu0 0.0
    %964 = vmatpush1.msra.mxu0 0.0
    %965 = vmatprep.subr.mxu0 0.0
    %966 = vmatpush1.msra.mxu0 0.0
    %967 = vmatprep.subr.mxu0 0.0
    %968 = vmatpush1.msra.mxu0 0.0
    %969 = vmatprep.subr.mxu0 0.0
    %970 = vmatpush1.msra.mxu0 0.0
    %971 = vmatprep.subr.mxu0 0.0
    %972 = vmatpush1.msra.mxu0 0.0
    %973 = vmatprep.subr.mxu0 0.0
    %974 = vmatpush1.msra.mxu0 0.0
    %975 = vmatprep.subr.mxu0 0.0
    %976 = vmatpush1.msra.mxu0 0.0
    %977 = vmatprep.subr.mxu0 0.0
    %978 = vmatpush1.msra.mxu0 0.0
    %979 = vmatprep.subr.mxu0 0.0
    %980 = vmatpush1.msra.mxu0 0.0
    %981 = vmatprep.subr.mxu0 0.0
    %982 = vmatpush1.msra.mxu0 0.0
    %983 = vmatprep.subr.mxu0 0.0
    %984 = vmatpush1.msra.mxu0 0.0
    %985 = vmatprep.subr.mxu0 0.0
    %986 = vmatpush1.msra.mxu0 0.0
    %987 = vmatprep.subr.mxu0 0.0
    %988 = vmatpush1.msra.mxu0 0.0
    %989 = vmatprep.subr.mxu0 0.0
    %990 = vmatpush1.msra.mxu0 0.0
    %991 = vmatprep.subr.mxu0 0.0
    %992 = vmatpush1.msra.mxu0 0.0
    %993 = vmatprep.subr.mxu0 0.0
    %994 = vmatpush1.msra.mxu0 0.0
    %995 = vmatprep.subr.mxu0 0.0
    %996 = vmatpush1.msra.mxu0 0.0
    %997 = vmatprep.subr.mxu0 0.0
    %998 = vmatpush1.msra.mxu0 0.0
    %999 = vmatprep.subr.mxu0 0.0
    %1000 = vmatpush1.msra.mxu0 0.0
    %1001 = vmatprep.subr.mxu0 0.0
    %1002 = vmatpush1.msra.mxu0 0.0
    %1003 = vmatprep.subr.mxu0 0.0
    %1004 = vmatpush1.msra.mxu0 0.0
    %1005 = vmatprep.subr.mxu0 0.0
    %1006 = vmatpush1.msra.mxu0 0.0
    %1007 = vmatprep.subr.mxu0 0.0
    %1008 = vmatpush1.msra.mxu0 0.0
    %1009 = vmatprep.subr.mxu0 0.0
    %1010 = vmatpush1.msra.mxu0 0.0
    %1011 = vmatprep.mubr.f32.mxu0 0.0
    %1012 = vmatmul.mubr.f32.gmra.mrb[0].mxu0 %v842
    %v1013 = vpop.f32.mrb[0].mxu0
    %v1014 = vadd.f32 0.0, %v1013
    %v1015 = vpop.f32.mrb[0].mxu0
    %1016 = vdwg.mxu0
    %v1017 = vadd.f32 %v946, %v1014
    %v1018 = vxor.u32 %v1017, 2147483648
    %v1019 = vmul.f32 %v1018, 1.442695
    %v1020 = vpow.pop %v1019
    %v1021 = vadd.f32 %v1020, 1.0
    %v1022 = vrcp.pop %v1021
    %v1023 = vmul.f32 1.0, %v1022
    %v1024 = vtanh.pop %v1017
    %v1025 = vmul.f32 %v1023, %v760
    %1027 = vrot.lane.b32.xlu0 %v1024, 64
    %v1028 = vpop.permute.xlu0 %1027
    %v1030 = vmul.f32 %v1023, %v1028
    %1032 = vrot.lane.b32.xlu0 %v1030, 32
    %v1033 = vpop.permute.xlu0 %1032
    %v1035 = vadd.f32 %v1025, %v1033
    %v1036 = vtanh.pop %v1035
    %1038 = vrot.lane.b32.xlu0 %v1036, 64
    %v1039 = vpop.permute.xlu0 %1038
    %v1041 = vmul.f32 %v1023, %v1039
    %v1042 = vsel %vm103, %v941, 0
    %1044 = vmatprep.subr.mxu0 0.0
    %1045 = vmatpush1.msra.mxu0 %v93
    %1046 = vmatprep.subr.mxu0 0.0
    %1047 = vmatpush1.msra.mxu0 %v94
    %1048 = vmatprep.subr.mxu0 0.0
    %1049 = vmatpush1.msra.mxu0 %v95
    %1050 = vmatprep.subr.mxu0 0.0
    %1051 = vmatpush1.msra.mxu0 %v96
    %1052 = vmatprep.subr.mxu0 0.0
    %1053 = vmatpush1.msra.mxu0 0.0
    %1054 = vmatprep.subr.mxu0 0.0
    %1055 = vmatpush1.msra.mxu0 0.0
    %1056 = vmatprep.subr.mxu0 0.0
    %1057 = vmatpush1.msra.mxu0 0.0
    %1058 = vmatprep.subr.mxu0 0.0
    %1059 = vmatpush1.msra.mxu0 0.0
    %1060 = vmatprep.subr.mxu0 0.0
    %1061 = vmatpush1.msra.mxu0 0.0
    %1062 = vmatprep.subr.mxu0 0.0
    %1063 = vmatpush1.msra.mxu0 0.0
    %1064 = vmatprep.subr.mxu0 0.0
    %1065 = vmatpush1.msra.mxu0 0.0
    %1066 = vmatprep.subr.mxu0 0.0
    %1067 = vmatpush1.msra.mxu0 0.0
    %1068 = vmatprep.subr.mxu0 0.0
    %1069 = vmatpush1.msra.mxu0 0.0
    %1070 = vmatprep.subr.mxu0 0.0
    %1071 = vmatpush1.msra.mxu0 0.0
    %1072 = vmatprep.subr.mxu0 0.0
    %1073 = vmatpush1.msra.mxu0 0.0
    %1074 = vmatprep.subr.mxu0 0.0
    %1075 = vmatpush1.msra.mxu0 0.0
    %1076 = vmatprep.subr.mxu0 0.0
    %1077 = vmatpush1.msra.mxu0 0.0
    %1078 = vmatprep.subr.mxu0 0.0
    %1079 = vmatpush1.msra.mxu0 0.0
    %1080 = vmatprep.subr.mxu0 0.0
    %1081 = vmatpush1.msra.mxu0 0.0
    %1082 = vmatprep.subr.mxu0 0.0
    %1083 = vmatpush1.msra.mxu0 0.0
    %1084 = vmatprep.subr.mxu0 0.0
    %1085 = vmatpush1.msra.mxu0 0.0
    %1086 = vmatprep.subr.mxu0 0.0
    %1087 = vmatpush1.msra.mxu0 0.0
    %1088 = vmatprep.subr.mxu0 0.0
    %1089 = vmatpush1.msra.mxu0 0.0
    %1090 = vmatprep.subr.mxu0 0.0
    %1091 = vmatpush1.msra.mxu0 0.0
    %1092 = vmatprep.subr.mxu0 0.0
    %1093 = vmatpush1.msra.mxu0 0.0
    %1094 = vmatprep.subr.mxu0 0.0
    %1095 = vmatpush1.msra.mxu0 0.0
    %1096 = vmatprep.subr.mxu0 0.0
    %1097 = vmatpush1.msra.mxu0 0.0
    %1098 = vmatprep.subr.mxu0 0.0
    %1099 = vmatpush1.msra.mxu0 0.0
    %1100 = vmatprep.subr.mxu0 0.0
    %1101 = vmatpush1.msra.mxu0 0.0
    %1102 = vmatprep.subr.mxu0 0.0
    %1103 = vmatpush1.msra.mxu0 0.0
    %1104 = vmatprep.subr.mxu0 0.0
    %1105 = vmatpush1.msra.mxu0 0.0
    %1106 = vmatprep.subr.mxu0 0.0
    %1107 = vmatpush1.msra.mxu0 0.0
    %1108 = vmatprep.mubr.f32.mxu0 0.0
    %1109 = vmatmul.mubr.f32.gmra.mrb[0].mxu0 %v1042
    %v1110 = vpop.f32.mrb[0].mxu0
    %v1111 = vadd.f32 0.0, %v1110
    %v1112 = vpop.f32.mrb[0].mxu0
    %1113 = vdwg.mxu0
    %1115 = vrot.lane.b32.xlu0 %v1041, 32
    %v1116 = vpop.permute.xlu0 %1115
    %v1117 = vsel %vm103, %v1116, 0
    %1119 = vmatprep.subr.mxu0 0.0
    %1120 = vmatpush1.msra.mxu0 %v89
    %1121 = vmatprep.subr.mxu0 0.0
    %1122 = vmatpush1.msra.mxu0 %v90
    %1123 = vmatprep.subr.mxu0 0.0
    %1124 = vmatpush1.msra.mxu0 %v91
    %1125 = vmatprep.subr.mxu0 0.0
    %1126 = vmatpush1.msra.mxu0 %v92
    %1127 = vmatprep.subr.mxu0 0.0
    %1128 = vmatpush1.msra.mxu0 0.0
    %1129 = vmatprep.subr.mxu0 0.0
    %1130 = vmatpush1.msra.mxu0 0.0
    %1131 = vmatprep.subr.mxu0 0.0
    %1132 = vmatpush1.msra.mxu0 0.0
    %1133 = vmatprep.subr.mxu0 0.0
    %1134 = vmatpush1.msra.mxu0 0.0
    %1135 = vmatprep.subr.mxu0 0.0
    %1136 = vmatpush1.msra.mxu0 0.0
    %1137 = vmatprep.subr.mxu0 0.0
    %1138 = vmatpush1.msra.mxu0 0.0
    %1139 = vmatprep.subr.mxu0 0.0
    %1140 = vmatpush1.msra.mxu0 0.0
    %1141 = vmatprep.subr.mxu0 0.0
    %1142 = vmatpush1.msra.mxu0 0.0
    %1143 = vmatprep.subr.mxu0 0.0
    %1144 = vmatpush1.msra.mxu0 0.0
    %1145 = vmatprep.subr.mxu0 0.0
    %1146 = vmatpush1.msra.mxu0 0.0
    %1147 = vmatprep.subr.mxu0 0.0
    %1148 = vmatpush1.msra.mxu0 0.0
    %1149 = vmatprep.subr.mxu0 0.0
    %1150 = vmatpush1.msra.mxu0 0.0
    %1151 = vmatprep.subr.mxu0 0.0
    %1152 = vmatpush1.msra.mxu0 0.0
    %1153 = vmatprep.subr.mxu0 0.0
    %1154 = vmatpush1.msra.mxu0 0.0
    %1155 = vmatprep.subr.mxu0 0.0
    %1156 = vmatpush1.msra.mxu0 0.0
    %1157 = vmatprep.subr.mxu0 0.0
    %1158 = vmatpush1.msra.mxu0 0.0
    %1159 = vmatprep.subr.mxu0 0.0
    %1160 = vmatpush1.msra.mxu0 0.0
    %1161 = vmatprep.subr.mxu0 0.0
    %1162 = vmatpush1.msra.mxu0 0.0
    %1163 = vmatprep.subr.mxu0 0.0
    %1164 = vmatpush1.msra.mxu0 0.0
    %1165 = vmatprep.subr.mxu0 0.0
    %1166 = vmatpush1.msra.mxu0 0.0
    %1167 = vmatprep.subr.mxu0 0.0
    %1168 = vmatpush1.msra.mxu0 0.0
    %1169 = vmatprep.subr.mxu0 0.0
    %1170 = vmatpush1.msra.mxu0 0.0
    %1171 = vmatprep.subr.mxu0 0.0
    %1172 = vmatpush1.msra.mxu0 0.0
    %1173 = vmatprep.subr.mxu0 0.0
    %1174 = vmatpush1.msra.mxu0 0.0
    %1175 = vmatprep.subr.mxu0 0.0
    %1176 = vmatpush1.msra.mxu0 0.0
    %1177 = vmatprep.subr.mxu0 0.0
    %1178 = vmatpush1.msra.mxu0 0.0
    %1179 = vmatprep.subr.mxu0 0.0
    %1180 = vmatpush1.msra.mxu0 0.0
    %1181 = vmatprep.subr.mxu0 0.0
    %1182 = vmatpush1.msra.mxu0 0.0
    %1183 = vmatprep.mubr.f32.mxu0 0.0
    %1184 = vmatmul.mubr.f32.gmra.mrb[0].mxu0 %v1117
    %v1185 = vpop.f32.mrb[0].mxu0
    %v1186 = vadd.f32 %v1111, %v1185
    %v1187 = vpop.f32.mrb[0].mxu0
    %1188 = vdwg.mxu0
    %v1189 = vadd.f32 %v1186, %v358
    %v1190 = vxor.u32 %v1189, 2147483648
    %v1191 = vmul.f32 %v1190, 1.442695
    %v1192 = vpow.pop %v1191
    %v1193 = vadd.f32 %v1192, 1.0
    %v1194 = vrcp.pop %v1193
    %v1195 = vmul.f32 1.0, %v1194
    %v1196 = vtanh.pop %v1189
    %v1197 = vmul.f32 %v1195, %v932
    %1199 = vrot.lane.b32.xlu0 %v1196, 64
    %v1200 = vpop.permute.xlu0 %1199
    %v1202 = vmul.f32 %v1195, %v1200
    %1204 = vrot.lane.b32.xlu0 %v1202, 32
    %v1205 = vpop.permute.xlu0 %1204
    %v1207 = vadd.f32 %v1197, %v1205
    %v1208 = vtanh.pop %v1207
    %1210 = vrot.lane.b32.xlu0 %v1208, 64
    %v1211 = vpop.permute.xlu0 %1210
    %v1213 = vmul.f32 %v1195, %v1211
    %1215 = vrot.lane.b32.xlu0 %v1213, 32
    %v1216 = vpop.permute.xlu0 %1215
    %s1218 = scalar_lea.vmem [#allocation14], 6
    %1219 = vst.msk [vmem:[%s1218] sm:$0x3] %vm393, %v1216
    %s1220 = scalar_lea.vmem [#allocation6], 8
    %v1221 = vld [vmem:[%s1220] sm:$0x3]
    %1222 = vmatprep.subr.mxu0 0.0
    %1223 = vmatpush1.msra.mxu0 %v85
    %1224 = vmatprep.subr.mxu0 0.0
    %1225 = vmatpush1.msra.mxu0 %v86
    %1226 = vmatprep.subr.mxu0 0.0
    %1227 = vmatpush1.msra.mxu0 %v87
    %1228 = vmatprep.subr.mxu0 0.0
    %1229 = vmatpush1.msra.mxu0 %v88
    %1230 = vmatprep.subr.mxu0 0.0
    %1231 = vmatpush1.msra.mxu0 0.0
    %1232 = vmatprep.subr.mxu0 0.0
    %1233 = vmatpush1.msra.mxu0 0.0
    %1234 = vmatprep.subr.mxu0 0.0
    %1235 = vmatpush1.msra.mxu0 0.0
    %1236 = vmatprep.subr.mxu0 0.0
    %1237 = vmatpush1.msra.mxu0 0.0
    %1238 = vmatprep.subr.mxu0 0.0
    %1239 = vmatpush1.msra.mxu0 0.0
    %1240 = vmatprep.subr.mxu0 0.0
    %1241 = vmatpush1.msra.mxu0 0.0
    %1242 = vmatprep.subr.mxu0 0.0
    %1243 = vmatpush1.msra.mxu0 0.0
    %1244 = vmatprep.subr.mxu0 0.0
    %1245 = vmatpush1.msra.mxu0 0.0
    %1246 = vmatprep.subr.mxu0 0.0
    %1247 = vmatpush1.msra.mxu0 0.0
    %1248 = vmatprep.subr.mxu0 0.0
    %1249 = vmatpush1.msra.mxu0 0.0
    %1250 = vmatprep.subr.mxu0 0.0
    %1251 = vmatpush1.msra.mxu0 0.0
    %1252 = vmatprep.subr.mxu0 0.0
    %1253 = vmatpush1.msra.mxu0 0.0
    %1254 = vmatprep.subr.mxu0 0.0
    %1255 = vmatpush1.msra.mxu0 0.0
    %1256 = vmatprep.subr.mxu0 0.0
    %1257 = vmatpush1.msra.mxu0 0.0
    %1258 = vmatprep.subr.mxu0 0.0
    %1259 = vmatpush1.msra.mxu0 0.0
    %1260 = vmatprep.subr.mxu0 0.0
    %1261 = vmatpush1.msra.mxu0 0.0
    %1262 = vmatprep.subr.mxu0 0.0
    %1263 = vmatpush1.msra.mxu0 0.0
    %1264 = vmatprep.subr.mxu0 0.0
    %1265 = vmatpush1.msra.mxu0 0.0
    %1266 = vmatprep.subr.mxu0 0.0
    %1267 = vmatpush1.msra.mxu0 0.0
    %1268 = vmatprep.subr.mxu0 0.0
    %1269 = vmatpush1.msra.mxu0 0.0
    %1270 = vmatprep.subr.mxu0 0.0
    %1271 = vmatpush1.msra.mxu0 0.0
    %1272 = vmatprep.subr.mxu0 0.0
    %1273 = vmatpush1.msra.mxu0 0.0
    %1274 = vmatprep.subr.mxu0 0.0
    %1275 = vmatpush1.msra.mxu0 0.0
    %1276 = vmatprep.subr.mxu0 0.0
    %1277 = vmatpush1.msra.mxu0 0.0
    %1278 = vmatprep.subr.mxu0 0.0
    %1279 = vmatpush1.msra.mxu0 0.0
    %1280 = vmatprep.subr.mxu0 0.0
    %1281 = vmatpush1.msra.mxu0 0.0
    %1282 = vmatprep.subr.mxu0 0.0
    %1283 = vmatpush1.msra.mxu0 0.0
    %1284 = vmatprep.subr.mxu0 0.0
    %1285 = vmatpush1.msra.mxu0 0.0
    %1286 = vmatprep.mubr.f32.mxu0 0.0
    %1287 = vmatmul.mubr.f32.gmra.mrb[0].mxu0 %v1117
    %v1288 = vpop.f32.mrb[0].mxu0
    %v1289 = vadd.f32 0.0, %v1288
    %v1290 = vpop.f32.mrb[0].mxu0
    %1291 = vdwg.mxu0
    %v1292 = vadd.f32 %v1221, %v1289
    %v1293 = vxor.u32 %v1292, 2147483648
    %v1294 = vmul.f32 %v1293, 1.442695
    %v1295 = vpow.pop %v1294
    %v1296 = vadd.f32 %v1295, 1.0
    %v1297 = vrcp.pop %v1296
    %v1298 = vmul.f32 1.0, %v1297
    %v1299 = vtanh.pop %v1292
    %v1300 = vmul.f32 %v1298, %v1035
    %1302 = vrot.lane.b32.xlu0 %v1299, 64
    %v1303 = vpop.permute.xlu0 %1302
    %v1305 = vmul.f32 %v1298, %v1303
    %1307 = vrot.lane.b32.xlu0 %v1305, 32
    %v1308 = vpop.permute.xlu0 %1307
    %v1310 = vadd.f32 %v1300, %v1308
    %v1311 = vtanh.pop %v1310
    %1313 = vrot.lane.b32.xlu0 %v1311, 64
    %v1314 = vpop.permute.xlu0 %1313
    %v1316 = vmul.f32 %v1298, %v1314
    %v1317 = vsel %vm103, %v1216, 0
    %1319 = vmatprep.subr.mxu0 0.0
    %1320 = vmatpush1.msra.mxu0 %v93
    %1321 = vmatprep.subr.mxu0 0.0
    %1322 = vmatpush1.msra.mxu0 %v94
    %1323 = vmatprep.subr.mxu0 0.0
    %1324 = vmatpush1.msra.mxu0 %v95
    %1325 = vmatprep.subr.mxu0 0.0
    %1326 = vmatpush1.msra.mxu0 %v96
    %1327 = vmatprep.subr.mxu0 0.0
    %1328 = vmatpush1.msra.mxu0 0.0
    %1329 = vmatprep.subr.mxu0 0.0
    %1330 = vmatpush1.msra.mxu0 0.0
    %1331 = vmatprep.subr.mxu0 0.0
    %1332 = vmatpush1.msra.mxu0 0.0
    %1333 = vmatprep.subr.mxu0 0.0
    %1334 = vmatpush1.msra.mxu0 0.0
    %1335 = vmatprep.subr.mxu0 0.0
    %1336 = vmatpush1.msra.mxu0 0.0
    %1337 = vmatprep.subr.mxu0 0.0
    %1338 = vmatpush1.msra.mxu0 0.0
    %1339 = vmatprep.subr.mxu0 0.0
    %1340 = vmatpush1.msra.mxu0 0.0
    %1341 = vmatprep.subr.mxu0 0.0
    %1342 = vmatpush1.msra.mxu0 0.0
    %1343 = vmatprep.subr.mxu0 0.0
    %1344 = vmatpush1.msra.mxu0 0.0
    %1345 = vmatprep.subr.mxu0 0.0
    %1346 = vmatpush1.msra.mxu0 0.0
    %1347 = vmatprep.subr.mxu0 0.0
    %1348 = vmatpush1.msra.mxu0 0.0
    %1349 = vmatprep.subr.mxu0 0.0
    %1350 = vmatpush1.msra.mxu0 0.0
    %1351 = vmatprep.subr.mxu0 0.0
    %1352 = vmatpush1.msra.mxu0 0.0
    %1353 = vmatprep.subr.mxu0 0.0
    %1354 = vmatpush1.msra.mxu0 0.0
    %1355 = vmatprep.subr.mxu0 0.0
    %1356 = vmatpush1.msra.mxu0 0.0
    %1357 = vmatprep.subr.mxu0 0.0
    %1358 = vmatpush1.msra.mxu0 0.0
    %1359 = vmatprep.subr.mxu0 0.0
    %1360 = vmatpush1.msra.mxu0 0.0
    %1361 = vmatprep.subr.mxu0 0.0
    %1362 = vmatpush1.msra.mxu0 0.0
    %1363 = vmatprep.subr.mxu0 0.0
    %1364 = vmatpush1.msra.mxu0 0.0
    %1365 = vmatprep.subr.mxu0 0.0
    %1366 = vmatpush1.msra.mxu0 0.0
    %1367 = vmatprep.subr.mxu0 0.0
    %1368 = vmatpush1.msra.mxu0 0.0
    %1369 = vmatprep.subr.mxu0 0.0
    %1370 = vmatpush1.msra.mxu0 0.0
    %1371 = vmatprep.subr.mxu0 0.0
    %1372 = vmatpush1.msra.mxu0 0.0
    %1373 = vmatprep.subr.mxu0 0.0
    %1374 = vmatpush1.msra.mxu0 0.0
    %1375 = vmatprep.subr.mxu0 0.0
    %1376 = vmatpush1.msra.mxu0 0.0
    %1377 = vmatprep.subr.mxu0 0.0
    %1378 = vmatpush1.msra.mxu0 0.0
    %1379 = vmatprep.subr.mxu0 0.0
    %1380 = vmatpush1.msra.mxu0 0.0
    %1381 = vmatprep.subr.mxu0 0.0
    %1382 = vmatpush1.msra.mxu0 0.0
    %1383 = vmatprep.mubr.f32.mxu0 0.0
    %1384 = vmatmul.mubr.f32.gmra.mrb[0].mxu0 %v1317
    %v1385 = vpop.f32.mrb[0].mxu0
    %v1386 = vadd.f32 0.0, %v1385
    %v1387 = vpop.f32.mrb[0].mxu0
    %1388 = vdwg.mxu0
    %1390 = vrot.lane.b32.xlu0 %v1316, 32
    %v1391 = vpop.permute.xlu0 %1390
    %v1392 = vsel %vm103, %v1391, 0
    %1394 = vmatprep.subr.mxu0 0.0
    %1395 = vmatpush1.msra.mxu0 %v89
    %1396 = vmatprep.subr.mxu0 0.0
    %1397 = vmatpush1.msra.mxu0 %v90
    %1398 = vmatprep.subr.mxu0 0.0
    %1399 = vmatpush1.msra.mxu0 %v91
    %1400 = vmatprep.subr.mxu0 0.0
    %1401 = vmatpush1.msra.mxu0 %v92
    %1402 = vmatprep.subr.mxu0 0.0
    %1403 = vmatpush1.msra.mxu0 0.0
    %1404 = vmatprep.subr.mxu0 0.0
    %1405 = vmatpush1.msra.mxu0 0.0
    %1406 = vmatprep.subr.mxu0 0.0
    %1407 = vmatpush1.msra.mxu0 0.0
    %1408 = vmatprep.subr.mxu0 0.0
    %1409 = vmatpush1.msra.mxu0 0.0
    %1410 = vmatprep.subr.mxu0 0.0
    %1411 = vmatpush1.msra.mxu0 0.0
    %1412 = vmatprep.subr.mxu0 0.0
    %1413 = vmatpush1.msra.mxu0 0.0
    %1414 = vmatprep.subr.mxu0 0.0
    %1415 = vmatpush1.msra.mxu0 0.0
    %1416 = vmatprep.subr.mxu0 0.0
    %1417 = vmatpush1.msra.mxu0 0.0
    %1418 = vmatprep.subr.mxu0 0.0
    %1419 = vmatpush1.msra.mxu0 0.0
    %1420 = vmatprep.subr.mxu0 0.0
    %1421 = vmatpush1.msra.mxu0 0.0
    %1422 = vmatprep.subr.mxu0 0.0
    %1423 = vmatpush1.msra.mxu0 0.0
    %1424 = vmatprep.subr.mxu0 0.0
    %1425 = vmatpush1.msra.mxu0 0.0
    %1426 = vmatprep.subr.mxu0 0.0
    %1427 = vmatpush1.msra.mxu0 0.0
    %1428 = vmatprep.subr.mxu0 0.0
    %1429 = vmatpush1.msra.mxu0 0.0
    %1430 = vmatprep.subr.mxu0 0.0
    %1431 = vmatpush1.msra.mxu0 0.0
    %1432 = vmatprep.subr.mxu0 0.0
    %1433 = vmatpush1.msra.mxu0 0.0
    %1434 = vmatprep.subr.mxu0 0.0
    %1435 = vmatpush1.msra.mxu0 0.0
    %1436 = vmatprep.subr.mxu0 0.0
    %1437 = vmatpush1.msra.mxu0 0.0
    %1438 = vmatprep.subr.mxu0 0.0
    %1439 = vmatpush1.msra.mxu0 0.0
    %1440 = vmatprep.subr.mxu0 0.0
    %1441 = vmatpush1.msra.mxu0 0.0
    %1442 = vmatprep.subr.mxu0 0.0
    %1443 = vmatpush1.msra.mxu0 0.0
    %1444 = vmatprep.subr.mxu0 0.0
    %1445 = vmatpush1.msra.mxu0 0.0
    %1446 = vmatprep.subr.mxu0 0.0
    %1447 = vmatpush1.msra.mxu0 0.0
    %1448 = vmatprep.subr.mxu0 0.0
    %1449 = vmatpush1.msra.mxu0 0.0
    %1450 = vmatprep.subr.mxu0 0.0
    %1451 = vmatpush1.msra.mxu0 0.0
    %1452 = vmatprep.subr.mxu0 0.0
    %1453 = vmatpush1.msra.mxu0 0.0
    %1454 = vmatprep.subr.mxu0 0.0
    %1455 = vmatpush1.msra.mxu0 0.0
    %1456 = vmatprep.subr.mxu0 0.0
    %1457 = vmatpush1.msra.mxu0 0.0
    %1458 = vmatprep.mubr.f32.mxu0 0.0
    %1459 = vmatmul.mubr.f32.gmra.mrb[0].mxu0 %v1392
    %v1460 = vpop.f32.mrb[0].mxu0
    %v1461 = vadd.f32 %v1386, %v1460
    %v1462 = vpop.f32.mrb[0].mxu0
    %1463 = vdwg.mxu0
    %v1464 = vadd.f32 %v1461, %v358
    %v1465 = vxor.u32 %v1464, 2147483648
    %v1466 = vmul.f32 %v1465, 1.442695
    %v1467 = vpow.pop %v1466
    %v1468 = vadd.f32 %v1467, 1.0
    %v1469 = vrcp.pop %v1468
    %v1470 = vmul.f32 1.0, %v1469
    %v1471 = vtanh.pop %v1464
    %v1472 = vmul.f32 %v1470, %v1207
    %1474 = vrot.lane.b32.xlu0 %v1471, 64
    %v1475 = vpop.permute.xlu0 %1474
    %v1477 = vmul.f32 %v1470, %v1475
    %1479 = vrot.lane.b32.xlu0 %v1477, 32
    %v1480 = vpop.permute.xlu0 %1479
    %v1482 = vadd.f32 %v1472, %v1480
    %v1483 = vtanh.pop %v1482
    %1485 = vrot.lane.b32.xlu0 %v1483, 64
    %v1486 = vpop.permute.xlu0 %1485
    %v1488 = vmul.f32 %v1470, %v1486
    %1490 = vrot.lane.b32.xlu0 %v1488, 32
    %v1491 = vpop.permute.xlu0 %1490
    %s1493 = scalar_lea.vmem [#allocation14], 8
    %1494 = vst.msk [vmem:[%s1493] sm:$0x3] %vm393, %v1491
    %s1495 = scalar_lea.vmem [#allocation6], 10
    %v1496 = vld [vmem:[%s1495] sm:$0x3]
    %1497 = vmatprep.subr.mxu0 0.0
    %1498 = vmatpush1.msra.mxu0 %v85
    %1499 = vmatprep.subr.mxu0 0.0
    %1500 = vmatpush1.msra.mxu0 %v86
    %1501 = vmatprep.subr.mxu0 0.0
    %1502 = vmatpush1.msra.mxu0 %v87
    %1503 = vmatprep.subr.mxu0 0.0
    %1504 = vmatpush1.msra.mxu0 %v88
    %1505 = vmatprep.subr.mxu0 0.0
    %1506 = vmatpush1.msra.mxu0 0.0
    %1507 = vmatprep.subr.mxu0 0.0
    %1508 = vmatpush1.msra.mxu0 0.0
    %1509 = vmatprep.subr.mxu0 0.0
    %1510 = vmatpush1.msra.mxu0 0.0
    %1511 = vmatprep.subr.mxu0 0.0
    %1512 = vmatpush1.msra.mxu0 0.0
    %1513 = vmatprep.subr.mxu0 0.0
    %1514 = vmatpush1.msra.mxu0 0.0
    %1515 = vmatprep.subr.mxu0 0.0
    %1516 = vmatpush1.msra.mxu0 0.0
    %1517 = vmatprep.subr.mxu0 0.0
    %1518 = vmatpush1.msra.mxu0 0.0
    %1519 = vmatprep.subr.mxu0 0.0
    %1520 = vmatpush1.msra.mxu0 0.0
    %1521 = vmatprep.subr.mxu0 0.0
    %1522 = vmatpush1.msra.mxu0 0.0
    %1523 = vmatprep.subr.mxu0 0.0
    %1524 = vmatpush1.msra.mxu0 0.0
    %1525 = vmatprep.subr.mxu0 0.0
    %1526 = vmatpush1.msra.mxu0 0.0
    %1527 = vmatprep.subr.mxu0 0.0
    %1528 = vmatpush1.msra.mxu0 0.0
    %1529 = vmatprep.subr.mxu0 0.0
    %1530 = vmatpush1.msra.mxu0 0.0
    %1531 = vmatprep.subr.mxu0 0.0
    %1532 = vmatpush1.msra.mxu0 0.0
    %1533 = vmatprep.subr.mxu0 0.0
    %1534 = vmatpush1.msra.mxu0 0.0
    %1535 = vmatprep.subr.mxu0 0.0
    %1536 = vmatpush1.msra.mxu0 0.0
    %1537 = vmatprep.subr.mxu0 0.0
    %1538 = vmatpush1.msra.mxu0 0.0
    %1539 = vmatprep.subr.mxu0 0.0
    %1540 = vmatpush1.msra.mxu0 0.0
    %1541 = vmatprep.subr.mxu0 0.0
    %1542 = vmatpush1.msra.mxu0 0.0
    %1543 = vmatprep.subr.mxu0 0.0
    %1544 = vmatpush1.msra.mxu0 0.0
    %1545 = vmatprep.subr.mxu0 0.0
    %1546 = vmatpush1.msra.mxu0 0.0
    %1547 = vmatprep.subr.mxu0 0.0
    %1548 = vmatpush1.msra.mxu0 0.0
    %1549 = vmatprep.subr.mxu0 0.0
    %1550 = vmatpush1.msra.mxu0 0.0
    %1551 = vmatprep.subr.mxu0 0.0
    %1552 = vmatpush1.msra.mxu0 0.0
    %1553 = vmatprep.subr.mxu0 0.0
    %1554 = vmatpush1.msra.mxu0 0.0
    %1555 = vmatprep.subr.mxu0 0.0
    %1556 = vmatpush1.msra.mxu0 0.0
    %1557 = vmatprep.subr.mxu0 0.0
    %1558 = vmatpush1.msra.mxu0 0.0
    %1559 = vmatprep.subr.mxu0 0.0
    %1560 = vmatpush1.msra.mxu0 0.0
    %1561 = vmatprep.mubr.f32.mxu0 0.0
    %1562 = vmatmul.mubr.f32.gmra.mrb[0].mxu0 %v1392
    %v1563 = vpop.f32.mrb[0].mxu0
    %v1564 = vadd.f32 0.0, %v1563
    %v1565 = vpop.f32.mrb[0].mxu0
    %1566 = vdwg.mxu0
    %v1567 = vadd.f32 %v1496, %v1564
    %v1568 = vxor.u32 %v1567, 2147483648
    %v1569 = vmul.f32 %v1568, 1.442695
    %v1570 = vpow.pop %v1569
    %v1571 = vadd.f32 %v1570, 1.0
    %v1572 = vrcp.pop %v1571
    %v1573 = vmul.f32 1.0, %v1572
    %v1574 = vtanh.pop %v1567
    %v1575 = vmul.f32 %v1573, %v1310
    %1577 = vrot.lane.b32.xlu0 %v1574, 64
    %v1578 = vpop.permute.xlu0 %1577
    %v1580 = vmul.f32 %v1573, %v1578
    %1582 = vrot.lane.b32.xlu0 %v1580, 32
    %v1583 = vpop.permute.xlu0 %1582
    %v1585 = vadd.f32 %v1575, %v1583
    %v1586 = vtanh.pop %v1585
    %1588 = vrot.lane.b32.xlu0 %v1586, 64
    %v1589 = vpop.permute.xlu0 %1588
    %v1591 = vmul.f32 %v1573, %v1589
    %v1592 = vsel %vm103, %v1491, 0
    %1594 = vmatprep.subr.mxu0 0.0
    %1595 = vmatpush1.msra.mxu0 %v93
    %1596 = vmatprep.subr.mxu0 0.0
    %1597 = vmatpush1.msra.mxu0 %v94
    %1598 = vmatprep.subr.mxu0 0.0
    %1599 = vmatpush1.msra.mxu0 %v95
    %1600 = vmatprep.subr.mxu0 0.0
    %1601 = vmatpush1.msra.mxu0 %v96
    %1602 = vmatprep.subr.mxu0 0.0
    %1603 = vmatpush1.msra.mxu0 0.0
    %1604 = vmatprep.subr.mxu0 0.0
    %1605 = vmatpush1.msra.mxu0 0.0
    %1606 = vmatprep.subr.mxu0 0.0
    %1607 = vmatpush1.msra.mxu0 0.0
    %1608 = vmatprep.subr.mxu0 0.0
    %1609 = vmatpush1.msra.mxu0 0.0
    %1610 = vmatprep.subr.mxu0 0.0
    %1611 = vmatpush1.msra.mxu0 0.0
    %1612 = vmatprep.subr.mxu0 0.0
    %1613 = vmatpush1.msra.mxu0 0.0
    %1614 = vmatprep.subr.mxu0 0.0
    %1615 = vmatpush1.msra.mxu0 0.0
    %1616 = vmatprep.subr.mxu0 0.0
    %1617 = vmatpush1.msra.mxu0 0.0
    %1618 = vmatprep.subr.mxu0 0.0
    %1619 = vmatpush1.msra.mxu0 0.0
    %1620 = vmatprep.subr.mxu0 0.0
    %1621 = vmatpush1.msra.mxu0 0.0
    %1622 = vmatprep.subr.mxu0 0.0
    %1623 = vmatpush1.msra.mxu0 0.0
    %1624 = vmatprep.subr.mxu0 0.0
    %1625 = vmatpush1.msra.mxu0 0.0
    %1626 = vmatprep.subr.mxu0 0.0
    %1627 = vmatpush1.msra.mxu0 0.0
    %1628 = vmatprep.subr.mxu0 0.0
    %1629 = vmatpush1.msra.mxu0 0.0
    %1630 = vmatprep.subr.mxu0 0.0
    %1631 = vmatpush1.msra.mxu0 0.0
    %1632 = vmatprep.subr.mxu0 0.0
    %1633 = vmatpush1.msra.mxu0 0.0
    %1634 = vmatprep.subr.mxu0 0.0
    %1635 = vmatpush1.msra.mxu0 0.0
    %1636 = vmatprep.subr.mxu0 0.0
    %1637 = vmatpush1.msra.mxu0 0.0
    %1638 = vmatprep.subr.mxu0 0.0
    %1639 = vmatpush1.msra.mxu0 0.0
    %1640 = vmatprep.subr.mxu0 0.0
    %1641 = vmatpush1.msra.mxu0 0.0
    %1642 = vmatprep.subr.mxu0 0.0
    %1643 = vmatpush1.msra.mxu0 0.0
    %1644 = vmatprep.subr.mxu0 0.0
    %1645 = vmatpush1.msra.mxu0 0.0
    %1646 = vmatprep.subr.mxu0 0.0
    %1647 = vmatpush1.msra.mxu0 0.0
    %1648 = vmatprep.subr.mxu0 0.0
    %1649 = vmatpush1.msra.mxu0 0.0
    %1650 = vmatprep.subr.mxu0 0.0
    %1651 = vmatpush1.msra.mxu0 0.0
    %1652 = vmatprep.subr.mxu0 0.0
    %1653 = vmatpush1.msra.mxu0 0.0
    %1654 = vmatprep.subr.mxu0 0.0
    %1655 = vmatpush1.msra.mxu0 0.0
    %1656 = vmatprep.subr.mxu0 0.0
    %1657 = vmatpush1.msra.mxu0 0.0
    %1658 = vmatprep.mubr.f32.mxu0 0.0
    %1659 = vmatmul.mubr.f32.gmra.mrb[0].mxu0 %v1592
    %v1660 = vpop.f32.mrb[0].mxu0
    %v1661 = vadd.f32 0.0, %v1660
    %v1662 = vpop.f32.mrb[0].mxu0
    %1663 = vdwg.mxu0
    %1665 = vrot.lane.b32.xlu0 %v1591, 32
    %v1666 = vpop.permute.xlu0 %1665
    %v1667 = vsel %vm103, %v1666, 0
    %1669 = vmatprep.subr.mxu0 0.0
    %1670 = vmatpush1.msra.mxu0 %v89
    %1671 = vmatprep.subr.mxu0 0.0
    %1672 = vmatpush1.msra.mxu0 %v90
    %1673 = vmatprep.subr.mxu0 0.0
    %1674 = vmatpush1.msra.mxu0 %v91
    %1675 = vmatprep.subr.mxu0 0.0
    %1676 = vmatpush1.msra.mxu0 %v92
    %1677 = vmatprep.subr.mxu0 0.0
    %1678 = vmatpush1.msra.mxu0 0.0
    %1679 = vmatprep.subr.mxu0 0.0
    %1680 = vmatpush1.msra.mxu0 0.0
    %1681 = vmatprep.subr.mxu0 0.0
    %1682 = vmatpush1.msra.mxu0 0.0
    %1683 = vmatprep.subr.mxu0 0.0
    %1684 = vmatpush1.msra.mxu0 0.0
    %1685 = vmatprep.subr.mxu0 0.0
    %1686 = vmatpush1.msra.mxu0 0.0
    %1687 = vmatprep.subr.mxu0 0.0
    %1688 = vmatpush1.msra.mxu0 0.0
    %1689 = vmatprep.subr.mxu0 0.0
    %1690 = vmatpush1.msra.mxu0 0.0
    %1691 = vmatprep.subr.mxu0 0.0
    %1692 = vmatpush1.msra.mxu0 0.0
    %1693 = vmatprep.subr.mxu0 0.0
    %1694 = vmatpush1.msra.mxu0 0.0
    %1695 = vmatprep.subr.mxu0 0.0
    %1696 = vmatpush1.msra.mxu0 0.0
    %1697 = vmatprep.subr.mxu0 0.0
    %1698 = vmatpush1.msra.mxu0 0.0
    %1699 = vmatprep.subr.mxu0 0.0
    %1700 = vmatpush1.msra.mxu0 0.0
    %1701 = vmatprep.subr.mxu0 0.0
    %1702 = vmatpush1.msra.mxu0 0.0
    %1703 = vmatprep.subr.mxu0 0.0
    %1704 = vmatpush1.msra.mxu0 0.0
    %1705 = vmatprep.subr.mxu0 0.0
    %1706 = vmatpush1.msra.mxu0 0.0
    %1707 = vmatprep.subr.mxu0 0.0
    %1708 = vmatpush1.msra.mxu0 0.0
    %1709 = vmatprep.subr.mxu0 0.0
    %1710 = vmatpush1.msra.mxu0 0.0
    %1711 = vmatprep.subr.mxu0 0.0
    %1712 = vmatpush1.msra.mxu0 0.0
    %1713 = vmatprep.subr.mxu0 0.0
    %1714 = vmatpush1.msra.mxu0 0.0
    %1715 = vmatprep.subr.mxu0 0.0
    %1716 = vmatpush1.msra.mxu0 0.0
    %1717 = vmatprep.subr.mxu0 0.0
    %1718 = vmatpush1.msra.mxu0 0.0
    %1719 = vmatprep.subr.mxu0 0.0
    %1720 = vmatpush1.msra.mxu0 0.0
    %1721 = vmatprep.subr.mxu0 0.0
    %1722 = vmatpush1.msra.mxu0 0.0
    %1723 = vmatprep.subr.mxu0 0.0
    %1724 = vmatpush1.msra.mxu0 0.0
    %1725 = vmatprep.subr.mxu0 0.0
    %1726 = vmatpush1.msra.mxu0 0.0
    %1727 = vmatprep.subr.mxu0 0.0
    %1728 = vmatpush1.msra.mxu0 0.0
    %1729 = vmatprep.subr.mxu0 0.0
    %1730 = vmatpush1.msra.mxu0 0.0
    %1731 = vmatprep.subr.mxu0 0.0
    %1732 = vmatpush1.msra.mxu0 0.0
    %1733 = vmatprep.mubr.f32.mxu0 0.0
    %1734 = vmatmul.mubr.f32.gmra.mrb[0].mxu0 %v1667
    %v1735 = vpop.f32.mrb[0].mxu0
    %v1736 = vadd.f32 %v1661, %v1735
    %v1737 = vpop.f32.mrb[0].mxu0
    %1738 = vdwg.mxu0
    %v1739 = vadd.f32 %v1736, %v358
    %v1740 = vxor.u32 %v1739, 2147483648
    %v1741 = vmul.f32 %v1740, 1.442695
    %v1742 = vpow.pop %v1741
    %v1743 = vadd.f32 %v1742, 1.0
    %v1744 = vrcp.pop %v1743
    %v1745 = vmul.f32 1.0, %v1744
    %v1746 = vtanh.pop %v1739
    %v1747 = vmul.f32 %v1745, %v1482
    %1749 = vrot.lane.b32.xlu0 %v1746, 64
    %v1750 = vpop.permute.xlu0 %1749
    %v1752 = vmul.f32 %v1745, %v1750
    %1754 = vrot.lane.b32.xlu0 %v1752, 32
    %v1755 = vpop.permute.xlu0 %1754
    %v1757 = vadd.f32 %v1747, %v1755
    %v1758 = vtanh.pop %v1757
    %1760 = vrot.lane.b32.xlu0 %v1758, 64
    %v1761 = vpop.permute.xlu0 %1760
    %v1763 = vmul.f32 %v1745, %v1761
    %1765 = vrot.lane.b32.xlu0 %v1763, 32
    %v1766 = vpop.permute.xlu0 %1765
    %s1768 = scalar_lea.vmem [#allocation14], 10
    %1769 = vst.msk [vmem:[%s1768] sm:$0x3] %vm393, %v1766
    %s1770 = scalar_lea.vmem [#allocation6], 12
    %v1771 = vld [vmem:[%s1770] sm:$0x3]
    %1772 = vmatprep.subr.mxu0 0.0
    %1773 = vmatpush1.msra.mxu0 %v85
    %1774 = vmatprep.subr.mxu0 0.0
    %1775 = vmatpush1.msra.mxu0 %v86
    %1776 = vmatprep.subr.mxu0 0.0
    %1777 = vmatpush1.msra.mxu0 %v87
    %1778 = vmatprep.subr.mxu0 0.0
    %1779 = vmatpush1.msra.mxu0 %v88
    %1780 = vmatprep.subr.mxu0 0.0
    %1781 = vmatpush1.msra.mxu0 0.0
    %1782 = vmatprep.subr.mxu0 0.0
    %1783 = vmatpush1.msra.mxu0 0.0
    %1784 = vmatprep.subr.mxu0 0.0
    %1785 = vmatpush1.msra.mxu0 0.0
    %1786 = vmatprep.subr.mxu0 0.0
    %1787 = vmatpush1.msra.mxu0 0.0
    %1788 = vmatprep.subr.mxu0 0.0
    %1789 = vmatpush1.msra.mxu0 0.0
    %1790 = vmatprep.subr.mxu0 0.0
    %1791 = vmatpush1.msra.mxu0 0.0
    %1792 = vmatprep.subr.mxu0 0.0
    %1793 = vmatpush1.msra.mxu0 0.0
    %1794 = vmatprep.subr.mxu0 0.0
    %1795 = vmatpush1.msra.mxu0 0.0
    %1796 = vmatprep.subr.mxu0 0.0
    %1797 = vmatpush1.msra.mxu0 0.0
    %1798 = vmatprep.subr.mxu0 0.0
    %1799 = vmatpush1.msra.mxu0 0.0
    %1800 = vmatprep.subr.mxu0 0.0
    %1801 = vmatpush1.msra.mxu0 0.0
    %1802 = vmatprep.subr.mxu0 0.0
    %1803 = vmatpush1.msra.mxu0 0.0
    %1804 = vmatprep.subr.mxu0 0.0
    %1805 = vmatpush1.msra.mxu0 0.0
    %1806 = vmatprep.subr.mxu0 0.0
    %1807 = vmatpush1.msra.mxu0 0.0
    %1808 = vmatprep.subr.mxu0 0.0
    %1809 = vmatpush1.msra.mxu0 0.0
    %1810 = vmatprep.subr.mxu0 0.0
    %1811 = vmatpush1.msra.mxu0 0.0
    %1812 = vmatprep.subr.mxu0 0.0
    %1813 = vmatpush1.msra.mxu0 0.0
    %1814 = vmatprep.subr.mxu0 0.0
    %1815 = vmatpush1.msra.mxu0 0.0
    %1816 = vmatprep.subr.mxu0 0.0
    %1817 = vmatpush1.msra.mxu0 0.0
    %1818 = vmatprep.subr.mxu0 0.0
    %1819 = vmatpush1.msra.mxu0 0.0
    %1820 = vmatprep.subr.mxu0 0.0
    %1821 = vmatpush1.msra.mxu0 0.0
    %1822 = vmatprep.subr.mxu0 0.0
    %1823 = vmatpush1.msra.mxu0 0.0
    %1824 = vmatprep.subr.mxu0 0.0
    %1825 = vmatpush1.msra.mxu0 0.0
    %1826 = vmatprep.subr.mxu0 0.0
    %1827 = vmatpush1.msra.mxu0 0.0
    %1828 = vmatprep.subr.mxu0 0.0
    %1829 = vmatpush1.msra.mxu0 0.0
    %1830 = vmatprep.subr.mxu0 0.0
    %1831 = vmatpush1.msra.mxu0 0.0
    %1832 = vmatprep.subr.mxu0 0.0
    %1833 = vmatpush1.msra.mxu0 0.0
    %1834 = vmatprep.subr.mxu0 0.0
    %1835 = vmatpush1.msra.mxu0 0.0
    %1836 = vmatprep.mubr.f32.mxu0 0.0
    %1837 = vmatmul.mubr.f32.gmra.mrb[0].mxu0 %v1667
    %v1838 = vpop.f32.mrb[0].mxu0
    %v1839 = vadd.f32 0.0, %v1838
    %v1840 = vpop.f32.mrb[0].mxu0
    %1841 = vdwg.mxu0
    %v1842 = vadd.f32 %v1771, %v1839
    %v1843 = vxor.u32 %v1842, 2147483648
    %v1844 = vmul.f32 %v1843, 1.442695
    %v1845 = vpow.pop %v1844
    %v1846 = vadd.f32 %v1845, 1.0
    %v1847 = vrcp.pop %v1846
    %v1848 = vmul.f32 1.0, %v1847
    %v1849 = vtanh.pop %v1842
    %v1850 = vmul.f32 %v1848, %v1585
    %1852 = vrot.lane.b32.xlu0 %v1849, 64
    %v1853 = vpop.permute.xlu0 %1852
    %v1855 = vmul.f32 %v1848, %v1853
    %1857 = vrot.lane.b32.xlu0 %v1855, 32
    %v1858 = vpop.permute.xlu0 %1857
    %v1860 = vadd.f32 %v1850, %v1858
    %v1861 = vtanh.pop %v1860
    %1863 = vrot.lane.b32.xlu0 %v1861, 64
    %v1864 = vpop.permute.xlu0 %1863
    %v1866 = vmul.f32 %v1848, %v1864
    %v1867 = vsel %vm103, %v1766, 0
    %1869 = vmatprep.subr.mxu0 0.0
    %1870 = vmatpush1.msra.mxu0 %v93
    %1871 = vmatprep.subr.mxu0 0.0
    %1872 = vmatpush1.msra.mxu0 %v94
    %1873 = vmatprep.subr.mxu0 0.0
    %1874 = vmatpush1.msra.mxu0 %v95
    %1875 = vmatprep.subr.mxu0 0.0
    %1876 = vmatpush1.msra.mxu0 %v96
    %1877 = vmatprep.subr.mxu0 0.0
    %1878 = vmatpush1.msra.mxu0 0.0
    %1879 = vmatprep.subr.mxu0 0.0
    %1880 = vmatpush1.msra.mxu0 0.0
    %1881 = vmatprep.subr.mxu0 0.0
    %1882 = vmatpush1.msra.mxu0 0.0
    %1883 = vmatprep.subr.mxu0 0.0
    %1884 = vmatpush1.msra.mxu0 0.0
    %1885 = vmatprep.subr.mxu0 0.0
    %1886 = vmatpush1.msra.mxu0 0.0
    %1887 = vmatprep.subr.mxu0 0.0
    %1888 = vmatpush1.msra.mxu0 0.0
    %1889 = vmatprep.subr.mxu0 0.0
    %1890 = vmatpush1.msra.mxu0 0.0
    %1891 = vmatprep.subr.mxu0 0.0
    %1892 = vmatpush1.msra.mxu0 0.0
    %1893 = vmatprep.subr.mxu0 0.0
    %1894 = vmatpush1.msra.mxu0 0.0
    %1895 = vmatprep.subr.mxu0 0.0
    %1896 = vmatpush1.msra.mxu0 0.0
    %1897 = vmatprep.subr.mxu0 0.0
    %1898 = vmatpush1.msra.mxu0 0.0
    %1899 = vmatprep.subr.mxu0 0.0
    %1900 = vmatpush1.msra.mxu0 0.0
    %1901 = vmatprep.subr.mxu0 0.0
    %1902 = vmatpush1.msra.mxu0 0.0
    %1903 = vmatprep.subr.mxu0 0.0
    %1904 = vmatpush1.msra.mxu0 0.0
    %1905 = vmatprep.subr.mxu0 0.0
    %1906 = vmatpush1.msra.mxu0 0.0
    %1907 = vmatprep.subr.mxu0 0.0
    %1908 = vmatpush1.msra.mxu0 0.0
    %1909 = vmatprep.subr.mxu0 0.0
    %1910 = vmatpush1.msra.mxu0 0.0
    %1911 = vmatprep.subr.mxu0 0.0
    %1912 = vmatpush1.msra.mxu0 0.0
    %1913 = vmatprep.subr.mxu0 0.0
    %1914 = vmatpush1.msra.mxu0 0.0
    %1915 = vmatprep.subr.mxu0 0.0
    %1916 = vmatpush1.msra.mxu0 0.0
    %1917 = vmatprep.subr.mxu0 0.0
    %1918 = vmatpush1.msra.mxu0 0.0
    %1919 = vmatprep.subr.mxu0 0.0
    %1920 = vmatpush1.msra.mxu0 0.0
    %1921 = vmatprep.subr.mxu0 0.0
    %1922 = vmatpush1.msra.mxu0 0.0
    %1923 = vmatprep.subr.mxu0 0.0
    %1924 = vmatpush1.msra.mxu0 0.0
    %1925 = vmatprep.subr.mxu0 0.0
    %1926 = vmatpush1.msra.mxu0 0.0
    %1927 = vmatprep.subr.mxu0 0.0
    %1928 = vmatpush1.msra.mxu0 0.0
    %1929 = vmatprep.subr.mxu0 0.0
    %1930 = vmatpush1.msra.mxu0 0.0
    %1931 = vmatprep.subr.mxu0 0.0
    %1932 = vmatpush1.msra.mxu0 0.0
    %1933 = vmatprep.mubr.f32.mxu0 0.0
    %1934 = vmatmul.mubr.f32.gmra.mrb[0].mxu0 %v1867
    %v1935 = vpop.f32.mrb[0].mxu0
    %v1936 = vadd.f32 0.0, %v1935
    %v1937 = vpop.f32.mrb[0].mxu0
    %1938 = vdwg.mxu0
    %1940 = vrot.lane.b32.xlu0 %v1866, 32
    %v1941 = vpop.permute.xlu0 %1940
    %v1942 = vsel %vm103, %v1941, 0
    %1944 = vmatprep.subr.mxu0 0.0
    %1945 = vmatpush1.msra.mxu0 %v89
    %1946 = vmatprep.subr.mxu0 0.0
    %1947 = vmatpush1.msra.mxu0 %v90
    %1948 = vmatprep.subr.mxu0 0.0
    %1949 = vmatpush1.msra.mxu0 %v91
    %1950 = vmatprep.subr.mxu0 0.0
    %1951 = vmatpush1.msra.mxu0 %v92
    %1952 = vmatprep.subr.mxu0 0.0
    %1953 = vmatpush1.msra.mxu0 0.0
    %1954 = vmatprep.subr.mxu0 0.0
    %1955 = vmatpush1.msra.mxu0 0.0
    %1956 = vmatprep.subr.mxu0 0.0
    %1957 = vmatpush1.msra.mxu0 0.0
    %1958 = vmatprep.subr.mxu0 0.0
    %1959 = vmatpush1.msra.mxu0 0.0
    %1960 = vmatprep.subr.mxu0 0.0
    %1961 = vmatpush1.msra.mxu0 0.0
    %1962 = vmatprep.subr.mxu0 0.0
    %1963 = vmatpush1.msra.mxu0 0.0
    %1964 = vmatprep.subr.mxu0 0.0
    %1965 = vmatpush1.msra.mxu0 0.0
    %1966 = vmatprep.subr.mxu0 0.0
    %1967 = vmatpush1.msra.mxu0 0.0
    %1968 = vmatprep.subr.mxu0 0.0
    %1969 = vmatpush1.msra.mxu0 0.0
    %1970 = vmatprep.subr.mxu0 0.0
    %1971 = vmatpush1.msra.mxu0 0.0
    %1972 = vmatprep.subr.mxu0 0.0
    %1973 = vmatpush1.msra.mxu0 0.0
    %1974 = vmatprep.subr.mxu0 0.0
    %1975 = vmatpush1.msra.mxu0 0.0
    %1976 = vmatprep.subr.mxu0 0.0
    %1977 = vmatpush1.msra.mxu0 0.0
    %1978 = vmatprep.subr.mxu0 0.0
    %1979 = vmatpush1.msra.mxu0 0.0
    %1980 = vmatprep.subr.mxu0 0.0
    %1981 = vmatpush1.msra.mxu0 0.0
    %1982 = vmatprep.subr.mxu0 0.0
    %1983 = vmatpush1.msra.mxu0 0.0
    %1984 = vmatprep.subr.mxu0 0.0
    %1985 = vmatpush1.msra.mxu0 0.0
    %1986 = vmatprep.subr.mxu0 0.0
    %1987 = vmatpush1.msra.mxu0 0.0
    %1988 = vmatprep.subr.mxu0 0.0
    %1989 = vmatpush1.msra.mxu0 0.0
    %1990 = vmatprep.subr.mxu0 0.0
    %1991 = vmatpush1.msra.mxu0 0.0
    %1992 = vmatprep.subr.mxu0 0.0
    %1993 = vmatpush1.msra.mxu0 0.0
    %1994 = vmatprep.subr.mxu0 0.0
    %1995 = vmatpush1.msra.mxu0 0.0
    %1996 = vmatprep.subr.mxu0 0.0
    %1997 = vmatpush1.msra.mxu0 0.0
    %1998 = vmatprep.subr.mxu0 0.0
    %1999 = vmatpush1.msra.mxu0 0.0
    %2000 = vmatprep.subr.mxu0 0.0
    %2001 = vmatpush1.msra.mxu0 0.0
    %2002 = vmatprep.subr.mxu0 0.0
    %2003 = vmatpush1.msra.mxu0 0.0
    %2004 = vmatprep.subr.mxu0 0.0
    %2005 = vmatpush1.msra.mxu0 0.0
    %2006 = vmatprep.subr.mxu0 0.0
    %2007 = vmatpush1.msra.mxu0 0.0
    %2008 = vmatprep.mubr.f32.mxu0 0.0
    %2009 = vmatmul.mubr.f32.gmra.mrb[0].mxu0 %v1942
    %v2010 = vpop.f32.mrb[0].mxu0
    %v2011 = vadd.f32 %v1936, %v2010
    %v2012 = vpop.f32.mrb[0].mxu0
    %2013 = vdwg.mxu0
    %v2014 = vadd.f32 %v2011, %v358
    %v2015 = vxor.u32 %v2014, 2147483648
    %v2016 = vmul.f32 %v2015, 1.442695
    %v2017 = vpow.pop %v2016
    %v2018 = vadd.f32 %v2017, 1.0
    %v2019 = vrcp.pop %v2018
    %v2020 = vmul.f32 1.0, %v2019
    %v2021 = vtanh.pop %v2014
    %v2022 = vmul.f32 %v2020, %v1757
    %2024 = vrot.lane.b32.xlu0 %v2021, 64
    %v2025 = vpop.permute.xlu0 %2024
    %v2027 = vmul.f32 %v2020, %v2025
    %2029 = vrot.lane.b32.xlu0 %v2027, 32
    %v2030 = vpop.permute.xlu0 %2029
    %v2032 = vadd.f32 %v2022, %v2030
    %v2033 = vtanh.pop %v2032
    %2035 = vrot.lane.b32.xlu0 %v2033, 64
    %v2036 = vpop.permute.xlu0 %2035
    %v2038 = vmul.f32 %v2020, %v2036
    %2040 = vrot.lane.b32.xlu0 %v2038, 32
    %v2041 = vpop.permute.xlu0 %2040
    %s2043 = scalar_lea.vmem [#allocation14], 12
    %2044 = vst.msk [vmem:[%s2043] sm:$0x3] %vm393, %v2041
    %s2045 = scalar_lea.vmem [#allocation6], 14
    %v2046 = vld [vmem:[%s2045] sm:$0x3]
    %2047 = vmatprep.subr.mxu0 0.0
    %2048 = vmatpush1.msra.mxu0 %v85
    %2049 = vmatprep.subr.mxu0 0.0
    %2050 = vmatpush1.msra.mxu0 %v86
    %2051 = vmatprep.subr.mxu0 0.0
    %2052 = vmatpush1.msra.mxu0 %v87
    %2053 = vmatprep.subr.mxu0 0.0
    %2054 = vmatpush1.msra.mxu0 %v88
    %2055 = vmatprep.subr.mxu0 0.0
    %2056 = vmatpush1.msra.mxu0 0.0
    %2057 = vmatprep.subr.mxu0 0.0
    %2058 = vmatpush1.msra.mxu0 0.0
    %2059 = vmatprep.subr.mxu0 0.0
    %2060 = vmatpush1.msra.mxu0 0.0
    %2061 = vmatprep.subr.mxu0 0.0
    %2062 = vmatpush1.msra.mxu0 0.0
    %2063 = vmatprep.subr.mxu0 0.0
    %2064 = vmatpush1.msra.mxu0 0.0
    %2065 = vmatprep.subr.mxu0 0.0
    %2066 = vmatpush1.msra.mxu0 0.0
    %2067 = vmatprep.subr.mxu0 0.0
    %2068 = vmatpush1.msra.mxu0 0.0
    %2069 = vmatprep.subr.mxu0 0.0
    %2070 = vmatpush1.msra.mxu0 0.0
    %2071 = vmatprep.subr.mxu0 0.0
    %2072 = vmatpush1.msra.mxu0 0.0
    %2073 = vmatprep.subr.mxu0 0.0
    %2074 = vmatpush1.msra.mxu0 0.0
    %2075 = vmatprep.subr.mxu0 0.0
    %2076 = vmatpush1.msra.mxu0 0.0
    %2077 = vmatprep.subr.mxu0 0.0
    %2078 = vmatpush1.msra.mxu0 0.0
    %2079 = vmatprep.subr.mxu0 0.0
    %2080 = vmatpush1.msra.mxu0 0.0
    %2081 = vmatprep.subr.mxu0 0.0
    %2082 = vmatpush1.msra.mxu0 0.0
    %2083 = vmatprep.subr.mxu0 0.0
    %2084 = vmatpush1.msra.mxu0 0.0
    %2085 = vmatprep.subr.mxu0 0.0
    %2086 = vmatpush1.msra.mxu0 0.0
    %2087 = vmatprep.subr.mxu0 0.0
    %2088 = vmatpush1.msra.mxu0 0.0
    %2089 = vmatprep.subr.mxu0 0.0
    %2090 = vmatpush1.msra.mxu0 0.0
    %2091 = vmatprep.subr.mxu0 0.0
    %2092 = vmatpush1.msra.mxu0 0.0
    %2093 = vmatprep.subr.mxu0 0.0
    %2094 = vmatpush1.msra.mxu0 0.0
    %2095 = vmatprep.subr.mxu0 0.0
    %2096 = vmatpush1.msra.mxu0 0.0
    %2097 = vmatprep.subr.mxu0 0.0
    %2098 = vmatpush1.msra.mxu0 0.0
    %2099 = vmatprep.subr.mxu0 0.0
    %2100 = vmatpush1.msra.mxu0 0.0
    %2101 = vmatprep.subr.mxu0 0.0
    %2102 = vmatpush1.msra.mxu0 0.0
    %2103 = vmatprep.subr.mxu0 0.0
    %2104 = vmatpush1.msra.mxu0 0.0
    %2105 = vmatprep.subr.mxu0 0.0
    %2106 = vmatpush1.msra.mxu0 0.0
    %2107 = vmatprep.subr.mxu0 0.0
    %2108 = vmatpush1.msra.mxu0 0.0
    %2109 = vmatprep.subr.mxu0 0.0
    %2110 = vmatpush1.msra.mxu0 0.0
    %2111 = vmatprep.mubr.f32.mxu0 0.0
    %2112 = vmatmul.mubr.f32.gmra.mrb[0].mxu0 %v1942
    %v2113 = vpop.f32.mrb[0].mxu0
    %v2114 = vadd.f32 0.0, %v2113
    %v2115 = vpop.f32.mrb[0].mxu0
    %2116 = vdwg.mxu0
    %v2117 = vadd.f32 %v2046, %v2114
    %v2118 = vxor.u32 %v2117, 2147483648
    %v2119 = vmul.f32 %v2118, 1.442695
    %v2120 = vpow.pop %v2119
    %v2121 = vadd.f32 %v2120, 1.0
    %v2122 = vrcp.pop %v2121
    %v2123 = vmul.f32 1.0, %v2122
    %v2124 = vtanh.pop %v2117
    %v2125 = vmul.f32 %v2123, %v1860
    %2127 = vrot.lane.b32.xlu0 %v2124, 64
    %v2128 = vpop.permute.xlu0 %2127
    %v2130 = vmul.f32 %v2123, %v2128
    %2132 = vrot.lane.b32.xlu0 %v2130, 32
    %v2133 = vpop.permute.xlu0 %2132
    %v2135 = vadd.f32 %v2125, %v2133
    %v2136 = vtanh.pop %v2135
    %2138 = vrot.lane.b32.xlu0 %v2136, 64
    %v2139 = vpop.permute.xlu0 %2138
    %v2141 = vmul.f32 %v2123, %v2139
    %v2142 = vsel %vm103, %v2041, 0
    %2144 = vmatprep.subr.mxu0 0.0
    %2145 = vmatpush1.msra.mxu0 %v93
    %2146 = vmatprep.subr.mxu0 0.0
    %2147 = vmatpush1.msra.mxu0 %v94
    %2148 = vmatprep.subr.mxu0 0.0
    %2149 = vmatpush1.msra.mxu0 %v95
    %2150 = vmatprep.subr.mxu0 0.0
    %2151 = vmatpush1.msra.mxu0 %v96
    %2152 = vmatprep.subr.mxu0 0.0
    %2153 = vmatpush1.msra.mxu0 0.0
    %2154 = vmatprep.subr.mxu0 0.0
    %2155 = vmatpush1.msra.mxu0 0.0
    %2156 = vmatprep.subr.mxu0 0.0
    %2157 = vmatpush1.msra.mxu0 0.0
    %2158 = vmatprep.subr.mxu0 0.0
    %2159 = vmatpush1.msra.mxu0 0.0
    %2160 = vmatprep.subr.mxu0 0.0
    %2161 = vmatpush1.msra.mxu0 0.0
    %2162 = vmatprep.subr.mxu0 0.0
    %2163 = vmatpush1.msra.mxu0 0.0
    %2164 = vmatprep.subr.mxu0 0.0
    %2165 = vmatpush1.msra.mxu0 0.0
    %2166 = vmatprep.subr.mxu0 0.0
    %2167 = vmatpush1.msra.mxu0 0.0
    %2168 = vmatprep.subr.mxu0 0.0
    %2169 = vmatpush1.msra.mxu0 0.0
    %2170 = vmatprep.subr.mxu0 0.0
    %2171 = vmatpush1.msra.mxu0 0.0
    %2172 = vmatprep.subr.mxu0 0.0
    %2173 = vmatpush1.msra.mxu0 0.0
    %2174 = vmatprep.subr.mxu0 0.0
    %2175 = vmatpush1.msra.mxu0 0.0
    %2176 = vmatprep.subr.mxu0 0.0
    %2177 = vmatpush1.msra.mxu0 0.0
    %2178 = vmatprep.subr.mxu0 0.0
    %2179 = vmatpush1.msra.mxu0 0.0
    %2180 = vmatprep.subr.mxu0 0.0
    %2181 = vmatpush1.msra.mxu0 0.0
    %2182 = vmatprep.subr.mxu0 0.0
    %2183 = vmatpush1.msra.mxu0 0.0
    %2184 = vmatprep.subr.mxu0 0.0
    %2185 = vmatpush1.msra.mxu0 0.0
    %2186 = vmatprep.subr.mxu0 0.0
    %2187 = vmatpush1.msra.mxu0 0.0
    %2188 = vmatprep.subr.mxu0 0.0
    %2189 = vmatpush1.msra.mxu0 0.0
    %2190 = vmatprep.subr.mxu0 0.0
    %2191 = vmatpush1.msra.mxu0 0.0
    %2192 = vmatprep.subr.mxu0 0.0
    %2193 = vmatpush1.msra.mxu0 0.0
    %2194 = vmatprep.subr.mxu0 0.0
    %2195 = vmatpush1.msra.mxu0 0.0
    %2196 = vmatprep.subr.mxu0 0.0
    %2197 = vmatpush1.msra.mxu0 0.0
    %2198 = vmatprep.subr.mxu0 0.0
    %2199 = vmatpush1.msra.mxu0 0.0
    %2200 = vmatprep.subr.mxu0 0.0
    %2201 = vmatpush1.msra.mxu0 0.0
    %2202 = vmatprep.subr.mxu0 0.0
    %2203 = vmatpush1.msra.mxu0 0.0
    %2204 = vmatprep.subr.mxu0 0.0
    %2205 = vmatpush1.msra.mxu0 0.0
    %2206 = vmatprep.subr.mxu0 0.0
    %2207 = vmatpush1.msra.mxu0 0.0
    %2208 = vmatprep.mubr.f32.mxu0 0.0
    %2209 = vmatmul.mubr.f32.gmra.mrb[0].mxu0 %v2142
    %v2210 = vpop.f32.mrb[0].mxu0
    %v2211 = vadd.f32 0.0, %v2210
    %v2212 = vpop.f32.mrb[0].mxu0
    %2213 = vdwg.mxu0
    %2215 = vrot.lane.b32.xlu0 %v2141, 32
    %v2216 = vpop.permute.xlu0 %2215
    %v2217 = vsel %vm103, %v2216, 0
    %2219 = vmatprep.subr.mxu0 0.0
    %2220 = vmatpush1.msra.mxu0 %v89
    %2221 = vmatprep.subr.mxu0 0.0
    %2222 = vmatpush1.msra.mxu0 %v90
    %2223 = vmatprep.subr.mxu0 0.0
    %2224 = vmatpush1.msra.mxu0 %v91
    %2225 = vmatprep.subr.mxu0 0.0
    %2226 = vmatpush1.msra.mxu0 %v92
    %2227 = vmatprep.subr.mxu0 0.0
    %2228 = vmatpush1.msra.mxu0 0.0
    %2229 = vmatprep.subr.mxu0 0.0
    %2230 = vmatpush1.msra.mxu0 0.0
    %2231 = vmatprep.subr.mxu0 0.0
    %2232 = vmatpush1.msra.mxu0 0.0
    %2233 = vmatprep.subr.mxu0 0.0
    %2234 = vmatpush1.msra.mxu0 0.0
    %2235 = vmatprep.subr.mxu0 0.0
    %2236 = vmatpush1.msra.mxu0 0.0
    %2237 = vmatprep.subr.mxu0 0.0
    %2238 = vmatpush1.msra.mxu0 0.0
    %2239 = vmatprep.subr.mxu0 0.0
    %2240 = vmatpush1.msra.mxu0 0.0
    %2241 = vmatprep.subr.mxu0 0.0
    %2242 = vmatpush1.msra.mxu0 0.0
    %2243 = vmatprep.subr.mxu0 0.0
    %2244 = vmatpush1.msra.mxu0 0.0
    %2245 = vmatprep.subr.mxu0 0.0
    %2246 = vmatpush1.msra.mxu0 0.0
    %2247 = vmatprep.subr.mxu0 0.0
    %2248 = vmatpush1.msra.mxu0 0.0
    %2249 = vmatprep.subr.mxu0 0.0
    %2250 = vmatpush1.msra.mxu0 0.0
    %2251 = vmatprep.subr.mxu0 0.0
    %2252 = vmatpush1.msra.mxu0 0.0
    %2253 = vmatprep.subr.mxu0 0.0
    %2254 = vmatpush1.msra.mxu0 0.0
    %2255 = vmatprep.subr.mxu0 0.0
    %2256 = vmatpush1.msra.mxu0 0.0
    %2257 = vmatprep.subr.mxu0 0.0
    %2258 = vmatpush1.msra.mxu0 0.0
    %2259 = vmatprep.subr.mxu0 0.0
    %2260 = vmatpush1.msra.mxu0 0.0
    %2261 = vmatprep.subr.mxu0 0.0
    %2262 = vmatpush1.msra.mxu0 0.0
    %2263 = vmatprep.subr.mxu0 0.0
    %2264 = vmatpush1.msra.mxu0 0.0
    %2265 = vmatprep.subr.mxu0 0.0
    %2266 = vmatpush1.msra.mxu0 0.0
    %2267 = vmatprep.subr.mxu0 0.0
    %2268 = vmatpush1.msra.mxu0 0.0
    %2269 = vmatprep.subr.mxu0 0.0
    %2270 = vmatpush1.msra.mxu0 0.0
    %2271 = vmatprep.subr.mxu0 0.0
    %2272 = vmatpush1.msra.mxu0 0.0
    %2273 = vmatprep.subr.mxu0 0.0
    %2274 = vmatpush1.msra.mxu0 0.0
    %2275 = vmatprep.subr.mxu0 0.0
    %2276 = vmatpush1.msra.mxu0 0.0
    %2277 = vmatprep.subr.mxu0 0.0
    %2278 = vmatpush1.msra.mxu0 0.0
    %2279 = vmatprep.subr.mxu0 0.0
    %2280 = vmatpush1.msra.mxu0 0.0
    %2281 = vmatprep.subr.mxu0 0.0
    %2282 = vmatpush1.msra.mxu0 0.0
    %2283 = vmatprep.mubr.f32.mxu0 0.0
    %2284 = vmatmul.mubr.f32.gmra.mrb[0].mxu0 %v2217
    %v2285 = vpop.f32.mrb[0].mxu0
    %v2286 = vadd.f32 %v2211, %v2285
    %v2287 = vpop.f32.mrb[0].mxu0
    %2288 = vdwg.mxu0
    %v2289 = vadd.f32 %v2286, %v358
    %v2290 = vxor.u32 %v2289, 2147483648
    %v2291 = vmul.f32 %v2290, 1.442695
    %v2292 = vpow.pop %v2291
    %v2293 = vadd.f32 %v2292, 1.0
    %v2294 = vrcp.pop %v2293
    %v2295 = vmul.f32 1.0, %v2294
    %v2296 = vtanh.pop %v2289
    %v2297 = vmul.f32 %v2295, %v2032
    %2299 = vrot.lane.b32.xlu0 %v2296, 64
    %v2300 = vpop.permute.xlu0 %2299
    %v2302 = vmul.f32 %v2295, %v2300
    %2304 = vrot.lane.b32.xlu0 %v2302, 32
    %v2305 = vpop.permute.xlu0 %2304
    %v2307 = vadd.f32 %v2297, %v2305
    %v2308 = vtanh.pop %v2307
    %2310 = vrot.lane.b32.xlu0 %v2308, 64
    %v2311 = vpop.permute.xlu0 %2310
    %v2313 = vmul.f32 %v2295, %v2311
    %2315 = vrot.lane.b32.xlu0 %v2313, 32
    %v2316 = vpop.permute.xlu0 %2315
    %s2318 = scalar_lea.vmem [#allocation14], 14
    %2319 = vst.msk [vmem:[%s2318] sm:$0x3] %vm393, %v2316
    %2321 = vst.msk [vmem:[#allocation2] sm:$0x3] %vm393, %v2216
    %2323 = vrot.lane.b32.xlu0 %v2135, 96
    %v2324 = vpop.permute.xlu0 %2323
    %2326 = vst.msk [vmem:[#allocation3] sm:$0x3] %vm393, %v2324
    %2327 = vst.msk [vmem:[#allocation4] sm:$0x3] %vm393, %v2316
    %2329 = vrot.lane.b32.xlu0 %v2307, 96
    %v2330 = vpop.permute.xlu0 %2329
    %2332 = vst.msk [vmem:[#allocation5] sm:$0x3] %vm393, %v2330
    // Predicated region
    $region42: #{tpu_custom_call.1} parent=1 // pred_check
      _
    $region43: #{tpu_custom_call.1} parent=1 // pred_check_branch
      %2334 = sbr.rel (0) target = $region45
    $region44: #{tpu_custom_call.1} parent=1 // pred_region
      %s2336 = ssub.s32 256, 256
      %2337 = vsyncadd [#allocation8], %s2336
      %s2338 = sshll.u32 [#allocation14], 4
      %s2339 = int_to_ptr.vmem [resolvable:$true] %s2338
      %2344 = dma.vmem_to_hbm [thread:$0]  %s2339, 256, %s5, [#allocation8], 32, 32, 2
    $region45: #{tpu_custom_call.1} parent=1 // pred_fallthru
      _
    // Predicated region
    $region46: #{tpu_custom_call.1} parent=1 // pred_check
      _
    $region47: #{tpu_custom_call.1} parent=1 // pred_check_branch
      %2346 = sbr.rel (0) target = $region49
    $region48: #{tpu_custom_call.1} parent=1 // pred_region
      %2347 = dma.done [#allocation8], 256
    $region49: #{tpu_custom_call.1} parent=1 // pred_fallthru
      _
    %2348 = vsyncpa [#allocation7], 1
    %2349 = vsyncpa [#allocation10], 1
    %2350 = vsyncpa [#allocation13], 1
    %2351 = vsyncpa [#allocation8], 1

</llo_original>
